<compile_context>
chip_gen: v6e
topology: v6e:2x2x1
jax: 0.10.0
libtpu: 0.0.40
codegen_flags: <defaults>
</compile_context>

<pallas_src>
import jax
import jax.numpy as jnp
from jax.experimental import pallas as pl
from jax.experimental.pallas import tpu as pltpu

FEATURE_DIM = 128     # small-scale stand-in for ResNet-50's 2048-d features
HIDDEN = 512
NUM_CLASSES = 10
OUT_PAD = 128         # lane-padded logits width
BN_EPS = 1e-5
BLOCK_N = 8           # batch block (f32 sublane multiple)


# ---------------------------------------------------------------------------
# Fused kernel: extractor stand-in + classifier, one batch block per grid step
# ---------------------------------------------------------------------------
def fused_kernel(x_ref, wp_ref, w1_ref, b1_ref, w2_ref, b2_ref, o_ref):
    """x_ref: (BN, C*HW)  wp_ref: (C, F)  w1_ref: (F, H)  b1_ref: (1, H)
       w2_ref: (H, OUT_PAD)  b2_ref: (1, OUT_PAD)  o_ref: (BN, OUT_PAD)."""
    bn = x_ref.shape[0]
    c, f = wp_ref.shape
    hw = x_ref.shape[1] // c

    x = x_ref[...]                                   # (BN, C*HW), lane-dense
    wp = wp_ref[...]                                 # (C, F)

    # ---- extractor stand-in: 1x1 projection via C VPU broadcast-FMAs,
    #      ReLU, global average pool over spatial.
    # acc[n, s, f] = sum_c x[n, c*HW + s] * wp[c, f]
    acc = x[:, 0:hw][:, :, None] * wp[0][None, None, :]        # (BN, HW, F)
    for ci in range(1, c):                            # C is tiny & static
        xc = x[:, ci * hw:(ci + 1) * hw]              # (BN, HW) lane-aligned
        acc = acc + xc[:, :, None] * wp[ci][None, None, :]
    acc = jnp.maximum(acc, 0.0)                       # ReLU (VPU)
    feats = jnp.mean(acc, axis=1)                     # (BN, F) global avg pool

    # ---- classifier: Linear(F,512) [BN folded] -> (Dropout=id) -> ReLU
    #      -> (Dropout=id) -> Linear(512, OUT_PAD)
    z = jnp.dot(feats, w1_ref[...], preferred_element_type=jnp.float32)
    z = jnp.maximum(z + b1_ref[...], 0.0)
    o_ref[...] = jnp.dot(z, w2_ref[...],
                         preferred_element_type=jnp.float32) + b2_ref[...]


# ---------------------------------------------------------------------------
# Wrapper
# ---------------------------------------------------------------------------
def base_model_forward(x_nchw, params):
    n, c, h, w = x_nchw.shape
    hw = h * w
    x2d = x_nchw.reshape(n, c * hw)          # free reshape of NCHW, no transpose

    # pad batch to a sublane multiple (masked sublanes / MXU underfill removed)
    n_pad = ((n + BLOCK_N - 1) // BLOCK_N) * BLOCK_N
    if n_pad != n:
        x2d = jnp.pad(x2d, ((0, n_pad - n), (0, 0)))

    # fold BatchNorm1d (running stats, eval semantics) into Linear(F, 512)
    scale = params["gamma"] * jax.lax.rsqrt(params["rvar"] + BN_EPS)   # (1, H)
    w1_eff = params["w1"] * scale                                      # (F, H)
    b1_eff = (params["b1"] - params["rmean"]) * scale + params["beta"]

    # lane-pad the final Linear to 128 output columns (unmasked stores)
    w2p = jnp.zeros((HIDDEN, OUT_PAD), jnp.float32)
    w2p = w2p.at[:, :NUM_CLASSES].set(params["w2"])
    b2p = jnp.zeros((1, OUT_PAD), jnp.float32)
    b2p = b2p.at[:, :NUM_CLASSES].set(params["b2"])

    grid = (n_pad // BLOCK_N,)
    flops = n_pad * (2 * c * hw * FEATURE_DIM
                     + 2 * FEATURE_DIM * HIDDEN
                     + 2 * HIDDEN * OUT_PAD)
    bytes_accessed = 4 * (n_pad * c * hw + c * FEATURE_DIM
                          + FEATURE_DIM * HIDDEN + HIDDEN
                          + HIDDEN * OUT_PAD + OUT_PAD + n_pad * OUT_PAD)

    logits_pad = pl.pallas_call(
        fused_kernel,
        out_shape=jax.ShapeDtypeStruct((n_pad, OUT_PAD), jnp.float32),
        grid_spec=pltpu.PrefetchScalarGridSpec(
            num_scalar_prefetch=0,
            grid=grid,
            in_specs=[
                pl.BlockSpec((BLOCK_N, c * hw), lambda i: (i, 0)),      # x
                pl.BlockSpec((c, FEATURE_DIM), lambda i: (0, 0)),       # wp
                pl.BlockSpec((FEATURE_DIM, HIDDEN), lambda i: (0, 0)),  # w1_eff
                pl.BlockSpec((1, HIDDEN), lambda i: (0, 0)),            # b1_eff
                pl.BlockSpec((HIDDEN, OUT_PAD), lambda i: (0, 0)),      # w2 pad
                pl.BlockSpec((1, OUT_PAD), lambda i: (0, 0)),           # b2 pad
            ],
            out_specs=pl.BlockSpec((BLOCK_N, OUT_PAD), lambda i: (i, 0)),
        ),
        compiler_params=pltpu.CompilerParams(
            dimension_semantics=("parallel",)),
        cost_estimate=pl.CostEstimate(flops=flops, transcendentals=0,
                                      bytes_accessed=bytes_accessed),
    )(x2d, params["wp"], w1_eff, b1_eff, w2p, b2p)

    return logits_pad[:n, :NUM_CLASSES]


# ---------------------------------------------------------------------------
# Params / pure-JAX reference (eval semantics) for a sanity check
# ---------------------------------------------------------------------------
def init_params(key, in_channels):
    ks = jax.random.split(key, 8)
    f32 = jnp.float32
    return {
        # extractor stand-in: pointwise projection C -> FEATURE_DIM
        "wp": 0.1 * jax.random.normal(ks[0], (in_channels, FEATURE_DIM), f32),
        # classifier Linear(feature_dim, 512)  (stored as (in, out))
        "w1": 0.05 * jax.random.normal(ks[1], (FEATURE_DIM, HIDDEN), f32),
        "b1": 0.01 * jax.random.normal(ks[2], (1, HIDDEN), f32),
        # BatchNorm1d(512) affine params + running stats
        "gamma": 1.0 + 0.1 * jax.random.normal(ks[3], (1, HIDDEN), f32),
        "beta": 0.1 * jax.random.normal(ks[4], (1, HIDDEN), f32),
        "rmean": 0.05 * jax.random.normal(ks[5], (1, HIDDEN), f32),
        "rvar": 0.5 + jax.random.uniform(ks[6], (1, HIDDEN), f32),
        # classifier Linear(512, num_classes)
        "w2": 0.05 * jax.random.normal(ks[7], (HIDDEN, NUM_CLASSES), f32),
        "b2": jnp.zeros((1, NUM_CLASSES), f32),
    }


def _reference_forward(x_nchw, params):
    n, c, h, w = x_nchw.shape
    xs = jnp.transpose(x_nchw, (0, 2, 3, 1)).reshape(n, h * w, c)
    hp = jnp.maximum(jnp.einsum("nsc,cf->nsf", xs, params["wp"]), 0.0)
    feats = jnp.mean(hp, axis=1)
    z = feats @ params["w1"] + params["b1"]
    z = ((z - params["rmean"]) * jax.lax.rsqrt(params["rvar"] + BN_EPS)
         * params["gamma"] + params["beta"])
    z = jnp.maximum(z, 0.0)
    return z @ params["w2"] + params["b2"]


if __name__ == "__main__":
    key = jax.random.PRNGKey(0)
    k_x, k_p = jax.random.split(key)

    # small shapes: batch=2, channels=4, spatial=16x16  (PyTorch NCHW)
    x = jax.random.normal(k_x, (2, 4, 16, 16), jnp.float32)
    params = init_params(k_p, in_channels=4)

    out = jax.block_until_ready(base_model_forward(x, params))
    assert out.shape == (2, NUM_CLASSES), out.shape
    assert bool(jnp.all(jnp.isfinite(out)))

    ref = _reference_forward(x, params)
    assert bool(jnp.allclose(out, ref, atol=1e-2, rtol=1e-2))
    print("KERNEL_OK")
</pallas_src>

<mosaic_0001>
module attributes {stable_mosaic.version = 11 : i64} {
  func.func @fused_kernel(%arg0: i32, %arg1: memref<8x1024xf32, #tpu.memory_space<vmem>>, %arg2: memref<4x128xf32, #tpu.memory_space<vmem>>, %arg3: memref<128x512xf32, #tpu.memory_space<vmem>>, %arg4: memref<1x512xf32, #tpu.memory_space<vmem>>, %arg5: memref<512x128xf32, #tpu.memory_space<vmem>>, %arg6: memref<1x128xf32, #tpu.memory_space<vmem>>, %arg7: memref<8x128xf32, #tpu.memory_space<vmem>>) attributes {dimension_semantics = [#tpu.dimension_semantics<parallel>], iteration_bounds = array<i64: 1>, scalar_prefetch = 0 : i64, scratch_operands = 0 : i64, tpu.core_type = #tpu.core_type<tc>, window_params = [{transform_indices = @transform_0, window_bounds = array<i64: 8, 1024>}, {pipeline_mode = #tpu.pipeline_mode<synchronous>, transform_indices = @transform_1, window_bounds = array<i64: 4, 128>}, {pipeline_mode = #tpu.pipeline_mode<synchronous>, transform_indices = @transform_2, window_bounds = array<i64: 128, 512>}, {pipeline_mode = #tpu.pipeline_mode<synchronous>, transform_indices = @transform_3, window_bounds = array<i64: 1, 512>}, {pipeline_mode = #tpu.pipeline_mode<synchronous>, transform_indices = @transform_4, window_bounds = array<i64: 512, 128>}, {pipeline_mode = #tpu.pipeline_mode<synchronous>, transform_indices = @transform_5, window_bounds = array<i64: 1, 128>}, {transform_indices = @transform_6, window_bounds = array<i64: 8, 128>}]} {
    %c0 = arith.constant 0 : index
    %c0_0 = arith.constant 0 : index
    %0 = vector.load %arg1[%c0, %c0_0] : memref<8x1024xf32, #tpu.memory_space<vmem>>, vector<8x1024xf32>
    %c0_1 = arith.constant 0 : index
    %c0_2 = arith.constant 0 : index
    %1 = vector.load %arg2[%c0_1, %c0_2] : memref<4x128xf32, #tpu.memory_space<vmem>>, vector<4x128xf32>
    %2 = vector.extract_strided_slice %0 {offsets = [0, 0], sizes = [8, 256], strides = [1, 1]} : vector<8x1024xf32> to vector<8x256xf32>
    %3 = vector.shape_cast %2 : vector<8x256xf32> to vector<8x256x1xf32>
    %4 = vector.extract_strided_slice %1 {offsets = [0, 0], sizes = [1, 128], strides = [1, 1]} : vector<4x128xf32> to vector<1x128xf32>
    %5 = vector.shape_cast %4 : vector<1x128xf32> to vector<128xf32>
    %6 = vector.shape_cast %5 : vector<128xf32> to vector<1x1x128xf32>
    %7 = vector.broadcast %3 : vector<8x256x1xf32> to vector<8x256x128xf32>
    %8 = vector.broadcast %6 : vector<1x1x128xf32> to vector<8x256x128xf32>
    %9 = arith.mulf %7, %8 : vector<8x256x128xf32>
    %10 = vector.extract_strided_slice %0 {offsets = [0, 256], sizes = [8, 256], strides = [1, 1]} : vector<8x1024xf32> to vector<8x256xf32>
    %11 = vector.shape_cast %10 : vector<8x256xf32> to vector<8x256x1xf32>
    %12 = vector.extract_strided_slice %1 {offsets = [1, 0], sizes = [1, 128], strides = [1, 1]} : vector<4x128xf32> to vector<1x128xf32>
    %13 = vector.shape_cast %12 : vector<1x128xf32> to vector<128xf32>
    %14 = vector.shape_cast %13 : vector<128xf32> to vector<1x1x128xf32>
    %15 = vector.broadcast %11 : vector<8x256x1xf32> to vector<8x256x128xf32>
    %16 = vector.broadcast %14 : vector<1x1x128xf32> to vector<8x256x128xf32>
    %17 = arith.mulf %15, %16 : vector<8x256x128xf32>
    %18 = arith.addf %9, %17 : vector<8x256x128xf32>
    %19 = vector.extract_strided_slice %0 {offsets = [0, 512], sizes = [8, 256], strides = [1, 1]} : vector<8x1024xf32> to vector<8x256xf32>
    %20 = vector.shape_cast %19 : vector<8x256xf32> to vector<8x256x1xf32>
    %21 = vector.extract_strided_slice %1 {offsets = [2, 0], sizes = [1, 128], strides = [1, 1]} : vector<4x128xf32> to vector<1x128xf32>
    %22 = vector.shape_cast %21 : vector<1x128xf32> to vector<128xf32>
    %23 = vector.shape_cast %22 : vector<128xf32> to vector<1x1x128xf32>
    %24 = vector.broadcast %20 : vector<8x256x1xf32> to vector<8x256x128xf32>
    %25 = vector.broadcast %23 : vector<1x1x128xf32> to vector<8x256x128xf32>
    %26 = arith.mulf %24, %25 : vector<8x256x128xf32>
    %27 = arith.addf %18, %26 : vector<8x256x128xf32>
    %28 = vector.extract_strided_slice %0 {offsets = [0, 768], sizes = [8, 256], strides = [1, 1]} : vector<8x1024xf32> to vector<8x256xf32>
    %29 = vector.shape_cast %28 : vector<8x256xf32> to vector<8x256x1xf32>
    %30 = vector.extract_strided_slice %1 {offsets = [3, 0], sizes = [1, 128], strides = [1, 1]} : vector<4x128xf32> to vector<1x128xf32>
    %31 = vector.shape_cast %30 : vector<1x128xf32> to vector<128xf32>
    %32 = vector.shape_cast %31 : vector<128xf32> to vector<1x1x128xf32>
    %33 = vector.broadcast %29 : vector<8x256x1xf32> to vector<8x256x128xf32>
    %34 = vector.broadcast %32 : vector<1x1x128xf32> to vector<8x256x128xf32>
    %35 = arith.mulf %33, %34 : vector<8x256x128xf32>
    %36 = arith.addf %27, %35 : vector<8x256x128xf32>
    %cst = arith.constant 0.000000e+00 : f32
    %37 = vector.broadcast %cst : f32 to vector<8x256x128xf32>
    %38 = arith.maximumf %36, %37 : vector<8x256x128xf32>
    %cst_3 = arith.constant dense<0.000000e+00> : vector<8x128xf32>
    %39 = vector.multi_reduction <add>, %38, %cst_3 [1] : vector<8x256x128xf32> to vector<8x128xf32>
    %cst_4 = arith.constant 2.560000e+02 : f32
    %40 = vector.broadcast %cst_4 : f32 to vector<8x128xf32>
    %41 = arith.divf %39, %40 : vector<8x128xf32>
    %c0_5 = arith.constant 0 : index
    %c0_6 = arith.constant 0 : index
    %42 = vector.load %arg3[%c0_5, %c0_6] : memref<128x512xf32, #tpu.memory_space<vmem>>, vector<128x512xf32>
    %cst_7 = arith.constant dense<0.000000e+00> : vector<8x512xf32>
    %43 = tpu.matmul %41, %42, %cst_7 {dimension_numbers = #tpu.dot_dimension_numbers<[1], [0], [0], [1], [0, 0, 1, 1], [], []>} : vector<8x128xf32>, vector<128x512xf32>, vector<8x512xf32> -> vector<8x512xf32>
    %c0_8 = arith.constant 0 : index
    %c0_9 = arith.constant 0 : index
    %44 = vector.load %arg4[%c0_8, %c0_9] : memref<1x512xf32, #tpu.memory_space<vmem>>, vector<1x512xf32>
    %45 = vector.broadcast %44 : vector<1x512xf32> to vector<8x512xf32>
    %46 = arith.addf %43, %45 : vector<8x512xf32>
    %cst_10 = arith.constant 0.000000e+00 : f32
    %47 = vector.broadcast %cst_10 : f32 to vector<8x512xf32>
    %48 = arith.maximumf %46, %47 : vector<8x512xf32>
    %c0_11 = arith.constant 0 : index
    %c0_12 = arith.constant 0 : index
    %49 = vector.load %arg5[%c0_11, %c0_12] : memref<512x128xf32, #tpu.memory_space<vmem>>, vector<512x128xf32>
    %cst_13 = arith.constant dense<0.000000e+00> : vector<8x128xf32>
    %50 = tpu.matmul %48, %49, %cst_13 {dimension_numbers = #tpu.dot_dimension_numbers<[1], [0], [0], [1], [0, 0, 1, 1], [], []>} : vector<8x512xf32>, vector<512x128xf32>, vector<8x128xf32> -> vector<8x128xf32>
    %c0_14 = arith.constant 0 : index
    %c0_15 = arith.constant 0 : index
    %51 = vector.load %arg6[%c0_14, %c0_15] : memref<1x128xf32, #tpu.memory_space<vmem>>, vector<1x128xf32>
    %52 = vector.broadcast %51 : vector<1x128xf32> to vector<8x128xf32>
    %53 = arith.addf %50, %52 : vector<8x128xf32>
    %c0_16 = arith.constant 0 : index
    %c0_17 = arith.constant 0 : index
    %54 = vector.load %arg7[%c0_16, %c0_17] : memref<8x128xf32, #tpu.memory_space<vmem>>, vector<8x128xf32>
    tpu.vector_store %arg7[%c0_16, %c0_17], %53 {strides = array<i32>} : memref<8x128xf32, #tpu.memory_space<vmem>>, vector<8x128xf32>,
    return
  }
  func.func @transform_0(%arg0: i32) -> (i32, i32) {
    %c0_i32 = arith.constant 0 : i32
    %c0_i32_0 = arith.constant 0 : i32
    return %arg0, %c0_i32 : i32, i32
  }
  func.func @transform_1(%arg0: i32) -> (i32, i32) {
    %c0_i32 = arith.constant 0 : i32
    %c0_i32_0 = arith.constant 0 : i32
    %c0_i32_1 = arith.constant 0 : i32
    return %c0_i32, %c0_i32_0 : i32, i32
  }
  func.func @transform_2(%arg0: i32) -> (i32, i32) {
    %c0_i32 = arith.constant 0 : i32
    %c0_i32_0 = arith.constant 0 : i32
    %c0_i32_1 = arith.constant 0 : i32
    return %c0_i32, %c0_i32_0 : i32, i32
  }
  func.func @transform_3(%arg0: i32) -> (i32, i32) {
    %c0_i32 = arith.constant 0 : i32
    %c0_i32_0 = arith.constant 0 : i32
    %c0_i32_1 = arith.constant 0 : i32
    return %c0_i32, %c0_i32_0 : i32, i32
  }
  func.func @transform_4(%arg0: i32) -> (i32, i32) {
    %c0_i32 = arith.constant 0 : i32
    %c0_i32_0 = arith.constant 0 : i32
    %c0_i32_1 = arith.constant 0 : i32
    return %c0_i32, %c0_i32_0 : i32, i32
  }
  func.func @transform_5(%arg0: i32) -> (i32, i32) {
    %c0_i32 = arith.constant 0 : i32
    %c0_i32_0 = arith.constant 0 : i32
    %c0_i32_1 = arith.constant 0 : i32
    return %c0_i32, %c0_i32_0 : i32, i32
  }
  func.func @transform_6(%arg0: i32) -> (i32, i32) {
    %c0_i32 = arith.constant 0 : i32
    %c0_i32_0 = arith.constant 0 : i32
    return %arg0, %c0_i32 : i32, i32
  }
}

</mosaic_0001>

<llo_original>
// kernel: tpu_custom_call.1
$region0: #{tpu_custom_call.1}
  #allocation0 [shape = 'u32[]', space=smem, size = 0x4, offset = 0x4, fixed_abs, tag = 'smem constant byte address 0x4 - core index']
  #allocation1 [shape = 'u32[144,128]{1,0:T(1,128)}', space=vmem, size = 0x12000, scoped, tag = 'internal scratch']
  %s0 = inlined_call_operand.hbm [shape: f32[8,1024], index: 0, kind: input, shape index: {}]
  %s1 = inlined_call_operand.hbm [shape: f32[4,128], index: 1, kind: input, shape index: {}]
  %s2 = inlined_call_operand.hbm [shape: f32[128,512], index: 2, kind: input, shape index: {}]
  %s3 = inlined_call_operand.vmem [shape: f32[1,512], index: 3, kind: input, shape index: {}]
  %s4 = inlined_call_operand.hbm [shape: f32[512,128], index: 4, kind: input, shape index: {}]
  %s5 = inlined_call_operand.vmem [shape: f32[1,128], index: 5, kind: input, shape index: {}]
  %s6 = inlined_call_operand.hbm [shape: f32[8,128], index: 6, kind: output, shape index: {}]
  %s7 = sld [smem:[#allocation0]]
  $region50: #{tpu_custom_call.1} parent=0
    _
  %s9 = ssub.s32 1, %s7
  %s10 = scalar_select 0, %s9, %s7
  $region1: #{tpu_custom_call.1} parent=0
    #allocation2 [shape = 'u8[32768]{0}', space=vmem, size = 0x8000, scoped, tag = 'input window, operand 0, single buffered']
    #allocation3 [shape = 's32[1]{0}', space=sflag, size = 0x4, scoped, tag = 'scoped memory for tpu_custom_call.1']
    #allocation4 [shape = 's32[1]{0}', space=sflag, size = 0x4, scoped, tag = 'scoped memory for tpu_custom_call.1']
    #allocation5 [shape = 'u8[2048]{0}', space=vmem, size = 0x800, scoped, tag = 'input window, operand 1, single buffered']
    #allocation6 [shape = 's32[1]{0}', space=sflag, size = 0x4, scoped, tag = 'scoped memory for tpu_custom_call.1']
    #allocation7 [shape = 'u8[262144]{0}', space=vmem, size = 0x40000, scoped, tag = 'input window, operand 2, single buffered']
    #allocation8 [shape = 'u8[262144]{0}', space=vmem, size = 0x40000, scoped, tag = 'input window, operand 4, single buffered']
    #allocation9 [shape = 's32[1]{0}', space=sflag, size = 0x4, scoped, tag = 'scoped memory for tpu_custom_call.1']
    #allocation10 [shape = 'u8[4096]{0}', space=vmem, size = 0x1000, scoped, tag = 'output window, operand 0, single buffered']
    %11 = vsyncpa [#allocation3], 0
    %12 = vsyncpa [#allocation6], 0
    %13 = vsyncpa [#allocation9], 0
    %14 = vsyncpa [#allocation4], 0
    // Predicated region
    $region2: #{tpu_custom_call.1} parent=1 // pred_check
      _
    $region3: #{tpu_custom_call.1} parent=1 // pred_check_branch
      %16 = sbr.rel (0) target = $region5
    $region4: #{tpu_custom_call.1} parent=1 // pred_region
      %s18 = ssub.s32 1024, 1024
      %19 = vsyncadd [#allocation3], %s18
      %s21 = sshll.u32 [#allocation2], 4
      %s22 = int_to_ptr.vmem [resolvable:$true] %s21
      %24 = dma.hbm_to_vmem [thread:$0]  %s0, 1024, %s22, [#allocation3]
    $region5: #{tpu_custom_call.1} parent=1 // pred_fallthru
      _
    // Predicated region
    $region6: #{tpu_custom_call.1} parent=1 // pred_check
      _
    $region7: #{tpu_custom_call.1} parent=1 // pred_check_branch
      %26 = sbr.rel (0) target = $region9
    $region8: #{tpu_custom_call.1} parent=1 // pred_region
      %s28 = ssub.s32 64, 64
      %29 = vsyncadd [#allocation6], %s28
      %s31 = sshll.u32 [#allocation5], 4
      %s32 = int_to_ptr.vmem [resolvable:$true] %s31
      %34 = dma.hbm_to_vmem [thread:$0]  %s1, 64, %s32, [#allocation6]
    $region9: #{tpu_custom_call.1} parent=1 // pred_fallthru
      _
    // Predicated region
    $region10: #{tpu_custom_call.1} parent=1 // pred_check
      _
    $region11: #{tpu_custom_call.1} parent=1 // pred_check_branch
      %36 = sbr.rel (0) target = $region13
    $region12: #{tpu_custom_call.1} parent=1 // pred_region
      %s38 = ssub.s32 8192, 8192
      %39 = vsyncadd [#allocation6], %s38
      %s40 = sshll.u32 [#allocation7], 4
      %s41 = int_to_ptr.vmem [resolvable:$true] %s40
      %46 = dma.hbm_to_vmem [thread:$0]  %s2, 8192, %s41, [#allocation6], 512, 512, 32
    $region13: #{tpu_custom_call.1} parent=1 // pred_fallthru
      _
    // Predicated region
    $region14: #{tpu_custom_call.1} parent=1 // pred_check
      _
    $region15: #{tpu_custom_call.1} parent=1 // pred_check_branch
      %48 = sbr.rel (0) target = $region17
    $region16: #{tpu_custom_call.1} parent=1 // pred_region
      _
    $region17: #{tpu_custom_call.1} parent=1 // pred_fallthru
      _
    // Predicated region
    $region18: #{tpu_custom_call.1} parent=1 // pred_check
      _
    $region19: #{tpu_custom_call.1} parent=1 // pred_check_branch
      %50 = sbr.rel (0) target = $region21
    $region20: #{tpu_custom_call.1} parent=1 // pred_region
      %s52 = ssub.s32 8192, 8192
      %53 = vsyncadd [#allocation9], %s52
      %s54 = sshll.u32 [#allocation8], 4
      %s55 = int_to_ptr.vmem [resolvable:$true] %s54
      %60 = dma.hbm_to_vmem [thread:$0]  %s4, 8192, %s55, [#allocation9], 128, 128, 8
    $region21: #{tpu_custom_call.1} parent=1 // pred_fallthru
      _
    // Predicated region
    $region22: #{tpu_custom_call.1} parent=1 // pred_check
      _
    $region23: #{tpu_custom_call.1} parent=1 // pred_check_branch
      %62 = sbr.rel (0) target = $region25
    $region24: #{tpu_custom_call.1} parent=1 // pred_region
      _
    $region25: #{tpu_custom_call.1} parent=1 // pred_fallthru
      _
    // Predicated region
    $region26: #{tpu_custom_call.1} parent=1 // pred_check
      _
    $region27: #{tpu_custom_call.1} parent=1 // pred_check_branch
      %64 = sbr.rel (0) target = $region29
    $region28: #{tpu_custom_call.1} parent=1 // pred_region
      %65 = dma.done [#allocation3], 1024
    $region29: #{tpu_custom_call.1} parent=1 // pred_fallthru
      _
    // Predicated region
    $region30: #{tpu_custom_call.1} parent=1 // pred_check
      _
    $region31: #{tpu_custom_call.1} parent=1 // pred_check_branch
      %67 = sbr.rel (0) target = $region33
    $region32: #{tpu_custom_call.1} parent=1 // pred_region
      %68 = dma.done [#allocation6], 64
    $region33: #{tpu_custom_call.1} parent=1 // pred_fallthru
      _
    // Predicated region
    $region34: #{tpu_custom_call.1} parent=1 // pred_check
      _
    $region35: #{tpu_custom_call.1} parent=1 // pred_check_branch
      %70 = sbr.rel (0) target = $region37
    $region36: #{tpu_custom_call.1} parent=1 // pred_region
      %71 = dma.done [#allocation6], 8192
    $region37: #{tpu_custom_call.1} parent=1 // pred_fallthru
      _
    // Predicated region
    $region38: #{tpu_custom_call.1} parent=1 // pred_check
      _
    $region39: #{tpu_custom_call.1} parent=1 // pred_check_branch
      %73 = sbr.rel (0) target = $region41
    $region40: #{tpu_custom_call.1} parent=1 // pred_region
      %74 = dma.done [#allocation9], 8192
    $region41: #{tpu_custom_call.1} parent=1 // pred_fallthru
      _
    %v75 = vld [vmem:[#allocation2] sm:$0xff]
    %v76 = vld [vmem:[#allocation2 + $0x8] sm:$0xff]
    %v77 = vld [vmem:[#allocation2 + $0x10] sm:$0xff]
    %v78 = vld [vmem:[#allocation2 + $0x18] sm:$0xff]
    %v79 = vld [vmem:[#allocation2 + $0x20] sm:$0xff]
    %v80 = vld [vmem:[#allocation2 + $0x28] sm:$0xff]
    %v81 = vld [vmem:[#allocation2 + $0x30] sm:$0xff]
    %v82 = vld [vmem:[#allocation2 + $0x38] sm:$0xff]
    %v83 = vld [vmem:[#allocation5] sm:$0xf]
    %v84 = vlaneseq
    %v85 = vshrl.u32 %v84, 7
    %v86 = vsub.s32 0, %v85
    %v87 = vrot.slane %v75, %v86
    %89 = vbcast.lane.b32.xlu0 %v87, 256
    %v90 = vpop.permute.xlu0 %89
    %s92 = sor.u32 256, 8
    %93 = vbcast.lane.b32.xlu0 %v87, %s92
    %v94 = vpop.permute.xlu0 %93
    %s96 = sor.u32 256, 16
    %97 = vbcast.lane.b32.xlu0 %v87, %s96
    %v98 = vpop.permute.xlu0 %97
    %s100 = sor.u32 256, 24
    %101 = vbcast.lane.b32.xlu0 %v87, %s100
    %v102 = vpop.permute.xlu0 %101
    %s104 = sor.u32 256, 32
    %105 = vbcast.lane.b32.xlu0 %v87, %s104
    %v106 = vpop.permute.xlu0 %105
    %s108 = sor.u32 256, 40
    %109 = vbcast.lane.b32.xlu0 %v87, %s108
    %v110 = vpop.permute.xlu0 %109
    %s112 = sor.u32 256, 48
    %113 = vbcast.lane.b32.xlu0 %v87, %s112
    %v114 = vpop.permute.xlu0 %113
    %s116 = sor.u32 256, 56
    %117 = vbcast.lane.b32.xlu0 %v87, %s116
    %v118 = vpop.permute.xlu0 %117
    %s120 = sor.u32 256, 64
    %121 = vbcast.lane.b32.xlu0 %v87, %s120
    %v122 = vpop.permute.xlu0 %121
    %s124 = sor.u32 256, 72
    %125 = vbcast.lane.b32.xlu0 %v87, %s124
    %v126 = vpop.permute.xlu0 %125
    %s128 = sor.u32 256, 80
    %129 = vbcast.lane.b32.xlu0 %v87, %s128
    %v130 = vpop.permute.xlu0 %129
    %s132 = sor.u32 256, 88
    %133 = vbcast.lane.b32.xlu0 %v87, %s132
    %v134 = vpop.permute.xlu0 %133
    %s136 = sor.u32 256, 96
    %137 = vbcast.lane.b32.xlu0 %v87, %s136
    %v138 = vpop.permute.xlu0 %137
    %s140 = sor.u32 256, 104
    %141 = vbcast.lane.b32.xlu0 %v87, %s140
    %v142 = vpop.permute.xlu0 %141
    %s144 = sor.u32 256, 112
    %145 = vbcast.lane.b32.xlu0 %v87, %s144
    %v146 = vpop.permute.xlu0 %145
    %s148 = sor.u32 256, 120
    %149 = vbcast.lane.b32.xlu0 %v87, %s148
    %v150 = vpop.permute.xlu0 %149
    %v151 = vlaneseq
    %v152 = vshrl.u32 %v151, 7
    %v153 = vsub.s32 0, %v152
    %v154 = vrot.slane %v76, %v153
    %156 = vbcast.lane.b32.xlu0 %v154, 256
    %v157 = vpop.permute.xlu0 %156
    %s159 = sor.u32 256, 8
    %160 = vbcast.lane.b32.xlu0 %v154, %s159
    %v161 = vpop.permute.xlu0 %160
    %s163 = sor.u32 256, 16
    %164 = vbcast.lane.b32.xlu0 %v154, %s163
    %v165 = vpop.permute.xlu0 %164
    %s167 = sor.u32 256, 24
    %168 = vbcast.lane.b32.xlu0 %v154, %s167
    %v169 = vpop.permute.xlu0 %168
    %s171 = sor.u32 256, 32
    %172 = vbcast.lane.b32.xlu0 %v154, %s171
    %v173 = vpop.permute.xlu0 %172
    %s175 = sor.u32 256, 40
    %176 = vbcast.lane.b32.xlu0 %v154, %s175
    %v177 = vpop.permute.xlu0 %176
    %s179 = sor.u32 256, 48
    %180 = vbcast.lane.b32.xlu0 %v154, %s179
    %v181 = vpop.permute.xlu0 %180
    %s183 = sor.u32 256, 56
    %184 = vbcast.lane.b32.xlu0 %v154, %s183
    %v185 = vpop.permute.xlu0 %184
    %s187 = sor.u32 256, 64
    %188 = vbcast.lane.b32.xlu0 %v154, %s187
    %v189 = vpop.permute.xlu0 %188
    %s191 = sor.u32 256, 72
    %192 = vbcast.lane.b32.xlu0 %v154, %s191
    %v193 = vpop.permute.xlu0 %192
    %s195 = sor.u32 256, 80
    %196 = vbcast.lane.b32.xlu0 %v154, %s195
    %v197 = vpop.permute.xlu0 %196
    %s199 = sor.u32 256, 88
    %200 = vbcast.lane.b32.xlu0 %v154, %s199
    %v201 = vpop.permute.xlu0 %200
    %s203 = sor.u32 256, 96
    %204 = vbcast.lane.b32.xlu0 %v154, %s203
    %v205 = vpop.permute.xlu0 %204
    %s207 = sor.u32 256, 104
    %208 = vbcast.lane.b32.xlu0 %v154, %s207
    %v209 = vpop.permute.xlu0 %208
    %s211 = sor.u32 256, 112
    %212 = vbcast.lane.b32.xlu0 %v154, %s211
    %v213 = vpop.permute.xlu0 %212
    %s215 = sor.u32 256, 120
    %216 = vbcast.lane.b32.xlu0 %v154, %s215
    %v217 = vpop.permute.xlu0 %216
    %v218 = vlaneseq
    %v219 = vshrl.u32 %v218, 7
    %v220 = vsub.s32 1, %v219
    %v221 = vrot.slane %v75, %v220
    %223 = vbcast.lane.b32.xlu0 %v221, 256
    %v224 = vpop.permute.xlu0 %223
    %s226 = sor.u32 256, 8
    %227 = vbcast.lane.b32.xlu0 %v221, %s226
    %v228 = vpop.permute.xlu0 %227
    %s230 = sor.u32 256, 16
    %231 = vbcast.lane.b32.xlu0 %v221, %s230
    %v232 = vpop.permute.xlu0 %231
    %s234 = sor.u32 256, 24
    %235 = vbcast.lane.b32.xlu0 %v221, %s234
    %v236 = vpop.permute.xlu0 %235
    %s238 = sor.u32 256, 32
    %239 = vbcast.lane.b32.xlu0 %v221, %s238
    %v240 = vpop.permute.xlu0 %239
    %s242 = sor.u32 256, 40
    %243 = vbcast.lane.b32.xlu0 %v221, %s242
    %v244 = vpop.permute.xlu0 %243
    %s246 = sor.u32 256, 48
    %247 = vbcast.lane.b32.xlu0 %v221, %s246
    %v248 = vpop.permute.xlu0 %247
    %s250 = sor.u32 256, 56
    %251 = vbcast.lane.b32.xlu0 %v221, %s250
    %v252 = vpop.permute.xlu0 %251
    %s254 = sor.u32 256, 64
    %255 = vbcast.lane.b32.xlu0 %v221, %s254
    %v256 = vpop.permute.xlu0 %255
    %s258 = sor.u32 256, 72
    %259 = vbcast.lane.b32.xlu0 %v221, %s258
    %v260 = vpop.permute.xlu0 %259
    %s262 = sor.u32 256, 80
    %263 = vbcast.lane.b32.xlu0 %v221, %s262
    %v264 = vpop.permute.xlu0 %263
    %s266 = sor.u32 256, 88
    %267 = vbcast.lane.b32.xlu0 %v221, %s266
    %v268 = vpop.permute.xlu0 %267
    %s270 = sor.u32 256, 96
    %271 = vbcast.lane.b32.xlu0 %v221, %s270
    %v272 = vpop.permute.xlu0 %271
    %s274 = sor.u32 256, 104
    %275 = vbcast.lane.b32.xlu0 %v221, %s274
    %v276 = vpop.permute.xlu0 %275
    %s278 = sor.u32 256, 112
    %279 = vbcast.lane.b32.xlu0 %v221, %s278
    %v280 = vpop.permute.xlu0 %279
    %s282 = sor.u32 256, 120
    %283 = vbcast.lane.b32.xlu0 %v221, %s282
    %v284 = vpop.permute.xlu0 %283
    %v285 = vlaneseq
    %v286 = vshrl.u32 %v285, 7
    %v287 = vsub.s32 1, %v286
    %v288 = vrot.slane %v76, %v287
    %290 = vbcast.lane.b32.xlu0 %v288, 256
    %v291 = vpop.permute.xlu0 %290
    %s293 = sor.u32 256, 8
    %294 = vbcast.lane.b32.xlu0 %v288, %s293
    %v295 = vpop.permute.xlu0 %294
    %s297 = sor.u32 256, 16
    %298 = vbcast.lane.b32.xlu0 %v288, %s297
    %v299 = vpop.permute.xlu0 %298
    %s301 = sor.u32 256, 24
    %302 = vbcast.lane.b32.xlu0 %v288, %s301
    %v303 = vpop.permute.xlu0 %302
    %s305 = sor.u32 256, 32
    %306 = vbcast.lane.b32.xlu0 %v288, %s305
    %v307 = vpop.permute.xlu0 %306
    %s309 = sor.u32 256, 40
    %310 = vbcast.lane.b32.xlu0 %v288, %s309
    %v311 = vpop.permute.xlu0 %310
    %s313 = sor.u32 256, 48
    %314 = vbcast.lane.b32.xlu0 %v288, %s313
    %v315 = vpop.permute.xlu0 %314
    %s317 = sor.u32 256, 56
    %318 = vbcast.lane.b32.xlu0 %v288, %s317
    %v319 = vpop.permute.xlu0 %318
    %s321 = sor.u32 256, 64
    %322 = vbcast.lane.b32.xlu0 %v288, %s321
    %v323 = vpop.permute.xlu0 %322
    %s325 = sor.u32 256, 72
    %326 = vbcast.lane.b32.xlu0 %v288, %s325
    %v327 = vpop.permute.xlu0 %326
    %s329 = sor.u32 256, 80
    %330 = vbcast.lane.b32.xlu0 %v288, %s329
    %v331 = vpop.permute.xlu0 %330
    %s333 = sor.u32 256, 88
    %334 = vbcast.lane.b32.xlu0 %v288, %s333
    %v335 = vpop.permute.xlu0 %334
    %s337 = sor.u32 256, 96
    %338 = vbcast.lane.b32.xlu0 %v288, %s337
    %v339 = vpop.permute.xlu0 %338
    %s341 = sor.u32 256, 104
    %342 = vbcast.lane.b32.xlu0 %v288, %s341
    %v343 = vpop.permute.xlu0 %342
    %s345 = sor.u32 256, 112
    %346 = vbcast.lane.b32.xlu0 %v288, %s345
    %v347 = vpop.permute.xlu0 %346
    %s349 = sor.u32 256, 120
    %350 = vbcast.lane.b32.xlu0 %v288, %s349
    %v351 = vpop.permute.xlu0 %350
    %v352 = vlaneseq
    %v353 = vshrl.u32 %v352, 7
    %v354 = vsub.s32 2, %v353
    %v355 = vrot.slane %v75, %v354
    %357 = vbcast.lane.b32.xlu0 %v355, 256
    %v358 = vpop.permute.xlu0 %357
    %s360 = sor.u32 256, 8
    %361 = vbcast.lane.b32.xlu0 %v355, %s360
    %v362 = vpop.permute.xlu0 %361
    %s364 = sor.u32 256, 16
    %365 = vbcast.lane.b32.xlu0 %v355, %s364
    %v366 = vpop.permute.xlu0 %365
    %s368 = sor.u32 256, 24
    %369 = vbcast.lane.b32.xlu0 %v355, %s368
    %v370 = vpop.permute.xlu0 %369
    %s372 = sor.u32 256, 32
    %373 = vbcast.lane.b32.xlu0 %v355, %s372
    %v374 = vpop.permute.xlu0 %373
    %s376 = sor.u32 256, 40
    %377 = vbcast.lane.b32.xlu0 %v355, %s376
    %v378 = vpop.permute.xlu0 %377
    %s380 = sor.u32 256, 48
    %381 = vbcast.lane.b32.xlu0 %v355, %s380
    %v382 = vpop.permute.xlu0 %381
    %s384 = sor.u32 256, 56
    %385 = vbcast.lane.b32.xlu0 %v355, %s384
    %v386 = vpop.permute.xlu0 %385
    %s388 = sor.u32 256, 64
    %389 = vbcast.lane.b32.xlu0 %v355, %s388
    %v390 = vpop.permute.xlu0 %389
    %s392 = sor.u32 256, 72
    %393 = vbcast.lane.b32.xlu0 %v355, %s392
    %v394 = vpop.permute.xlu0 %393
    %s396 = sor.u32 256, 80
    %397 = vbcast.lane.b32.xlu0 %v355, %s396
    %v398 = vpop.permute.xlu0 %397
    %s400 = sor.u32 256, 88
    %401 = vbcast.lane.b32.xlu0 %v355, %s400
    %v402 = vpop.permute.xlu0 %401
    %s404 = sor.u32 256, 96
    %405 = vbcast.lane.b32.xlu0 %v355, %s404
    %v406 = vpop.permute.xlu0 %405
    %s408 = sor.u32 256, 104
    %409 = vbcast.lane.b32.xlu0 %v355, %s408
    %v410 = vpop.permute.xlu0 %409
    %s412 = sor.u32 256, 112
    %413 = vbcast.lane.b32.xlu0 %v355, %s412
    %v414 = vpop.permute.xlu0 %413
    %s416 = sor.u32 256, 120
    %417 = vbcast.lane.b32.xlu0 %v355, %s416
    %v418 = vpop.permute.xlu0 %417
    %v419 = vlaneseq
    %v420 = vshrl.u32 %v419, 7
    %v421 = vsub.s32 2, %v420
    %v422 = vrot.slane %v76, %v421
    %424 = vbcast.lane.b32.xlu0 %v422, 256
    %v425 = vpop.permute.xlu0 %424
    %s427 = sor.u32 256, 8
    %428 = vbcast.lane.b32.xlu0 %v422, %s427
    %v429 = vpop.permute.xlu0 %428
    %s431 = sor.u32 256, 16
    %432 = vbcast.lane.b32.xlu0 %v422, %s431
    %v433 = vpop.permute.xlu0 %432
    %s435 = sor.u32 256, 24
    %436 = vbcast.lane.b32.xlu0 %v422, %s435
    %v437 = vpop.permute.xlu0 %436
    %s439 = sor.u32 256, 32
    %440 = vbcast.lane.b32.xlu0 %v422, %s439
    %v441 = vpop.permute.xlu0 %440
    %s443 = sor.u32 256, 40
    %444 = vbcast.lane.b32.xlu0 %v422, %s443
    %v445 = vpop.permute.xlu0 %444
    %s447 = sor.u32 256, 48
    %448 = vbcast.lane.b32.xlu0 %v422, %s447
    %v449 = vpop.permute.xlu0 %448
    %s451 = sor.u32 256, 56
    %452 = vbcast.lane.b32.xlu0 %v422, %s451
    %v453 = vpop.permute.xlu0 %452
    %s455 = sor.u32 256, 64
    %456 = vbcast.lane.b32.xlu0 %v422, %s455
    %v457 = vpop.permute.xlu0 %456
    %s459 = sor.u32 256, 72
    %460 = vbcast.lane.b32.xlu0 %v422, %s459
    %v461 = vpop.permute.xlu0 %460
    %s463 = sor.u32 256, 80
    %464 = vbcast.lane.b32.xlu0 %v422, %s463
    %v465 = vpop.permute.xlu0 %464
    %s467 = sor.u32 256, 88
    %468 = vbcast.lane.b32.xlu0 %v422, %s467
    %v469 = vpop.permute.xlu0 %468
    %s471 = sor.u32 256, 96
    %472 = vbcast.lane.b32.xlu0 %v422, %s471
    %v473 = vpop.permute.xlu0 %472
    %s475 = sor.u32 256, 104
    %476 = vbcast.lane.b32.xlu0 %v422, %s475
    %v477 = vpop.permute.xlu0 %476
    %s479 = sor.u32 256, 112
    %480 = vbcast.lane.b32.xlu0 %v422, %s479
    %v481 = vpop.permute.xlu0 %480
    %s483 = sor.u32 256, 120
    %484 = vbcast.lane.b32.xlu0 %v422, %s483
    %v485 = vpop.permute.xlu0 %484
    %v486 = vlaneseq
    %v487 = vshrl.u32 %v486, 7
    %v488 = vsub.s32 3, %v487
    %v489 = vrot.slane %v75, %v488
    %491 = vbcast.lane.b32.xlu0 %v489, 256
    %v492 = vpop.permute.xlu0 %491
    %s494 = sor.u32 256, 8
    %495 = vbcast.lane.b32.xlu0 %v489, %s494
    %v496 = vpop.permute.xlu0 %495
    %s498 = sor.u32 256, 16
    %499 = vbcast.lane.b32.xlu0 %v489, %s498
    %v500 = vpop.permute.xlu0 %499
    %s502 = sor.u32 256, 24
    %503 = vbcast.lane.b32.xlu0 %v489, %s502
    %v504 = vpop.permute.xlu0 %503
    %s506 = sor.u32 256, 32
    %507 = vbcast.lane.b32.xlu0 %v489, %s506
    %v508 = vpop.permute.xlu0 %507
    %s510 = sor.u32 256, 40
    %511 = vbcast.lane.b32.xlu0 %v489, %s510
    %v512 = vpop.permute.xlu0 %511
    %s514 = sor.u32 256, 48
    %515 = vbcast.lane.b32.xlu0 %v489, %s514
    %v516 = vpop.permute.xlu0 %515
    %s518 = sor.u32 256, 56
    %519 = vbcast.lane.b32.xlu0 %v489, %s518
    %v520 = vpop.permute.xlu0 %519
    %s522 = sor.u32 256, 64
    %523 = vbcast.lane.b32.xlu0 %v489, %s522
    %v524 = vpop.permute.xlu0 %523
    %s526 = sor.u32 256, 72
    %527 = vbcast.lane.b32.xlu0 %v489, %s526
    %v528 = vpop.permute.xlu0 %527
    %s530 = sor.u32 256, 80
    %531 = vbcast.lane.b32.xlu0 %v489, %s530
    %v532 = vpop.permute.xlu0 %531
    %s534 = sor.u32 256, 88
    %535 = vbcast.lane.b32.xlu0 %v489, %s534
    %v536 = vpop.permute.xlu0 %535
    %s538 = sor.u32 256, 96
    %539 = vbcast.lane.b32.xlu0 %v489, %s538
    %v540 = vpop.permute.xlu0 %539
    %s542 = sor.u32 256, 104
    %543 = vbcast.lane.b32.xlu0 %v489, %s542
    %v544 = vpop.permute.xlu0 %543
    %s546 = sor.u32 256, 112
    %547 = vbcast.lane.b32.xlu0 %v489, %s546
    %v548 = vpop.permute.xlu0 %547
    %s550 = sor.u32 256, 120
    %551 = vbcast.lane.b32.xlu0 %v489, %s550
    %v552 = vpop.permute.xlu0 %551
    %v553 = vlaneseq
    %v554 = vshrl.u32 %v553, 7
    %v555 = vsub.s32 3, %v554
    %v556 = vrot.slane %v76, %v555
    %558 = vbcast.lane.b32.xlu0 %v556, 256
    %v559 = vpop.permute.xlu0 %558
    %s561 = sor.u32 256, 8
    %562 = vbcast.lane.b32.xlu0 %v556, %s561
    %v563 = vpop.permute.xlu0 %562
    %s565 = sor.u32 256, 16
    %566 = vbcast.lane.b32.xlu0 %v556, %s565
    %v567 = vpop.permute.xlu0 %566
    %s569 = sor.u32 256, 24
    %570 = vbcast.lane.b32.xlu0 %v556, %s569
    %v571 = vpop.permute.xlu0 %570
    %s573 = sor.u32 256, 32
    %574 = vbcast.lane.b32.xlu0 %v556, %s573
    %v575 = vpop.permute.xlu0 %574
    %s577 = sor.u32 256, 40
    %578 = vbcast.lane.b32.xlu0 %v556, %s577
    %v579 = vpop.permute.xlu0 %578
    %s581 = sor.u32 256, 48
    %582 = vbcast.lane.b32.xlu0 %v556, %s581
    %v583 = vpop.permute.xlu0 %582
    %s585 = sor.u32 256, 56
    %586 = vbcast.lane.b32.xlu0 %v556, %s585
    %v587 = vpop.permute.xlu0 %586
    %s589 = sor.u32 256, 64
    %590 = vbcast.lane.b32.xlu0 %v556, %s589
    %v591 = vpop.permute.xlu0 %590
    %s593 = sor.u32 256, 72
    %594 = vbcast.lane.b32.xlu0 %v556, %s593
    %v595 = vpop.permute.xlu0 %594
    %s597 = sor.u32 256, 80
    %598 = vbcast.lane.b32.xlu0 %v556, %s597
    %v599 = vpop.permute.xlu0 %598
    %s601 = sor.u32 256, 88
    %602 = vbcast.lane.b32.xlu0 %v556, %s601
    %v603 = vpop.permute.xlu0 %602
    %s605 = sor.u32 256, 96
    %606 = vbcast.lane.b32.xlu0 %v556, %s605
    %v607 = vpop.permute.xlu0 %606
    %s609 = sor.u32 256, 104
    %610 = vbcast.lane.b32.xlu0 %v556, %s609
    %v611 = vpop.permute.xlu0 %610
    %s613 = sor.u32 256, 112
    %614 = vbcast.lane.b32.xlu0 %v556, %s613
    %v615 = vpop.permute.xlu0 %614
    %s617 = sor.u32 256, 120
    %618 = vbcast.lane.b32.xlu0 %v556, %s617
    %v619 = vpop.permute.xlu0 %618
    %v620 = vlaneseq
    %v621 = vshrl.u32 %v620, 7
    %v622 = vsub.s32 4, %v621
    %v623 = vrot.slane %v75, %v622
    %625 = vbcast.lane.b32.xlu0 %v623, 256
    %v626 = vpop.permute.xlu0 %625
    %s628 = sor.u32 256, 8
    %629 = vbcast.lane.b32.xlu0 %v623, %s628
    %v630 = vpop.permute.xlu0 %629
    %s632 = sor.u32 256, 16
    %633 = vbcast.lane.b32.xlu0 %v623, %s632
    %v634 = vpop.permute.xlu0 %633
    %s636 = sor.u32 256, 24
    %637 = vbcast.lane.b32.xlu0 %v623, %s636
    %v638 = vpop.permute.xlu0 %637
    %s640 = sor.u32 256, 32
    %641 = vbcast.lane.b32.xlu0 %v623, %s640
    %v642 = vpop.permute.xlu0 %641
    %s644 = sor.u32 256, 40
    %645 = vbcast.lane.b32.xlu0 %v623, %s644
    %v646 = vpop.permute.xlu0 %645
    %s648 = sor.u32 256, 48
    %649 = vbcast.lane.b32.xlu0 %v623, %s648
    %v650 = vpop.permute.xlu0 %649
    %s652 = sor.u32 256, 56
    %653 = vbcast.lane.b32.xlu0 %v623, %s652
    %v654 = vpop.permute.xlu0 %653
    %s656 = sor.u32 256, 64
    %657 = vbcast.lane.b32.xlu0 %v623, %s656
    %v658 = vpop.permute.xlu0 %657
    %s660 = sor.u32 256, 72
    %661 = vbcast.lane.b32.xlu0 %v623, %s660
    %v662 = vpop.permute.xlu0 %661
    %s664 = sor.u32 256, 80
    %665 = vbcast.lane.b32.xlu0 %v623, %s664
    %v666 = vpop.permute.xlu0 %665
    %s668 = sor.u32 256, 88
    %669 = vbcast.lane.b32.xlu0 %v623, %s668
    %v670 = vpop.permute.xlu0 %669
    %s672 = sor.u32 256, 96
    %673 = vbcast.lane.b32.xlu0 %v623, %s672
    %v674 = vpop.permute.xlu0 %673
    %s676 = sor.u32 256, 104
    %677 = vbcast.lane.b32.xlu0 %v623, %s676
    %v678 = vpop.permute.xlu0 %677
    %s680 = sor.u32 256, 112
    %681 = vbcast.lane.b32.xlu0 %v623, %s680
    %v682 = vpop.permute.xlu0 %681
    %s684 = sor.u32 256, 120
    %685 = vbcast.lane.b32.xlu0 %v623, %s684
    %v686 = vpop.permute.xlu0 %685
    %v687 = vlaneseq
    %v688 = vshrl.u32 %v687, 7
    %v689 = vsub.s32 4, %v688
    %v690 = vrot.slane %v76, %v689
    %692 = vbcast.lane.b32.xlu0 %v690, 256
    %v693 = vpop.permute.xlu0 %692
    %s695 = sor.u32 256, 8
    %696 = vbcast.lane.b32.xlu0 %v690, %s695
    %v697 = vpop.permute.xlu0 %696
    %s699 = sor.u32 256, 16
    %700 = vbcast.lane.b32.xlu0 %v690, %s699
    %v701 = vpop.permute.xlu0 %700
    %s703 = sor.u32 256, 24
    %704 = vbcast.lane.b32.xlu0 %v690, %s703
    %v705 = vpop.permute.xlu0 %704
    %s707 = sor.u32 256, 32
    %708 = vbcast.lane.b32.xlu0 %v690, %s707
    %v709 = vpop.permute.xlu0 %708
    %s711 = sor.u32 256, 40
    %712 = vbcast.lane.b32.xlu0 %v690, %s711
    %v713 = vpop.permute.xlu0 %712
    %s715 = sor.u32 256, 48
    %716 = vbcast.lane.b32.xlu0 %v690, %s715
    %v717 = vpop.permute.xlu0 %716
    %s719 = sor.u32 256, 56
    %720 = vbcast.lane.b32.xlu0 %v690, %s719
    %v721 = vpop.permute.xlu0 %720
    %s723 = sor.u32 256, 64
    %724 = vbcast.lane.b32.xlu0 %v690, %s723
    %v725 = vpop.permute.xlu0 %724
    %s727 = sor.u32 256, 72
    %728 = vbcast.lane.b32.xlu0 %v690, %s727
    %v729 = vpop.permute.xlu0 %728
    %s731 = sor.u32 256, 80
    %732 = vbcast.lane.b32.xlu0 %v690, %s731
    %v733 = vpop.permute.xlu0 %732
    %s735 = sor.u32 256, 88
    %736 = vbcast.lane.b32.xlu0 %v690, %s735
    %v737 = vpop.permute.xlu0 %736
    %s739 = sor.u32 256, 96
    %740 = vbcast.lane.b32.xlu0 %v690, %s739
    %v741 = vpop.permute.xlu0 %740
    %s743 = sor.u32 256, 104
    %744 = vbcast.lane.b32.xlu0 %v690, %s743
    %v745 = vpop.permute.xlu0 %744
    %s747 = sor.u32 256, 112
    %748 = vbcast.lane.b32.xlu0 %v690, %s747
    %v749 = vpop.permute.xlu0 %748
    %s751 = sor.u32 256, 120
    %752 = vbcast.lane.b32.xlu0 %v690, %s751
    %v753 = vpop.permute.xlu0 %752
    %v754 = vlaneseq
    %v755 = vshrl.u32 %v754, 7
    %v756 = vsub.s32 5, %v755
    %v757 = vrot.slane %v75, %v756
    %759 = vbcast.lane.b32.xlu0 %v757, 256
    %v760 = vpop.permute.xlu0 %759
    %s762 = sor.u32 256, 8
    %763 = vbcast.lane.b32.xlu0 %v757, %s762
    %v764 = vpop.permute.xlu0 %763
    %s766 = sor.u32 256, 16
    %767 = vbcast.lane.b32.xlu0 %v757, %s766
    %v768 = vpop.permute.xlu0 %767
    %s770 = sor.u32 256, 24
    %771 = vbcast.lane.b32.xlu0 %v757, %s770
    %v772 = vpop.permute.xlu0 %771
    %s774 = sor.u32 256, 32
    %775 = vbcast.lane.b32.xlu0 %v757, %s774
    %v776 = vpop.permute.xlu0 %775
    %s778 = sor.u32 256, 40
    %779 = vbcast.lane.b32.xlu0 %v757, %s778
    %v780 = vpop.permute.xlu0 %779
    %s782 = sor.u32 256, 48
    %783 = vbcast.lane.b32.xlu0 %v757, %s782
    %v784 = vpop.permute.xlu0 %783
    %s786 = sor.u32 256, 56
    %787 = vbcast.lane.b32.xlu0 %v757, %s786
    %v788 = vpop.permute.xlu0 %787
    %s790 = sor.u32 256, 64
    %791 = vbcast.lane.b32.xlu0 %v757, %s790
    %v792 = vpop.permute.xlu0 %791
    %s794 = sor.u32 256, 72
    %795 = vbcast.lane.b32.xlu0 %v757, %s794
    %v796 = vpop.permute.xlu0 %795
    %s798 = sor.u32 256, 80
    %799 = vbcast.lane.b32.xlu0 %v757, %s798
    %v800 = vpop.permute.xlu0 %799
    %s802 = sor.u32 256, 88
    %803 = vbcast.lane.b32.xlu0 %v757, %s802
    %v804 = vpop.permute.xlu0 %803
    %s806 = sor.u32 256, 96
    %807 = vbcast.lane.b32.xlu0 %v757, %s806
    %v808 = vpop.permute.xlu0 %807
    %s810 = sor.u32 256, 104
    %811 = vbcast.lane.b32.xlu0 %v757, %s810
    %v812 = vpop.permute.xlu0 %811
    %s814 = sor.u32 256, 112
    %815 = vbcast.lane.b32.xlu0 %v757, %s814
    %v816 = vpop.permute.xlu0 %815
    %s818 = sor.u32 256, 120
    %819 = vbcast.lane.b32.xlu0 %v757, %s818
    %v820 = vpop.permute.xlu0 %819
    %v821 = vlaneseq
    %v822 = vshrl.u32 %v821, 7
    %v823 = vsub.s32 5, %v822
    %v824 = vrot.slane %v76, %v823
    %826 = vbcast.lane.b32.xlu0 %v824, 256
    %v827 = vpop.permute.xlu0 %826
    %s829 = sor.u32 256, 8
    %830 = vbcast.lane.b32.xlu0 %v824, %s829
    %v831 = vpop.permute.xlu0 %830
    %s833 = sor.u32 256, 16
    %834 = vbcast.lane.b32.xlu0 %v824, %s833
    %v835 = vpop.permute.xlu0 %834
    %s837 = sor.u32 256, 24
    %838 = vbcast.lane.b32.xlu0 %v824, %s837
    %v839 = vpop.permute.xlu0 %838
    %s841 = sor.u32 256, 32
    %842 = vbcast.lane.b32.xlu0 %v824, %s841
    %v843 = vpop.permute.xlu0 %842
    %s845 = sor.u32 256, 40
    %846 = vbcast.lane.b32.xlu0 %v824, %s845
    %v847 = vpop.permute.xlu0 %846
    %s849 = sor.u32 256, 48
    %850 = vbcast.lane.b32.xlu0 %v824, %s849
    %v851 = vpop.permute.xlu0 %850
    %s853 = sor.u32 256, 56
    %854 = vbcast.lane.b32.xlu0 %v824, %s853
    %v855 = vpop.permute.xlu0 %854
    %s857 = sor.u32 256, 64
    %858 = vbcast.lane.b32.xlu0 %v824, %s857
    %v859 = vpop.permute.xlu0 %858
    %s861 = sor.u32 256, 72
    %862 = vbcast.lane.b32.xlu0 %v824, %s861
    %v863 = vpop.permute.xlu0 %862
    %s865 = sor.u32 256, 80
    %866 = vbcast.lane.b32.xlu0 %v824, %s865
    %v867 = vpop.permute.xlu0 %866
    %s869 = sor.u32 256, 88
    %870 = vbcast.lane.b32.xlu0 %v824, %s869
    %v871 = vpop.permute.xlu0 %870
    %s873 = sor.u32 256, 96
    %874 = vbcast.lane.b32.xlu0 %v824, %s873
    %v875 = vpop.permute.xlu0 %874
    %s877 = sor.u32 256, 104
    %878 = vbcast.lane.b32.xlu0 %v824, %s877
    %v879 = vpop.permute.xlu0 %878
    %s881 = sor.u32 256, 112
    %882 = vbcast.lane.b32.xlu0 %v824, %s881
    %v883 = vpop.permute.xlu0 %882
    %s885 = sor.u32 256, 120
    %886 = vbcast.lane.b32.xlu0 %v824, %s885
    %v887 = vpop.permute.xlu0 %886
    %v888 = vlaneseq
    %v889 = vshrl.u32 %v888, 7
    %v890 = vsub.s32 6, %v889
    %v891 = vrot.slane %v75, %v890
    %893 = vbcast.lane.b32.xlu0 %v891, 256
    %v894 = vpop.permute.xlu0 %893
    %s896 = sor.u32 256, 8
    %897 = vbcast.lane.b32.xlu0 %v891, %s896
    %v898 = vpop.permute.xlu0 %897
    %s900 = sor.u32 256, 16
    %901 = vbcast.lane.b32.xlu0 %v891, %s900
    %v902 = vpop.permute.xlu0 %901
    %s904 = sor.u32 256, 24
    %905 = vbcast.lane.b32.xlu0 %v891, %s904
    %v906 = vpop.permute.xlu0 %905
    %s908 = sor.u32 256, 32
    %909 = vbcast.lane.b32.xlu0 %v891, %s908
    %v910 = vpop.permute.xlu0 %909
    %s912 = sor.u32 256, 40
    %913 = vbcast.lane.b32.xlu0 %v891, %s912
    %v914 = vpop.permute.xlu0 %913
    %s916 = sor.u32 256, 48
    %917 = vbcast.lane.b32.xlu0 %v891, %s916
    %v918 = vpop.permute.xlu0 %917
    %s920 = sor.u32 256, 56
    %921 = vbcast.lane.b32.xlu0 %v891, %s920
    %v922 = vpop.permute.xlu0 %921
    %s924 = sor.u32 256, 64
    %925 = vbcast.lane.b32.xlu0 %v891, %s924
    %v926 = vpop.permute.xlu0 %925
    %s928 = sor.u32 256, 72
    %929 = vbcast.lane.b32.xlu0 %v891, %s928
    %v930 = vpop.permute.xlu0 %929
    %s932 = sor.u32 256, 80
    %933 = vbcast.lane.b32.xlu0 %v891, %s932
    %v934 = vpop.permute.xlu0 %933
    %s936 = sor.u32 256, 88
    %937 = vbcast.lane.b32.xlu0 %v891, %s936
    %v938 = vpop.permute.xlu0 %937
    %s940 = sor.u32 256, 96
    %941 = vbcast.lane.b32.xlu0 %v891, %s940
    %v942 = vpop.permute.xlu0 %941
    %s944 = sor.u32 256, 104
    %945 = vbcast.lane.b32.xlu0 %v891, %s944
    %v946 = vpop.permute.xlu0 %945
    %s948 = sor.u32 256, 112
    %949 = vbcast.lane.b32.xlu0 %v891, %s948
    %v950 = vpop.permute.xlu0 %949
    %s952 = sor.u32 256, 120
    %953 = vbcast.lane.b32.xlu0 %v891, %s952
    %v954 = vpop.permute.xlu0 %953
    %v955 = vlaneseq
    %v956 = vshrl.u32 %v955, 7
    %v957 = vsub.s32 6, %v956
    %v958 = vrot.slane %v76, %v957
    %960 = vbcast.lane.b32.xlu0 %v958, 256
    %v961 = vpop.permute.xlu0 %960
    %s963 = sor.u32 256, 8
    %964 = vbcast.lane.b32.xlu0 %v958, %s963
    %v965 = vpop.permute.xlu0 %964
    %s967 = sor.u32 256, 16
    %968 = vbcast.lane.b32.xlu0 %v958, %s967
    %v969 = vpop.permute.xlu0 %968
    %s971 = sor.u32 256, 24
    %972 = vbcast.lane.b32.xlu0 %v958, %s971
    %v973 = vpop.permute.xlu0 %972
    %s975 = sor.u32 256, 32
    %976 = vbcast.lane.b32.xlu0 %v958, %s975
    %v977 = vpop.permute.xlu0 %976
    %s979 = sor.u32 256, 40
    %980 = vbcast.lane.b32.xlu0 %v958, %s979
    %v981 = vpop.permute.xlu0 %980
    %s983 = sor.u32 256, 48
    %984 = vbcast.lane.b32.xlu0 %v958, %s983
    %v985 = vpop.permute.xlu0 %984
    %s987 = sor.u32 256, 56
    %988 = vbcast.lane.b32.xlu0 %v958, %s987
    %v989 = vpop.permute.xlu0 %988
    %s991 = sor.u32 256, 64
    %992 = vbcast.lane.b32.xlu0 %v958, %s991
    %v993 = vpop.permute.xlu0 %992
    %s995 = sor.u32 256, 72
    %996 = vbcast.lane.b32.xlu0 %v958, %s995
    %v997 = vpop.permute.xlu0 %996
    %s999 = sor.u32 256, 80
    %1000 = vbcast.lane.b32.xlu0 %v958, %s999
    %v1001 = vpop.permute.xlu0 %1000
    %s1003 = sor.u32 256, 88
    %1004 = vbcast.lane.b32.xlu0 %v958, %s1003
    %v1005 = vpop.permute.xlu0 %1004
    %s1007 = sor.u32 256, 96
    %1008 = vbcast.lane.b32.xlu0 %v958, %s1007
    %v1009 = vpop.permute.xlu0 %1008
    %s1011 = sor.u32 256, 104
    %1012 = vbcast.lane.b32.xlu0 %v958, %s1011
    %v1013 = vpop.permute.xlu0 %1012
    %s1015 = sor.u32 256, 112
    %1016 = vbcast.lane.b32.xlu0 %v958, %s1015
    %v1017 = vpop.permute.xlu0 %1016
    %s1019 = sor.u32 256, 120
    %1020 = vbcast.lane.b32.xlu0 %v958, %s1019
    %v1021 = vpop.permute.xlu0 %1020
    %v1022 = vlaneseq
    %v1023 = vshrl.u32 %v1022, 7
    %v1024 = vsub.s32 7, %v1023
    %v1025 = vrot.slane %v75, %v1024
    %1027 = vbcast.lane.b32.xlu0 %v1025, 256
    %v1028 = vpop.permute.xlu0 %1027
    %s1030 = sor.u32 256, 8
    %1031 = vbcast.lane.b32.xlu0 %v1025, %s1030
    %v1032 = vpop.permute.xlu0 %1031
    %s1034 = sor.u32 256, 16
    %1035 = vbcast.lane.b32.xlu0 %v1025, %s1034
    %v1036 = vpop.permute.xlu0 %1035
    %s1038 = sor.u32 256, 24
    %1039 = vbcast.lane.b32.xlu0 %v1025, %s1038
    %v1040 = vpop.permute.xlu0 %1039
    %s1042 = sor.u32 256, 32
    %1043 = vbcast.lane.b32.xlu0 %v1025, %s1042
    %v1044 = vpop.permute.xlu0 %1043
    %s1046 = sor.u32 256, 40
    %1047 = vbcast.lane.b32.xlu0 %v1025, %s1046
    %v1048 = vpop.permute.xlu0 %1047
    %s1050 = sor.u32 256, 48
    %1051 = vbcast.lane.b32.xlu0 %v1025, %s1050
    %v1052 = vpop.permute.xlu0 %1051
    %s1054 = sor.u32 256, 56
    %1055 = vbcast.lane.b32.xlu0 %v1025, %s1054
    %v1056 = vpop.permute.xlu0 %1055
    %s1058 = sor.u32 256, 64
    %1059 = vbcast.lane.b32.xlu0 %v1025, %s1058
    %v1060 = vpop.permute.xlu0 %1059
    %s1062 = sor.u32 256, 72
    %1063 = vbcast.lane.b32.xlu0 %v1025, %s1062
    %v1064 = vpop.permute.xlu0 %1063
    %s1066 = sor.u32 256, 80
    %1067 = vbcast.lane.b32.xlu0 %v1025, %s1066
    %v1068 = vpop.permute.xlu0 %1067
    %s1070 = sor.u32 256, 88
    %1071 = vbcast.lane.b32.xlu0 %v1025, %s1070
    %v1072 = vpop.permute.xlu0 %1071
    %s1074 = sor.u32 256, 96
    %1075 = vbcast.lane.b32.xlu0 %v1025, %s1074
    %v1076 = vpop.permute.xlu0 %1075
    %s1078 = sor.u32 256, 104
    %1079 = vbcast.lane.b32.xlu0 %v1025, %s1078
    %v1080 = vpop.permute.xlu0 %1079
    %s1082 = sor.u32 256, 112
    %1083 = vbcast.lane.b32.xlu0 %v1025, %s1082
    %v1084 = vpop.permute.xlu0 %1083
    %s1086 = sor.u32 256, 120
    %1087 = vbcast.lane.b32.xlu0 %v1025, %s1086
    %v1088 = vpop.permute.xlu0 %1087
    %v1089 = vlaneseq
    %v1090 = vshrl.u32 %v1089, 7
    %v1091 = vsub.s32 7, %v1090
    %v1092 = vrot.slane %v76, %v1091
    %1094 = vbcast.lane.b32.xlu0 %v1092, 256
    %v1095 = vpop.permute.xlu0 %1094
    %s1097 = sor.u32 256, 8
    %1098 = vbcast.lane.b32.xlu0 %v1092, %s1097
    %v1099 = vpop.permute.xlu0 %1098
    %s1101 = sor.u32 256, 16
    %1102 = vbcast.lane.b32.xlu0 %v1092, %s1101
    %v1103 = vpop.permute.xlu0 %1102
    %s1105 = sor.u32 256, 24
    %1106 = vbcast.lane.b32.xlu0 %v1092, %s1105
    %v1107 = vpop.permute.xlu0 %1106
    %s1109 = sor.u32 256, 32
    %1110 = vbcast.lane.b32.xlu0 %v1092, %s1109
    %v1111 = vpop.permute.xlu0 %1110
    %s1113 = sor.u32 256, 40
    %1114 = vbcast.lane.b32.xlu0 %v1092, %s1113
    %v1115 = vpop.permute.xlu0 %1114
    %s1117 = sor.u32 256, 48
    %1118 = vbcast.lane.b32.xlu0 %v1092, %s1117
    %v1119 = vpop.permute.xlu0 %1118
    %s1121 = sor.u32 256, 56
    %1122 = vbcast.lane.b32.xlu0 %v1092, %s1121
    %v1123 = vpop.permute.xlu0 %1122
    %s1125 = sor.u32 256, 64
    %1126 = vbcast.lane.b32.xlu0 %v1092, %s1125
    %v1127 = vpop.permute.xlu0 %1126
    %s1129 = sor.u32 256, 72
    %1130 = vbcast.lane.b32.xlu0 %v1092, %s1129
    %v1131 = vpop.permute.xlu0 %1130
    %s1133 = sor.u32 256, 80
    %1134 = vbcast.lane.b32.xlu0 %v1092, %s1133
    %v1135 = vpop.permute.xlu0 %1134
    %s1137 = sor.u32 256, 88
    %1138 = vbcast.lane.b32.xlu0 %v1092, %s1137
    %v1139 = vpop.permute.xlu0 %1138
    %s1141 = sor.u32 256, 96
    %1142 = vbcast.lane.b32.xlu0 %v1092, %s1141
    %v1143 = vpop.permute.xlu0 %1142
    %s1145 = sor.u32 256, 104
    %1146 = vbcast.lane.b32.xlu0 %v1092, %s1145
    %v1147 = vpop.permute.xlu0 %1146
    %s1149 = sor.u32 256, 112
    %1150 = vbcast.lane.b32.xlu0 %v1092, %s1149
    %v1151 = vpop.permute.xlu0 %1150
    %s1153 = sor.u32 256, 120
    %1154 = vbcast.lane.b32.xlu0 %v1092, %s1153
    %v1155 = vpop.permute.xlu0 %1154
    %v1156 = vlaneseq
    %v1157 = vshrl.u32 %v1156, 7
    %v1158 = vsub.s32 0, %v1157
    %v1159 = vrot.slane %v83, %v1158
    %v1160 = vmul.f32 %v90, %v1159
    %v1161 = vmul.f32 %v94, %v1159
    %v1162 = vmul.f32 %v98, %v1159
    %v1163 = vmul.f32 %v102, %v1159
    %v1164 = vmul.f32 %v106, %v1159
    %v1165 = vmul.f32 %v110, %v1159
    %v1166 = vmul.f32 %v114, %v1159
    %v1167 = vmul.f32 %v118, %v1159
    %v1168 = vmul.f32 %v122, %v1159
    %v1169 = vmul.f32 %v126, %v1159
    %v1170 = vmul.f32 %v130, %v1159
    %v1171 = vmul.f32 %v134, %v1159
    %v1172 = vmul.f32 %v138, %v1159
    %v1173 = vmul.f32 %v142, %v1159
    %v1174 = vmul.f32 %v146, %v1159
    %v1175 = vmul.f32 %v150, %v1159
    %v1176 = vmul.f32 %v157, %v1159
    %v1177 = vmul.f32 %v161, %v1159
    %v1178 = vmul.f32 %v165, %v1159
    %v1179 = vmul.f32 %v169, %v1159
    %v1180 = vmul.f32 %v173, %v1159
    %v1181 = vmul.f32 %v177, %v1159
    %v1182 = vmul.f32 %v181, %v1159
    %v1183 = vmul.f32 %v185, %v1159
    %v1184 = vmul.f32 %v189, %v1159
    %v1185 = vmul.f32 %v193, %v1159
    %v1186 = vmul.f32 %v197, %v1159
    %v1187 = vmul.f32 %v201, %v1159
    %v1188 = vmul.f32 %v205, %v1159
    %v1189 = vmul.f32 %v209, %v1159
    %v1190 = vmul.f32 %v213, %v1159
    %v1191 = vmul.f32 %v217, %v1159
    %v1192 = vmul.f32 %v224, %v1159
    %v1193 = vmul.f32 %v228, %v1159
    %v1194 = vmul.f32 %v232, %v1159
    %v1195 = vmul.f32 %v236, %v1159
    %v1196 = vmul.f32 %v240, %v1159
    %v1197 = vmul.f32 %v244, %v1159
    %v1198 = vmul.f32 %v248, %v1159
    %v1199 = vmul.f32 %v252, %v1159
    %v1200 = vmul.f32 %v256, %v1159
    %v1201 = vmul.f32 %v260, %v1159
    %v1202 = vmul.f32 %v264, %v1159
    %v1203 = vmul.f32 %v268, %v1159
    %v1204 = vmul.f32 %v272, %v1159
    %v1205 = vmul.f32 %v276, %v1159
    %v1206 = vmul.f32 %v280, %v1159
    %v1207 = vmul.f32 %v284, %v1159
    %v1208 = vmul.f32 %v291, %v1159
    %v1209 = vmul.f32 %v295, %v1159
    %v1210 = vmul.f32 %v299, %v1159
    %v1211 = vmul.f32 %v303, %v1159
    %v1212 = vmul.f32 %v307, %v1159
    %v1213 = vmul.f32 %v311, %v1159
    %v1214 = vmul.f32 %v315, %v1159
    %v1215 = vmul.f32 %v319, %v1159
    %v1216 = vmul.f32 %v323, %v1159
    %v1217 = vmul.f32 %v327, %v1159
    %v1218 = vmul.f32 %v331, %v1159
    %v1219 = vmul.f32 %v335, %v1159
    %v1220 = vmul.f32 %v339, %v1159
    %v1221 = vmul.f32 %v343, %v1159
    %v1222 = vmul.f32 %v347, %v1159
    %v1223 = vmul.f32 %v351, %v1159
    %v1224 = vmul.f32 %v358, %v1159
    %v1225 = vmul.f32 %v362, %v1159
    %v1226 = vmul.f32 %v366, %v1159
    %v1227 = vmul.f32 %v370, %v1159
    %v1228 = vmul.f32 %v374, %v1159
    %v1229 = vmul.f32 %v378, %v1159
    %v1230 = vmul.f32 %v382, %v1159
    %v1231 = vmul.f32 %v386, %v1159
    %v1232 = vmul.f32 %v390, %v1159
    %v1233 = vmul.f32 %v394, %v1159
    %v1234 = vmul.f32 %v398, %v1159
    %v1235 = vmul.f32 %v402, %v1159
    %v1236 = vmul.f32 %v406, %v1159
    %v1237 = vmul.f32 %v410, %v1159
    %v1238 = vmul.f32 %v414, %v1159
    %v1239 = vmul.f32 %v418, %v1159
    %v1240 = vmul.f32 %v425, %v1159
    %v1241 = vmul.f32 %v429, %v1159
    %v1242 = vmul.f32 %v433, %v1159
    %v1243 = vmul.f32 %v437, %v1159
    %v1244 = vmul.f32 %v441, %v1159
    %v1245 = vmul.f32 %v445, %v1159
    %v1246 = vmul.f32 %v449, %v1159
    %v1247 = vmul.f32 %v453, %v1159
    %v1248 = vmul.f32 %v457, %v1159
    %v1249 = vmul.f32 %v461, %v1159
    %v1250 = vmul.f32 %v465, %v1159
    %v1251 = vmul.f32 %v469, %v1159
    %v1252 = vmul.f32 %v473, %v1159
    %v1253 = vmul.f32 %v477, %v1159
    %v1254 = vmul.f32 %v481, %v1159
    %v1255 = vmul.f32 %v485, %v1159
    %v1256 = vmul.f32 %v492, %v1159
    %v1257 = vmul.f32 %v496, %v1159
    %v1258 = vmul.f32 %v500, %v1159
    %v1259 = vmul.f32 %v504, %v1159
    %v1260 = vmul.f32 %v508, %v1159
    %v1261 = vmul.f32 %v512, %v1159
    %v1262 = vmul.f32 %v516, %v1159
    %v1263 = vmul.f32 %v520, %v1159
    %v1264 = vmul.f32 %v524, %v1159
    %v1265 = vmul.f32 %v528, %v1159
    %v1266 = vmul.f32 %v532, %v1159
    %v1267 = vmul.f32 %v536, %v1159
    %v1268 = vmul.f32 %v540, %v1159
    %v1269 = vmul.f32 %v544, %v1159
    %v1270 = vmul.f32 %v548, %v1159
    %v1271 = vmul.f32 %v552, %v1159
    %v1272 = vmul.f32 %v559, %v1159
    %v1273 = vmul.f32 %v563, %v1159
    %v1274 = vmul.f32 %v567, %v1159
    %v1275 = vmul.f32 %v571, %v1159
    %v1276 = vmul.f32 %v575, %v1159
    %v1277 = vmul.f32 %v579, %v1159
    %v1278 = vmul.f32 %v583, %v1159
    %v1279 = vmul.f32 %v587, %v1159
    %v1280 = vmul.f32 %v591, %v1159
    %v1281 = vmul.f32 %v595, %v1159
    %v1282 = vmul.f32 %v599, %v1159
    %v1283 = vmul.f32 %v603, %v1159
    %v1284 = vmul.f32 %v607, %v1159
    %v1285 = vmul.f32 %v611, %v1159
    %v1286 = vmul.f32 %v615, %v1159
    %v1287 = vmul.f32 %v619, %v1159
    %v1288 = vmul.f32 %v626, %v1159
    %v1289 = vmul.f32 %v630, %v1159
    %v1290 = vmul.f32 %v634, %v1159
    %v1291 = vmul.f32 %v638, %v1159
    %v1292 = vmul.f32 %v642, %v1159
    %v1293 = vmul.f32 %v646, %v1159
    %v1294 = vmul.f32 %v650, %v1159
    %v1295 = vmul.f32 %v654, %v1159
    %v1296 = vmul.f32 %v658, %v1159
    %v1297 = vmul.f32 %v662, %v1159
    %v1298 = vmul.f32 %v666, %v1159
    %v1299 = vmul.f32 %v670, %v1159
    %v1300 = vmul.f32 %v674, %v1159
    %v1301 = vmul.f32 %v678, %v1159
    %v1302 = vmul.f32 %v682, %v1159
    %v1303 = vmul.f32 %v686, %v1159
    %v1304 = vmul.f32 %v693, %v1159
    %v1305 = vmul.f32 %v697, %v1159
    %v1306 = vmul.f32 %v701, %v1159
    %v1307 = vmul.f32 %v705, %v1159
    %v1308 = vmul.f32 %v709, %v1159
    %v1309 = vmul.f32 %v713, %v1159
    %v1310 = vmul.f32 %v717, %v1159
    %v1311 = vmul.f32 %v721, %v1159
    %v1312 = vmul.f32 %v725, %v1159
    %v1313 = vmul.f32 %v729, %v1159
    %v1314 = vmul.f32 %v733, %v1159
    %v1315 = vmul.f32 %v737, %v1159
    %v1316 = vmul.f32 %v741, %v1159
    %v1317 = vmul.f32 %v745, %v1159
    %v1318 = vmul.f32 %v749, %v1159
    %v1319 = vmul.f32 %v753, %v1159
    %v1320 = vmul.f32 %v760, %v1159
    %v1321 = vmul.f32 %v764, %v1159
    %v1322 = vmul.f32 %v768, %v1159
    %v1323 = vmul.f32 %v772, %v1159
    %v1324 = vmul.f32 %v776, %v1159
    %v1325 = vmul.f32 %v780, %v1159
    %v1326 = vmul.f32 %v784, %v1159
    %v1327 = vmul.f32 %v788, %v1159
    %v1328 = vmul.f32 %v792, %v1159
    %v1329 = vmul.f32 %v796, %v1159
    %v1330 = vmul.f32 %v800, %v1159
    %v1331 = vmul.f32 %v804, %v1159
    %v1332 = vmul.f32 %v808, %v1159
    %v1333 = vmul.f32 %v812, %v1159
    %v1334 = vmul.f32 %v816, %v1159
    %v1335 = vmul.f32 %v820, %v1159
    %v1336 = vmul.f32 %v827, %v1159
    %v1337 = vmul.f32 %v831, %v1159
    %v1338 = vmul.f32 %v835, %v1159
    %v1339 = vmul.f32 %v839, %v1159
    %v1340 = vmul.f32 %v843, %v1159
    %v1341 = vmul.f32 %v847, %v1159
    %v1342 = vmul.f32 %v851, %v1159
    %v1343 = vmul.f32 %v855, %v1159
    %v1344 = vmul.f32 %v859, %v1159
    %v1345 = vmul.f32 %v863, %v1159
    %v1346 = vmul.f32 %v867, %v1159
    %v1347 = vmul.f32 %v871, %v1159
    %v1348 = vmul.f32 %v875, %v1159
    %v1349 = vmul.f32 %v879, %v1159
    %v1350 = vmul.f32 %v883, %v1159
    %v1351 = vmul.f32 %v887, %v1159
    %v1352 = vmul.f32 %v894, %v1159
    %v1353 = vmul.f32 %v898, %v1159
    %v1354 = vmul.f32 %v902, %v1159
    %v1355 = vmul.f32 %v906, %v1159
    %v1356 = vmul.f32 %v910, %v1159
    %v1357 = vmul.f32 %v914, %v1159
    %v1358 = vmul.f32 %v918, %v1159
    %v1359 = vmul.f32 %v922, %v1159
    %v1360 = vmul.f32 %v926, %v1159
    %v1361 = vmul.f32 %v930, %v1159
    %v1362 = vmul.f32 %v934, %v1159
    %v1363 = vmul.f32 %v938, %v1159
    %v1364 = vmul.f32 %v942, %v1159
    %v1365 = vmul.f32 %v946, %v1159
    %v1366 = vmul.f32 %v950, %v1159
    %v1367 = vmul.f32 %v954, %v1159
    %v1368 = vmul.f32 %v961, %v1159
    %v1369 = vmul.f32 %v965, %v1159
    %v1370 = vmul.f32 %v969, %v1159
    %v1371 = vmul.f32 %v973, %v1159
    %v1372 = vmul.f32 %v977, %v1159
    %v1373 = vmul.f32 %v981, %v1159
    %v1374 = vmul.f32 %v985, %v1159
    %v1375 = vmul.f32 %v989, %v1159
    %v1376 = vmul.f32 %v993, %v1159
    %v1377 = vmul.f32 %v997, %v1159
    %v1378 = vmul.f32 %v1001, %v1159
    %v1379 = vmul.f32 %v1005, %v1159
    %v1380 = vmul.f32 %v1009, %v1159
    %v1381 = vmul.f32 %v1013, %v1159
    %v1382 = vmul.f32 %v1017, %v1159
    %v1383 = vmul.f32 %v1021, %v1159
    %v1384 = vmul.f32 %v1028, %v1159
    %v1385 = vmul.f32 %v1032, %v1159
    %v1386 = vmul.f32 %v1036, %v1159
    %v1387 = vmul.f32 %v1040, %v1159
    %v1388 = vmul.f32 %v1044, %v1159
    %v1389 = vmul.f32 %v1048, %v1159
    %v1390 = vmul.f32 %v1052, %v1159
    %v1391 = vmul.f32 %v1056, %v1159
    %v1392 = vmul.f32 %v1060, %v1159
    %v1393 = vmul.f32 %v1064, %v1159
    %v1394 = vmul.f32 %v1068, %v1159
    %v1395 = vmul.f32 %v1072, %v1159
    %v1396 = vmul.f32 %v1076, %v1159
    %v1397 = vmul.f32 %v1080, %v1159
    %v1398 = vmul.f32 %v1084, %v1159
    %v1399 = vmul.f32 %v1088, %v1159
    %v1400 = vmul.f32 %v1095, %v1159
    %v1401 = vmul.f32 %v1099, %v1159
    %v1402 = vmul.f32 %v1103, %v1159
    %v1403 = vmul.f32 %v1107, %v1159
    %v1404 = vmul.f32 %v1111, %v1159
    %v1405 = vmul.f32 %v1115, %v1159
    %v1406 = vmul.f32 %v1119, %v1159
    %v1407 = vmul.f32 %v1123, %v1159
    %v1408 = vmul.f32 %v1127, %v1159
    %v1409 = vmul.f32 %v1131, %v1159
    %v1410 = vmul.f32 %v1135, %v1159
    %v1411 = vmul.f32 %v1139, %v1159
    %v1412 = vmul.f32 %v1143, %v1159
    %v1413 = vmul.f32 %v1147, %v1159
    %v1414 = vmul.f32 %v1151, %v1159
    %v1415 = vmul.f32 %v1155, %v1159
    %v1416 = vlaneseq
    %v1417 = vshrl.u32 %v1416, 7
    %v1418 = vsub.s32 0, %v1417
    %v1419 = vrot.slane %v77, %v1418
    %1421 = vbcast.lane.b32.xlu0 %v1419, 256
    %v1422 = vpop.permute.xlu0 %1421
    %s1424 = sor.u32 256, 8
    %1425 = vbcast.lane.b32.xlu0 %v1419, %s1424
    %v1426 = vpop.permute.xlu0 %1425
    %s1428 = sor.u32 256, 16
    %1429 = vbcast.lane.b32.xlu0 %v1419, %s1428
    %v1430 = vpop.permute.xlu0 %1429
    %s1432 = sor.u32 256, 24
    %1433 = vbcast.lane.b32.xlu0 %v1419, %s1432
    %v1434 = vpop.permute.xlu0 %1433
    %s1436 = sor.u32 256, 32
    %1437 = vbcast.lane.b32.xlu0 %v1419, %s1436
    %v1438 = vpop.permute.xlu0 %1437
    %s1440 = sor.u32 256, 40
    %1441 = vbcast.lane.b32.xlu0 %v1419, %s1440
    %v1442 = vpop.permute.xlu0 %1441
    %s1444 = sor.u32 256, 48
    %1445 = vbcast.lane.b32.xlu0 %v1419, %s1444
    %v1446 = vpop.permute.xlu0 %1445
    %s1448 = sor.u32 256, 56
    %1449 = vbcast.lane.b32.xlu0 %v1419, %s1448
    %v1450 = vpop.permute.xlu0 %1449
    %s1452 = sor.u32 256, 64
    %1453 = vbcast.lane.b32.xlu0 %v1419, %s1452
    %v1454 = vpop.permute.xlu0 %1453
    %s1456 = sor.u32 256, 72
    %1457 = vbcast.lane.b32.xlu0 %v1419, %s1456
    %v1458 = vpop.permute.xlu0 %1457
    %s1460 = sor.u32 256, 80
    %1461 = vbcast.lane.b32.xlu0 %v1419, %s1460
    %v1462 = vpop.permute.xlu0 %1461
    %s1464 = sor.u32 256, 88
    %1465 = vbcast.lane.b32.xlu0 %v1419, %s1464
    %v1466 = vpop.permute.xlu0 %1465
    %s1468 = sor.u32 256, 96
    %1469 = vbcast.lane.b32.xlu0 %v1419, %s1468
    %v1470 = vpop.permute.xlu0 %1469
    %s1472 = sor.u32 256, 104
    %1473 = vbcast.lane.b32.xlu0 %v1419, %s1472
    %v1474 = vpop.permute.xlu0 %1473
    %s1476 = sor.u32 256, 112
    %1477 = vbcast.lane.b32.xlu0 %v1419, %s1476
    %v1478 = vpop.permute.xlu0 %1477
    %s1480 = sor.u32 256, 120
    %1481 = vbcast.lane.b32.xlu0 %v1419, %s1480
    %v1482 = vpop.permute.xlu0 %1481
    %v1483 = vlaneseq
    %v1484 = vshrl.u32 %v1483, 7
    %v1485 = vsub.s32 0, %v1484
    %v1486 = vrot.slane %v78, %v1485
    %1488 = vbcast.lane.b32.xlu0 %v1486, 256
    %v1489 = vpop.permute.xlu0 %1488
    %s1491 = sor.u32 256, 8
    %1492 = vbcast.lane.b32.xlu0 %v1486, %s1491
    %v1493 = vpop.permute.xlu0 %1492
    %s1495 = sor.u32 256, 16
    %1496 = vbcast.lane.b32.xlu0 %v1486, %s1495
    %v1497 = vpop.permute.xlu0 %1496
    %s1499 = sor.u32 256, 24
    %1500 = vbcast.lane.b32.xlu0 %v1486, %s1499
    %v1501 = vpop.permute.xlu0 %1500
    %s1503 = sor.u32 256, 32
    %1504 = vbcast.lane.b32.xlu0 %v1486, %s1503
    %v1505 = vpop.permute.xlu0 %1504
    %s1507 = sor.u32 256, 40
    %1508 = vbcast.lane.b32.xlu0 %v1486, %s1507
    %v1509 = vpop.permute.xlu0 %1508
    %s1511 = sor.u32 256, 48
    %1512 = vbcast.lane.b32.xlu0 %v1486, %s1511
    %v1513 = vpop.permute.xlu0 %1512
    %s1515 = sor.u32 256, 56
    %1516 = vbcast.lane.b32.xlu0 %v1486, %s1515
    %v1517 = vpop.permute.xlu0 %1516
    %s1519 = sor.u32 256, 64
    %1520 = vbcast.lane.b32.xlu0 %v1486, %s1519
    %v1521 = vpop.permute.xlu0 %1520
    %s1523 = sor.u32 256, 72
    %1524 = vbcast.lane.b32.xlu0 %v1486, %s1523
    %v1525 = vpop.permute.xlu0 %1524
    %s1527 = sor.u32 256, 80
    %1528 = vbcast.lane.b32.xlu0 %v1486, %s1527
    %v1529 = vpop.permute.xlu0 %1528
    %s1531 = sor.u32 256, 88
    %1532 = vbcast.lane.b32.xlu0 %v1486, %s1531
    %v1533 = vpop.permute.xlu0 %1532
    %s1535 = sor.u32 256, 96
    %1536 = vbcast.lane.b32.xlu0 %v1486, %s1535
    %v1537 = vpop.permute.xlu0 %1536
    %s1539 = sor.u32 256, 104
    %1540 = vbcast.lane.b32.xlu0 %v1486, %s1539
    %v1541 = vpop.permute.xlu0 %1540
    %s1543 = sor.u32 256, 112
    %1544 = vbcast.lane.b32.xlu0 %v1486, %s1543
    %v1545 = vpop.permute.xlu0 %1544
    %s1547 = sor.u32 256, 120
    %1548 = vbcast.lane.b32.xlu0 %v1486, %s1547
    %v1549 = vpop.permute.xlu0 %1548
    %v1550 = vlaneseq
    %v1551 = vshrl.u32 %v1550, 7
    %v1552 = vsub.s32 1, %v1551
    %v1553 = vrot.slane %v77, %v1552
    %1555 = vbcast.lane.b32.xlu0 %v1553, 256
    %v1556 = vpop.permute.xlu0 %1555
    %s1558 = sor.u32 256, 8
    %1559 = vbcast.lane.b32.xlu0 %v1553, %s1558
    %v1560 = vpop.permute.xlu0 %1559
    %s1562 = sor.u32 256, 16
    %1563 = vbcast.lane.b32.xlu0 %v1553, %s1562
    %v1564 = vpop.permute.xlu0 %1563
    %s1566 = sor.u32 256, 24
    %1567 = vbcast.lane.b32.xlu0 %v1553, %s1566
    %v1568 = vpop.permute.xlu0 %1567
    %s1570 = sor.u32 256, 32
    %1571 = vbcast.lane.b32.xlu0 %v1553, %s1570
    %v1572 = vpop.permute.xlu0 %1571
    %s1574 = sor.u32 256, 40
    %1575 = vbcast.lane.b32.xlu0 %v1553, %s1574
    %v1576 = vpop.permute.xlu0 %1575
    %s1578 = sor.u32 256, 48
    %1579 = vbcast.lane.b32.xlu0 %v1553, %s1578
    %v1580 = vpop.permute.xlu0 %1579
    %s1582 = sor.u32 256, 56
    %1583 = vbcast.lane.b32.xlu0 %v1553, %s1582
    %v1584 = vpop.permute.xlu0 %1583
    %s1586 = sor.u32 256, 64
    %1587 = vbcast.lane.b32.xlu0 %v1553, %s1586
    %v1588 = vpop.permute.xlu0 %1587
    %s1590 = sor.u32 256, 72
    %1591 = vbcast.lane.b32.xlu0 %v1553, %s1590
    %v1592 = vpop.permute.xlu0 %1591
    %s1594 = sor.u32 256, 80
    %1595 = vbcast.lane.b32.xlu0 %v1553, %s1594
    %v1596 = vpop.permute.xlu0 %1595
    %s1598 = sor.u32 256, 88
    %1599 = vbcast.lane.b32.xlu0 %v1553, %s1598
    %v1600 = vpop.permute.xlu0 %1599
    %s1602 = sor.u32 256, 96
    %1603 = vbcast.lane.b32.xlu0 %v1553, %s1602
    %v1604 = vpop.permute.xlu0 %1603
    %s1606 = sor.u32 256, 104
    %1607 = vbcast.lane.b32.xlu0 %v1553, %s1606
    %v1608 = vpop.permute.xlu0 %1607
    %s1610 = sor.u32 256, 112
    %1611 = vbcast.lane.b32.xlu0 %v1553, %s1610
    %v1612 = vpop.permute.xlu0 %1611
    %s1614 = sor.u32 256, 120
    %1615 = vbcast.lane.b32.xlu0 %v1553, %s1614
    %v1616 = vpop.permute.xlu0 %1615
    %v1617 = vlaneseq
    %v1618 = vshrl.u32 %v1617, 7
    %v1619 = vsub.s32 1, %v1618
    %v1620 = vrot.slane %v78, %v1619
    %1622 = vbcast.lane.b32.xlu0 %v1620, 256
    %v1623 = vpop.permute.xlu0 %1622
    %s1625 = sor.u32 256, 8
    %1626 = vbcast.lane.b32.xlu0 %v1620, %s1625
    %v1627 = vpop.permute.xlu0 %1626
    %s1629 = sor.u32 256, 16
    %1630 = vbcast.lane.b32.xlu0 %v1620, %s1629
    %v1631 = vpop.permute.xlu0 %1630
    %s1633 = sor.u32 256, 24
    %1634 = vbcast.lane.b32.xlu0 %v1620, %s1633
    %v1635 = vpop.permute.xlu0 %1634
    %s1637 = sor.u32 256, 32
    %1638 = vbcast.lane.b32.xlu0 %v1620, %s1637
    %v1639 = vpop.permute.xlu0 %1638
    %s1641 = sor.u32 256, 40
    %1642 = vbcast.lane.b32.xlu0 %v1620, %s1641
    %v1643 = vpop.permute.xlu0 %1642
    %s1645 = sor.u32 256, 48
    %1646 = vbcast.lane.b32.xlu0 %v1620, %s1645
    %v1647 = vpop.permute.xlu0 %1646
    %s1649 = sor.u32 256, 56
    %1650 = vbcast.lane.b32.xlu0 %v1620, %s1649
    %v1651 = vpop.permute.xlu0 %1650
    %s1653 = sor.u32 256, 64
    %1654 = vbcast.lane.b32.xlu0 %v1620, %s1653
    %v1655 = vpop.permute.xlu0 %1654
    %s1657 = sor.u32 256, 72
    %1658 = vbcast.lane.b32.xlu0 %v1620, %s1657
    %v1659 = vpop.permute.xlu0 %1658
    %s1661 = sor.u32 256, 80
    %1662 = vbcast.lane.b32.xlu0 %v1620, %s1661
    %v1663 = vpop.permute.xlu0 %1662
    %s1665 = sor.u32 256, 88
    %1666 = vbcast.lane.b32.xlu0 %v1620, %s1665
    %v1667 = vpop.permute.xlu0 %1666
    %s1669 = sor.u32 256, 96
    %1670 = vbcast.lane.b32.xlu0 %v1620, %s1669
    %v1671 = vpop.permute.xlu0 %1670
    %s1673 = sor.u32 256, 104
    %1674 = vbcast.lane.b32.xlu0 %v1620, %s1673
    %v1675 = vpop.permute.xlu0 %1674
    %s1677 = sor.u32 256, 112
    %1678 = vbcast.lane.b32.xlu0 %v1620, %s1677
    %v1679 = vpop.permute.xlu0 %1678
    %s1681 = sor.u32 256, 120
    %1682 = vbcast.lane.b32.xlu0 %v1620, %s1681
    %v1683 = vpop.permute.xlu0 %1682
    %v1684 = vlaneseq
    %v1685 = vshrl.u32 %v1684, 7
    %v1686 = vsub.s32 2, %v1685
    %v1687 = vrot.slane %v77, %v1686
    %1689 = vbcast.lane.b32.xlu0 %v1687, 256
    %v1690 = vpop.permute.xlu0 %1689
    %s1692 = sor.u32 256, 8
    %1693 = vbcast.lane.b32.xlu0 %v1687, %s1692
    %v1694 = vpop.permute.xlu0 %1693
    %s1696 = sor.u32 256, 16
    %1697 = vbcast.lane.b32.xlu0 %v1687, %s1696
    %v1698 = vpop.permute.xlu0 %1697
    %s1700 = sor.u32 256, 24
    %1701 = vbcast.lane.b32.xlu0 %v1687, %s1700
    %v1702 = vpop.permute.xlu0 %1701
    %s1704 = sor.u32 256, 32
    %1705 = vbcast.lane.b32.xlu0 %v1687, %s1704
    %v1706 = vpop.permute.xlu0 %1705
    %s1708 = sor.u32 256, 40
    %1709 = vbcast.lane.b32.xlu0 %v1687, %s1708
    %v1710 = vpop.permute.xlu0 %1709
    %s1712 = sor.u32 256, 48
    %1713 = vbcast.lane.b32.xlu0 %v1687, %s1712
    %v1714 = vpop.permute.xlu0 %1713
    %s1716 = sor.u32 256, 56
    %1717 = vbcast.lane.b32.xlu0 %v1687, %s1716
    %v1718 = vpop.permute.xlu0 %1717
    %s1720 = sor.u32 256, 64
    %1721 = vbcast.lane.b32.xlu0 %v1687, %s1720
    %v1722 = vpop.permute.xlu0 %1721
    %s1724 = sor.u32 256, 72
    %1725 = vbcast.lane.b32.xlu0 %v1687, %s1724
    %v1726 = vpop.permute.xlu0 %1725
    %s1728 = sor.u32 256, 80
    %1729 = vbcast.lane.b32.xlu0 %v1687, %s1728
    %v1730 = vpop.permute.xlu0 %1729
    %s1732 = sor.u32 256, 88
    %1733 = vbcast.lane.b32.xlu0 %v1687, %s1732
    %v1734 = vpop.permute.xlu0 %1733
    %s1736 = sor.u32 256, 96
    %1737 = vbcast.lane.b32.xlu0 %v1687, %s1736
    %v1738 = vpop.permute.xlu0 %1737
    %s1740 = sor.u32 256, 104
    %1741 = vbcast.lane.b32.xlu0 %v1687, %s1740
    %v1742 = vpop.permute.xlu0 %1741
    %s1744 = sor.u32 256, 112
    %1745 = vbcast.lane.b32.xlu0 %v1687, %s1744
    %v1746 = vpop.permute.xlu0 %1745
    %s1748 = sor.u32 256, 120
    %1749 = vbcast.lane.b32.xlu0 %v1687, %s1748
    %v1750 = vpop.permute.xlu0 %1749
    %v1751 = vlaneseq
    %v1752 = vshrl.u32 %v1751, 7
    %v1753 = vsub.s32 2, %v1752
    %v1754 = vrot.slane %v78, %v1753
    %1756 = vbcast.lane.b32.xlu0 %v1754, 256
    %v1757 = vpop.permute.xlu0 %1756
    %s1759 = sor.u32 256, 8
    %1760 = vbcast.lane.b32.xlu0 %v1754, %s1759
    %v1761 = vpop.permute.xlu0 %1760
    %s1763 = sor.u32 256, 16
    %1764 = vbcast.lane.b32.xlu0 %v1754, %s1763
    %v1765 = vpop.permute.xlu0 %1764
    %s1767 = sor.u32 256, 24
    %1768 = vbcast.lane.b32.xlu0 %v1754, %s1767
    %v1769 = vpop.permute.xlu0 %1768
    %s1771 = sor.u32 256, 32
    %1772 = vbcast.lane.b32.xlu0 %v1754, %s1771
    %v1773 = vpop.permute.xlu0 %1772
    %s1775 = sor.u32 256, 40
    %1776 = vbcast.lane.b32.xlu0 %v1754, %s1775
    %v1777 = vpop.permute.xlu0 %1776
    %s1779 = sor.u32 256, 48
    %1780 = vbcast.lane.b32.xlu0 %v1754, %s1779
    %v1781 = vpop.permute.xlu0 %1780
    %s1783 = sor.u32 256, 56
    %1784 = vbcast.lane.b32.xlu0 %v1754, %s1783
    %v1785 = vpop.permute.xlu0 %1784
    %s1787 = sor.u32 256, 64
    %1788 = vbcast.lane.b32.xlu0 %v1754, %s1787
    %v1789 = vpop.permute.xlu0 %1788
    %s1791 = sor.u32 256, 72
    %1792 = vbcast.lane.b32.xlu0 %v1754, %s1791
    %v1793 = vpop.permute.xlu0 %1792
    %s1795 = sor.u32 256, 80
    %1796 = vbcast.lane.b32.xlu0 %v1754, %s1795
    %v1797 = vpop.permute.xlu0 %1796
    %s1799 = sor.u32 256, 88
    %1800 = vbcast.lane.b32.xlu0 %v1754, %s1799
    %v1801 = vpop.permute.xlu0 %1800
    %s1803 = sor.u32 256, 96
    %1804 = vbcast.lane.b32.xlu0 %v1754, %s1803
    %v1805 = vpop.permute.xlu0 %1804
    %s1807 = sor.u32 256, 104
    %1808 = vbcast.lane.b32.xlu0 %v1754, %s1807
    %v1809 = vpop.permute.xlu0 %1808
    %s1811 = sor.u32 256, 112
    %1812 = vbcast.lane.b32.xlu0 %v1754, %s1811
    %v1813 = vpop.permute.xlu0 %1812
    %s1815 = sor.u32 256, 120
    %1816 = vbcast.lane.b32.xlu0 %v1754, %s1815
    %v1817 = vpop.permute.xlu0 %1816
    %v1818 = vlaneseq
    %v1819 = vshrl.u32 %v1818, 7
    %v1820 = vsub.s32 3, %v1819
    %v1821 = vrot.slane %v77, %v1820
    %1823 = vbcast.lane.b32.xlu0 %v1821, 256
    %v1824 = vpop.permute.xlu0 %1823
    %s1826 = sor.u32 256, 8
    %1827 = vbcast.lane.b32.xlu0 %v1821, %s1826
    %v1828 = vpop.permute.xlu0 %1827
    %s1830 = sor.u32 256, 16
    %1831 = vbcast.lane.b32.xlu0 %v1821, %s1830
    %v1832 = vpop.permute.xlu0 %1831
    %s1834 = sor.u32 256, 24
    %1835 = vbcast.lane.b32.xlu0 %v1821, %s1834
    %v1836 = vpop.permute.xlu0 %1835
    %s1838 = sor.u32 256, 32
    %1839 = vbcast.lane.b32.xlu0 %v1821, %s1838
    %v1840 = vpop.permute.xlu0 %1839
    %s1842 = sor.u32 256, 40
    %1843 = vbcast.lane.b32.xlu0 %v1821, %s1842
    %v1844 = vpop.permute.xlu0 %1843
    %s1846 = sor.u32 256, 48
    %1847 = vbcast.lane.b32.xlu0 %v1821, %s1846
    %v1848 = vpop.permute.xlu0 %1847
    %s1850 = sor.u32 256, 56
    %1851 = vbcast.lane.b32.xlu0 %v1821, %s1850
    %v1852 = vpop.permute.xlu0 %1851
    %s1854 = sor.u32 256, 64
    %1855 = vbcast.lane.b32.xlu0 %v1821, %s1854
    %v1856 = vpop.permute.xlu0 %1855
    %s1858 = sor.u32 256, 72
    %1859 = vbcast.lane.b32.xlu0 %v1821, %s1858
    %v1860 = vpop.permute.xlu0 %1859
    %s1862 = sor.u32 256, 80
    %1863 = vbcast.lane.b32.xlu0 %v1821, %s1862
    %v1864 = vpop.permute.xlu0 %1863
    %s1866 = sor.u32 256, 88
    %1867 = vbcast.lane.b32.xlu0 %v1821, %s1866
    %v1868 = vpop.permute.xlu0 %1867
    %s1870 = sor.u32 256, 96
    %1871 = vbcast.lane.b32.xlu0 %v1821, %s1870
    %v1872 = vpop.permute.xlu0 %1871
    %s1874 = sor.u32 256, 104
    %1875 = vbcast.lane.b32.xlu0 %v1821, %s1874
    %v1876 = vpop.permute.xlu0 %1875
    %s1878 = sor.u32 256, 112
    %1879 = vbcast.lane.b32.xlu0 %v1821, %s1878
    %v1880 = vpop.permute.xlu0 %1879
    %s1882 = sor.u32 256, 120
    %1883 = vbcast.lane.b32.xlu0 %v1821, %s1882
    %v1884 = vpop.permute.xlu0 %1883
    %v1885 = vlaneseq
    %v1886 = vshrl.u32 %v1885, 7
    %v1887 = vsub.s32 3, %v1886
    %v1888 = vrot.slane %v78, %v1887
    %1890 = vbcast.lane.b32.xlu0 %v1888, 256
    %v1891 = vpop.permute.xlu0 %1890
    %s1893 = sor.u32 256, 8
    %1894 = vbcast.lane.b32.xlu0 %v1888, %s1893
    %v1895 = vpop.permute.xlu0 %1894
    %s1897 = sor.u32 256, 16
    %1898 = vbcast.lane.b32.xlu0 %v1888, %s1897
    %v1899 = vpop.permute.xlu0 %1898
    %s1901 = sor.u32 256, 24
    %1902 = vbcast.lane.b32.xlu0 %v1888, %s1901
    %v1903 = vpop.permute.xlu0 %1902
    %s1905 = sor.u32 256, 32
    %1906 = vbcast.lane.b32.xlu0 %v1888, %s1905
    %v1907 = vpop.permute.xlu0 %1906
    %s1909 = sor.u32 256, 40
    %1910 = vbcast.lane.b32.xlu0 %v1888, %s1909
    %v1911 = vpop.permute.xlu0 %1910
    %s1913 = sor.u32 256, 48
    %1914 = vbcast.lane.b32.xlu0 %v1888, %s1913
    %v1915 = vpop.permute.xlu0 %1914
    %s1917 = sor.u32 256, 56
    %1918 = vbcast.lane.b32.xlu0 %v1888, %s1917
    %v1919 = vpop.permute.xlu0 %1918
    %s1921 = sor.u32 256, 64
    %1922 = vbcast.lane.b32.xlu0 %v1888, %s1921
    %v1923 = vpop.permute.xlu0 %1922
    %s1925 = sor.u32 256, 72
    %1926 = vbcast.lane.b32.xlu0 %v1888, %s1925
    %v1927 = vpop.permute.xlu0 %1926
    %s1929 = sor.u32 256, 80
    %1930 = vbcast.lane.b32.xlu0 %v1888, %s1929
    %v1931 = vpop.permute.xlu0 %1930
    %s1933 = sor.u32 256, 88
    %1934 = vbcast.lane.b32.xlu0 %v1888, %s1933
    %v1935 = vpop.permute.xlu0 %1934
    %s1937 = sor.u32 256, 96
    %1938 = vbcast.lane.b32.xlu0 %v1888, %s1937
    %v1939 = vpop.permute.xlu0 %1938
    %s1941 = sor.u32 256, 104
    %1942 = vbcast.lane.b32.xlu0 %v1888, %s1941
    %v1943 = vpop.permute.xlu0 %1942
    %s1945 = sor.u32 256, 112
    %1946 = vbcast.lane.b32.xlu0 %v1888, %s1945
    %v1947 = vpop.permute.xlu0 %1946
    %s1949 = sor.u32 256, 120
    %1950 = vbcast.lane.b32.xlu0 %v1888, %s1949
    %v1951 = vpop.permute.xlu0 %1950
    %v1952 = vlaneseq
    %v1953 = vshrl.u32 %v1952, 7
    %v1954 = vsub.s32 4, %v1953
    %v1955 = vrot.slane %v77, %v1954
    %1957 = vbcast.lane.b32.xlu0 %v1955, 256
    %v1958 = vpop.permute.xlu0 %1957
    %s1960 = sor.u32 256, 8
    %1961 = vbcast.lane.b32.xlu0 %v1955, %s1960
    %v1962 = vpop.permute.xlu0 %1961
    %s1964 = sor.u32 256, 16
    %1965 = vbcast.lane.b32.xlu0 %v1955, %s1964
    %v1966 = vpop.permute.xlu0 %1965
    %s1968 = sor.u32 256, 24
    %1969 = vbcast.lane.b32.xlu0 %v1955, %s1968
    %v1970 = vpop.permute.xlu0 %1969
    %s1972 = sor.u32 256, 32
    %1973 = vbcast.lane.b32.xlu0 %v1955, %s1972
    %v1974 = vpop.permute.xlu0 %1973
    %s1976 = sor.u32 256, 40
    %1977 = vbcast.lane.b32.xlu0 %v1955, %s1976
    %v1978 = vpop.permute.xlu0 %1977
    %s1980 = sor.u32 256, 48
    %1981 = vbcast.lane.b32.xlu0 %v1955, %s1980
    %v1982 = vpop.permute.xlu0 %1981
    %s1984 = sor.u32 256, 56
    %1985 = vbcast.lane.b32.xlu0 %v1955, %s1984
    %v1986 = vpop.permute.xlu0 %1985
    %s1988 = sor.u32 256, 64
    %1989 = vbcast.lane.b32.xlu0 %v1955, %s1988
    %v1990 = vpop.permute.xlu0 %1989
    %s1992 = sor.u32 256, 72
    %1993 = vbcast.lane.b32.xlu0 %v1955, %s1992
    %v1994 = vpop.permute.xlu0 %1993
    %s1996 = sor.u32 256, 80
    %1997 = vbcast.lane.b32.xlu0 %v1955, %s1996
    %v1998 = vpop.permute.xlu0 %1997
    %s2000 = sor.u32 256, 88
    %2001 = vbcast.lane.b32.xlu0 %v1955, %s2000
    %v2002 = vpop.permute.xlu0 %2001
    %s2004 = sor.u32 256, 96
    %2005 = vbcast.lane.b32.xlu0 %v1955, %s2004
    %v2006 = vpop.permute.xlu0 %2005
    %s2008 = sor.u32 256, 104
    %2009 = vbcast.lane.b32.xlu0 %v1955, %s2008
    %v2010 = vpop.permute.xlu0 %2009
    %s2012 = sor.u32 256, 112
    %2013 = vbcast.lane.b32.xlu0 %v1955, %s2012
    %v2014 = vpop.permute.xlu0 %2013
    %s2016 = sor.u32 256, 120
    %2017 = vbcast.lane.b32.xlu0 %v1955, %s2016
    %v2018 = vpop.permute.xlu0 %2017
    %v2019 = vlaneseq
    %v2020 = vshrl.u32 %v2019, 7
    %v2021 = vsub.s32 4, %v2020
    %v2022 = vrot.slane %v78, %v2021
    %2024 = vbcast.lane.b32.xlu0 %v2022, 256
    %v2025 = vpop.permute.xlu0 %2024
    %s2027 = sor.u32 256, 8
    %2028 = vbcast.lane.b32.xlu0 %v2022, %s2027
    %v2029 = vpop.permute.xlu0 %2028
    %s2031 = sor.u32 256, 16
    %2032 = vbcast.lane.b32.xlu0 %v2022, %s2031
    %v2033 = vpop.permute.xlu0 %2032
    %s2035 = sor.u32 256, 24
    %2036 = vbcast.lane.b32.xlu0 %v2022, %s2035
    %v2037 = vpop.permute.xlu0 %2036
    %s2039 = sor.u32 256, 32
    %2040 = vbcast.lane.b32.xlu0 %v2022, %s2039
    %v2041 = vpop.permute.xlu0 %2040
    %s2043 = sor.u32 256, 40
    %2044 = vbcast.lane.b32.xlu0 %v2022, %s2043
    %v2045 = vpop.permute.xlu0 %2044
    %s2047 = sor.u32 256, 48
    %2048 = vbcast.lane.b32.xlu0 %v2022, %s2047
    %v2049 = vpop.permute.xlu0 %2048
    %s2051 = sor.u32 256, 56
    %2052 = vbcast.lane.b32.xlu0 %v2022, %s2051
    %v2053 = vpop.permute.xlu0 %2052
    %s2055 = sor.u32 256, 64
    %2056 = vbcast.lane.b32.xlu0 %v2022, %s2055
    %v2057 = vpop.permute.xlu0 %2056
    %s2059 = sor.u32 256, 72
    %2060 = vbcast.lane.b32.xlu0 %v2022, %s2059
    %v2061 = vpop.permute.xlu0 %2060
    %s2063 = sor.u32 256, 80
    %2064 = vbcast.lane.b32.xlu0 %v2022, %s2063
    %v2065 = vpop.permute.xlu0 %2064
    %s2067 = sor.u32 256, 88
    %2068 = vbcast.lane.b32.xlu0 %v2022, %s2067
    %v2069 = vpop.permute.xlu0 %2068
    %s2071 = sor.u32 256, 96
    %2072 = vbcast.lane.b32.xlu0 %v2022, %s2071
    %v2073 = vpop.permute.xlu0 %2072
    %s2075 = sor.u32 256, 104
    %2076 = vbcast.lane.b32.xlu0 %v2022, %s2075
    %v2077 = vpop.permute.xlu0 %2076
    %s2079 = sor.u32 256, 112
    %2080 = vbcast.lane.b32.xlu0 %v2022, %s2079
    %v2081 = vpop.permute.xlu0 %2080
    %s2083 = sor.u32 256, 120
    %2084 = vbcast.lane.b32.xlu0 %v2022, %s2083
    %v2085 = vpop.permute.xlu0 %2084
    %v2086 = vlaneseq
    %v2087 = vshrl.u32 %v2086, 7
    %v2088 = vsub.s32 5, %v2087
    %v2089 = vrot.slane %v77, %v2088
    %2091 = vbcast.lane.b32.xlu0 %v2089, 256
    %v2092 = vpop.permute.xlu0 %2091
    %s2094 = sor.u32 256, 8
    %2095 = vbcast.lane.b32.xlu0 %v2089, %s2094
    %v2096 = vpop.permute.xlu0 %2095
    %s2098 = sor.u32 256, 16
    %2099 = vbcast.lane.b32.xlu0 %v2089, %s2098
    %v2100 = vpop.permute.xlu0 %2099
    %s2102 = sor.u32 256, 24
    %2103 = vbcast.lane.b32.xlu0 %v2089, %s2102
    %v2104 = vpop.permute.xlu0 %2103
    %s2106 = sor.u32 256, 32
    %2107 = vbcast.lane.b32.xlu0 %v2089, %s2106
    %v2108 = vpop.permute.xlu0 %2107
    %s2110 = sor.u32 256, 40
    %2111 = vbcast.lane.b32.xlu0 %v2089, %s2110
    %v2112 = vpop.permute.xlu0 %2111
    %s2114 = sor.u32 256, 48
    %2115 = vbcast.lane.b32.xlu0 %v2089, %s2114
    %v2116 = vpop.permute.xlu0 %2115
    %s2118 = sor.u32 256, 56
    %2119 = vbcast.lane.b32.xlu0 %v2089, %s2118
    %v2120 = vpop.permute.xlu0 %2119
    %s2122 = sor.u32 256, 64
    %2123 = vbcast.lane.b32.xlu0 %v2089, %s2122
    %v2124 = vpop.permute.xlu0 %2123
    %s2126 = sor.u32 256, 72
    %2127 = vbcast.lane.b32.xlu0 %v2089, %s2126
    %v2128 = vpop.permute.xlu0 %2127
    %s2130 = sor.u32 256, 80
    %2131 = vbcast.lane.b32.xlu0 %v2089, %s2130
    %v2132 = vpop.permute.xlu0 %2131
    %s2134 = sor.u32 256, 88
    %2135 = vbcast.lane.b32.xlu0 %v2089, %s2134
    %v2136 = vpop.permute.xlu0 %2135
    %s2138 = sor.u32 256, 96
    %2139 = vbcast.lane.b32.xlu0 %v2089, %s2138
    %v2140 = vpop.permute.xlu0 %2139
    %s2142 = sor.u32 256, 104
    %2143 = vbcast.lane.b32.xlu0 %v2089, %s2142
    %v2144 = vpop.permute.xlu0 %2143
    %s2146 = sor.u32 256, 112
    %2147 = vbcast.lane.b32.xlu0 %v2089, %s2146
    %v2148 = vpop.permute.xlu0 %2147
    %s2150 = sor.u32 256, 120
    %2151 = vbcast.lane.b32.xlu0 %v2089, %s2150
    %v2152 = vpop.permute.xlu0 %2151
    %v2153 = vlaneseq
    %v2154 = vshrl.u32 %v2153, 7
    %v2155 = vsub.s32 5, %v2154
    %v2156 = vrot.slane %v78, %v2155
    %2158 = vbcast.lane.b32.xlu0 %v2156, 256
    %v2159 = vpop.permute.xlu0 %2158
    %s2161 = sor.u32 256, 8
    %2162 = vbcast.lane.b32.xlu0 %v2156, %s2161
    %v2163 = vpop.permute.xlu0 %2162
    %s2165 = sor.u32 256, 16
    %2166 = vbcast.lane.b32.xlu0 %v2156, %s2165
    %v2167 = vpop.permute.xlu0 %2166
    %s2169 = sor.u32 256, 24
    %2170 = vbcast.lane.b32.xlu0 %v2156, %s2169
    %v2171 = vpop.permute.xlu0 %2170
    %s2173 = sor.u32 256, 32
    %2174 = vbcast.lane.b32.xlu0 %v2156, %s2173
    %v2175 = vpop.permute.xlu0 %2174
    %s2177 = sor.u32 256, 40
    %2178 = vbcast.lane.b32.xlu0 %v2156, %s2177
    %v2179 = vpop.permute.xlu0 %2178
    %s2181 = sor.u32 256, 48
    %2182 = vbcast.lane.b32.xlu0 %v2156, %s2181
    %v2183 = vpop.permute.xlu0 %2182
    %s2185 = sor.u32 256, 56
    %2186 = vbcast.lane.b32.xlu0 %v2156, %s2185
    %v2187 = vpop.permute.xlu0 %2186
    %s2189 = sor.u32 256, 64
    %2190 = vbcast.lane.b32.xlu0 %v2156, %s2189
    %v2191 = vpop.permute.xlu0 %2190
    %s2193 = sor.u32 256, 72
    %2194 = vbcast.lane.b32.xlu0 %v2156, %s2193
    %v2195 = vpop.permute.xlu0 %2194
    %s2197 = sor.u32 256, 80
    %2198 = vbcast.lane.b32.xlu0 %v2156, %s2197
    %v2199 = vpop.permute.xlu0 %2198
    %s2201 = sor.u32 256, 88
    %2202 = vbcast.lane.b32.xlu0 %v2156, %s2201
    %v2203 = vpop.permute.xlu0 %2202
    %s2205 = sor.u32 256, 96
    %2206 = vbcast.lane.b32.xlu0 %v2156, %s2205
    %v2207 = vpop.permute.xlu0 %2206
    %s2209 = sor.u32 256, 104
    %2210 = vbcast.lane.b32.xlu0 %v2156, %s2209
    %v2211 = vpop.permute.xlu0 %2210
    %s2213 = sor.u32 256, 112
    %2214 = vbcast.lane.b32.xlu0 %v2156, %s2213
    %v2215 = vpop.permute.xlu0 %2214
    %s2217 = sor.u32 256, 120
    %2218 = vbcast.lane.b32.xlu0 %v2156, %s2217
    %v2219 = vpop.permute.xlu0 %2218
    %v2220 = vlaneseq
    %v2221 = vshrl.u32 %v2220, 7
    %v2222 = vsub.s32 6, %v2221
    %v2223 = vrot.slane %v77, %v2222
    %2225 = vbcast.lane.b32.xlu0 %v2223, 256
    %v2226 = vpop.permute.xlu0 %2225
    %s2228 = sor.u32 256, 8
    %2229 = vbcast.lane.b32.xlu0 %v2223, %s2228
    %v2230 = vpop.permute.xlu0 %2229
    %s2232 = sor.u32 256, 16
    %2233 = vbcast.lane.b32.xlu0 %v2223, %s2232
    %v2234 = vpop.permute.xlu0 %2233
    %s2236 = sor.u32 256, 24
    %2237 = vbcast.lane.b32.xlu0 %v2223, %s2236
    %v2238 = vpop.permute.xlu0 %2237
    %s2240 = sor.u32 256, 32
    %2241 = vbcast.lane.b32.xlu0 %v2223, %s2240
    %v2242 = vpop.permute.xlu0 %2241
    %s2244 = sor.u32 256, 40
    %2245 = vbcast.lane.b32.xlu0 %v2223, %s2244
    %v2246 = vpop.permute.xlu0 %2245
    %s2248 = sor.u32 256, 48
    %2249 = vbcast.lane.b32.xlu0 %v2223, %s2248
    %v2250 = vpop.permute.xlu0 %2249
    %s2252 = sor.u32 256, 56
    %2253 = vbcast.lane.b32.xlu0 %v2223, %s2252
    %v2254 = vpop.permute.xlu0 %2253
    %s2256 = sor.u32 256, 64
    %2257 = vbcast.lane.b32.xlu0 %v2223, %s2256
    %v2258 = vpop.permute.xlu0 %2257
    %s2260 = sor.u32 256, 72
    %2261 = vbcast.lane.b32.xlu0 %v2223, %s2260
    %v2262 = vpop.permute.xlu0 %2261
    %s2264 = sor.u32 256, 80
    %2265 = vbcast.lane.b32.xlu0 %v2223, %s2264
    %v2266 = vpop.permute.xlu0 %2265
    %s2268 = sor.u32 256, 88
    %2269 = vbcast.lane.b32.xlu0 %v2223, %s2268
    %v2270 = vpop.permute.xlu0 %2269
    %s2272 = sor.u32 256, 96
    %2273 = vbcast.lane.b32.xlu0 %v2223, %s2272
    %v2274 = vpop.permute.xlu0 %2273
    %s2276 = sor.u32 256, 104
    %2277 = vbcast.lane.b32.xlu0 %v2223, %s2276
    %v2278 = vpop.permute.xlu0 %2277
    %s2280 = sor.u32 256, 112
    %2281 = vbcast.lane.b32.xlu0 %v2223, %s2280
    %v2282 = vpop.permute.xlu0 %2281
    %s2284 = sor.u32 256, 120
    %2285 = vbcast.lane.b32.xlu0 %v2223, %s2284
    %v2286 = vpop.permute.xlu0 %2285
    %v2287 = vlaneseq
    %v2288 = vshrl.u32 %v2287, 7
    %v2289 = vsub.s32 6, %v2288
    %v2290 = vrot.slane %v78, %v2289
    %2292 = vbcast.lane.b32.xlu0 %v2290, 256
    %v2293 = vpop.permute.xlu0 %2292
    %s2295 = sor.u32 256, 8
    %2296 = vbcast.lane.b32.xlu0 %v2290, %s2295
    %v2297 = vpop.permute.xlu0 %2296
    %s2299 = sor.u32 256, 16
    %2300 = vbcast.lane.b32.xlu0 %v2290, %s2299
    %v2301 = vpop.permute.xlu0 %2300
    %s2303 = sor.u32 256, 24
    %2304 = vbcast.lane.b32.xlu0 %v2290, %s2303
    %v2305 = vpop.permute.xlu0 %2304
    %s2307 = sor.u32 256, 32
    %2308 = vbcast.lane.b32.xlu0 %v2290, %s2307
    %v2309 = vpop.permute.xlu0 %2308
    %s2311 = sor.u32 256, 40
    %2312 = vbcast.lane.b32.xlu0 %v2290, %s2311
    %v2313 = vpop.permute.xlu0 %2312
    %s2315 = sor.u32 256, 48
    %2316 = vbcast.lane.b32.xlu0 %v2290, %s2315
    %v2317 = vpop.permute.xlu0 %2316
    %s2319 = sor.u32 256, 56
    %2320 = vbcast.lane.b32.xlu0 %v2290, %s2319
    %v2321 = vpop.permute.xlu0 %2320
    %s2323 = sor.u32 256, 64
    %2324 = vbcast.lane.b32.xlu0 %v2290, %s2323
    %v2325 = vpop.permute.xlu0 %2324
    %s2327 = sor.u32 256, 72
    %2328 = vbcast.lane.b32.xlu0 %v2290, %s2327
    %v2329 = vpop.permute.xlu0 %2328
    %s2331 = sor.u32 256, 80
    %2332 = vbcast.lane.b32.xlu0 %v2290, %s2331
    %v2333 = vpop.permute.xlu0 %2332
    %s2335 = sor.u32 256, 88
    %2336 = vbcast.lane.b32.xlu0 %v2290, %s2335
    %v2337 = vpop.permute.xlu0 %2336
    %s2339 = sor.u32 256, 96
    %2340 = vbcast.lane.b32.xlu0 %v2290, %s2339
    %v2341 = vpop.permute.xlu0 %2340
    %s2343 = sor.u32 256, 104
    %2344 = vbcast.lane.b32.xlu0 %v2290, %s2343
    %v2345 = vpop.permute.xlu0 %2344
    %s2347 = sor.u32 256, 112
    %2348 = vbcast.lane.b32.xlu0 %v2290, %s2347
    %v2349 = vpop.permute.xlu0 %2348
    %s2351 = sor.u32 256, 120
    %2352 = vbcast.lane.b32.xlu0 %v2290, %s2351
    %v2353 = vpop.permute.xlu0 %2352
    %v2354 = vlaneseq
    %v2355 = vshrl.u32 %v2354, 7
    %v2356 = vsub.s32 7, %v2355
    %v2357 = vrot.slane %v77, %v2356
    %2359 = vbcast.lane.b32.xlu0 %v2357, 256
    %v2360 = vpop.permute.xlu0 %2359
    %s2362 = sor.u32 256, 8
    %2363 = vbcast.lane.b32.xlu0 %v2357, %s2362
    %v2364 = vpop.permute.xlu0 %2363
    %s2366 = sor.u32 256, 16
    %2367 = vbcast.lane.b32.xlu0 %v2357, %s2366
    %v2368 = vpop.permute.xlu0 %2367
    %s2370 = sor.u32 256, 24
    %2371 = vbcast.lane.b32.xlu0 %v2357, %s2370
    %v2372 = vpop.permute.xlu0 %2371
    %s2374 = sor.u32 256, 32
    %2375 = vbcast.lane.b32.xlu0 %v2357, %s2374
    %v2376 = vpop.permute.xlu0 %2375
    %s2378 = sor.u32 256, 40
    %2379 = vbcast.lane.b32.xlu0 %v2357, %s2378
    %v2380 = vpop.permute.xlu0 %2379
    %s2382 = sor.u32 256, 48
    %2383 = vbcast.lane.b32.xlu0 %v2357, %s2382
    %v2384 = vpop.permute.xlu0 %2383
    %s2386 = sor.u32 256, 56
    %2387 = vbcast.lane.b32.xlu0 %v2357, %s2386
    %v2388 = vpop.permute.xlu0 %2387
    %s2390 = sor.u32 256, 64
    %2391 = vbcast.lane.b32.xlu0 %v2357, %s2390
    %v2392 = vpop.permute.xlu0 %2391
    %s2394 = sor.u32 256, 72
    %2395 = vbcast.lane.b32.xlu0 %v2357, %s2394
    %v2396 = vpop.permute.xlu0 %2395
    %s2398 = sor.u32 256, 80
    %2399 = vbcast.lane.b32.xlu0 %v2357, %s2398
    %v2400 = vpop.permute.xlu0 %2399
    %s2402 = sor.u32 256, 88
    %2403 = vbcast.lane.b32.xlu0 %v2357, %s2402
    %v2404 = vpop.permute.xlu0 %2403
    %s2406 = sor.u32 256, 96
    %2407 = vbcast.lane.b32.xlu0 %v2357, %s2406
    %v2408 = vpop.permute.xlu0 %2407
    %s2410 = sor.u32 256, 104
    %2411 = vbcast.lane.b32.xlu0 %v2357, %s2410
    %v2412 = vpop.permute.xlu0 %2411
    %s2414 = sor.u32 256, 112
    %2415 = vbcast.lane.b32.xlu0 %v2357, %s2414
    %v2416 = vpop.permute.xlu0 %2415
    %s2418 = sor.u32 256, 120
    %2419 = vbcast.lane.b32.xlu0 %v2357, %s2418
    %v2420 = vpop.permute.xlu0 %2419
    %v2421 = vlaneseq
    %v2422 = vshrl.u32 %v2421, 7
    %v2423 = vsub.s32 7, %v2422
    %v2424 = vrot.slane %v78, %v2423
    %2426 = vbcast.lane.b32.xlu0 %v2424, 256
    %v2427 = vpop.permute.xlu0 %2426
    %s2429 = sor.u32 256, 8
    %2430 = vbcast.lane.b32.xlu0 %v2424, %s2429
    %v2431 = vpop.permute.xlu0 %2430
    %s2433 = sor.u32 256, 16
    %2434 = vbcast.lane.b32.xlu0 %v2424, %s2433
    %v2435 = vpop.permute.xlu0 %2434
    %s2437 = sor.u32 256, 24
    %2438 = vbcast.lane.b32.xlu0 %v2424, %s2437
    %v2439 = vpop.permute.xlu0 %2438
    %s2441 = sor.u32 256, 32
    %2442 = vbcast.lane.b32.xlu0 %v2424, %s2441
    %v2443 = vpop.permute.xlu0 %2442
    %s2445 = sor.u32 256, 40
    %2446 = vbcast.lane.b32.xlu0 %v2424, %s2445
    %v2447 = vpop.permute.xlu0 %2446
    %s2449 = sor.u32 256, 48
    %2450 = vbcast.lane.b32.xlu0 %v2424, %s2449
    %v2451 = vpop.permute.xlu0 %2450
    %s2453 = sor.u32 256, 56
    %2454 = vbcast.lane.b32.xlu0 %v2424, %s2453
    %v2455 = vpop.permute.xlu0 %2454
    %s2457 = sor.u32 256, 64
    %2458 = vbcast.lane.b32.xlu0 %v2424, %s2457
    %v2459 = vpop.permute.xlu0 %2458
    %s2461 = sor.u32 256, 72
    %2462 = vbcast.lane.b32.xlu0 %v2424, %s2461
    %v2463 = vpop.permute.xlu0 %2462
    %s2465 = sor.u32 256, 80
    %2466 = vbcast.lane.b32.xlu0 %v2424, %s2465
    %v2467 = vpop.permute.xlu0 %2466
    %s2469 = sor.u32 256, 88
    %2470 = vbcast.lane.b32.xlu0 %v2424, %s2469
    %v2471 = vpop.permute.xlu0 %2470
    %s2473 = sor.u32 256, 96
    %2474 = vbcast.lane.b32.xlu0 %v2424, %s2473
    %v2475 = vpop.permute.xlu0 %2474
    %s2477 = sor.u32 256, 104
    %2478 = vbcast.lane.b32.xlu0 %v2424, %s2477
    %v2479 = vpop.permute.xlu0 %2478
    %s2481 = sor.u32 256, 112
    %2482 = vbcast.lane.b32.xlu0 %v2424, %s2481
    %v2483 = vpop.permute.xlu0 %2482
    %s2485 = sor.u32 256, 120
    %2486 = vbcast.lane.b32.xlu0 %v2424, %s2485
    %v2487 = vpop.permute.xlu0 %2486
    %v2488 = vlaneseq
    %v2489 = vshrl.u32 %v2488, 7
    %v2490 = vsub.s32 1, %v2489
    %v2491 = vrot.slane %v83, %v2490
    %v2492 = vmul.f32 %v1422, %v2491
    %v2493 = vmul.f32 %v1426, %v2491
    %v2494 = vmul.f32 %v1430, %v2491
    %v2495 = vmul.f32 %v1434, %v2491
    %v2496 = vmul.f32 %v1438, %v2491
    %v2497 = vmul.f32 %v1442, %v2491
    %v2498 = vmul.f32 %v1446, %v2491
    %v2499 = vmul.f32 %v1450, %v2491
    %v2500 = vmul.f32 %v1454, %v2491
    %v2501 = vmul.f32 %v1458, %v2491
    %v2502 = vmul.f32 %v1462, %v2491
    %v2503 = vmul.f32 %v1466, %v2491
    %v2504 = vmul.f32 %v1470, %v2491
    %v2505 = vmul.f32 %v1474, %v2491
    %v2506 = vmul.f32 %v1478, %v2491
    %v2507 = vmul.f32 %v1482, %v2491
    %v2508 = vmul.f32 %v1489, %v2491
    %v2509 = vmul.f32 %v1493, %v2491
    %v2510 = vmul.f32 %v1497, %v2491
    %v2511 = vmul.f32 %v1501, %v2491
    %v2512 = vmul.f32 %v1505, %v2491
    %v2513 = vmul.f32 %v1509, %v2491
    %v2514 = vmul.f32 %v1513, %v2491
    %v2515 = vmul.f32 %v1517, %v2491
    %v2516 = vmul.f32 %v1521, %v2491
    %v2517 = vmul.f32 %v1525, %v2491
    %v2518 = vmul.f32 %v1529, %v2491
    %v2519 = vmul.f32 %v1533, %v2491
    %v2520 = vmul.f32 %v1537, %v2491
    %v2521 = vmul.f32 %v1541, %v2491
    %v2522 = vmul.f32 %v1545, %v2491
    %v2523 = vmul.f32 %v1549, %v2491
    %v2524 = vmul.f32 %v1556, %v2491
    %v2525 = vmul.f32 %v1560, %v2491
    %v2526 = vmul.f32 %v1564, %v2491
    %v2527 = vmul.f32 %v1568, %v2491
    %v2528 = vmul.f32 %v1572, %v2491
    %v2529 = vmul.f32 %v1576, %v2491
    %v2530 = vmul.f32 %v1580, %v2491
    %v2531 = vmul.f32 %v1584, %v2491
    %v2532 = vmul.f32 %v1588, %v2491
    %v2533 = vmul.f32 %v1592, %v2491
    %v2534 = vmul.f32 %v1596, %v2491
    %v2535 = vmul.f32 %v1600, %v2491
    %v2536 = vmul.f32 %v1604, %v2491
    %v2537 = vmul.f32 %v1608, %v2491
    %v2538 = vmul.f32 %v1612, %v2491
    %v2539 = vmul.f32 %v1616, %v2491
    %v2540 = vmul.f32 %v1623, %v2491
    %v2541 = vmul.f32 %v1627, %v2491
    %v2542 = vmul.f32 %v1631, %v2491
    %v2543 = vmul.f32 %v1635, %v2491
    %v2544 = vmul.f32 %v1639, %v2491
    %v2545 = vmul.f32 %v1643, %v2491
    %v2546 = vmul.f32 %v1647, %v2491
    %v2547 = vmul.f32 %v1651, %v2491
    %v2548 = vmul.f32 %v1655, %v2491
    %v2549 = vmul.f32 %v1659, %v2491
    %v2550 = vmul.f32 %v1663, %v2491
    %v2551 = vmul.f32 %v1667, %v2491
    %v2552 = vmul.f32 %v1671, %v2491
    %v2553 = vmul.f32 %v1675, %v2491
    %v2554 = vmul.f32 %v1679, %v2491
    %v2555 = vmul.f32 %v1683, %v2491
    %v2556 = vmul.f32 %v1690, %v2491
    %v2557 = vmul.f32 %v1694, %v2491
    %v2558 = vmul.f32 %v1698, %v2491
    %v2559 = vmul.f32 %v1702, %v2491
    %v2560 = vmul.f32 %v1706, %v2491
    %v2561 = vmul.f32 %v1710, %v2491
    %v2562 = vmul.f32 %v1714, %v2491
    %v2563 = vmul.f32 %v1718, %v2491
    %v2564 = vmul.f32 %v1722, %v2491
    %v2565 = vmul.f32 %v1726, %v2491
    %v2566 = vmul.f32 %v1730, %v2491
    %v2567 = vmul.f32 %v1734, %v2491
    %v2568 = vmul.f32 %v1738, %v2491
    %v2569 = vmul.f32 %v1742, %v2491
    %v2570 = vmul.f32 %v1746, %v2491
    %v2571 = vmul.f32 %v1750, %v2491
    %v2572 = vmul.f32 %v1757, %v2491
    %v2573 = vmul.f32 %v1761, %v2491
    %v2574 = vmul.f32 %v1765, %v2491
    %v2575 = vmul.f32 %v1769, %v2491
    %v2576 = vmul.f32 %v1773, %v2491
    %v2577 = vmul.f32 %v1777, %v2491
    %v2578 = vmul.f32 %v1781, %v2491
    %v2579 = vmul.f32 %v1785, %v2491
    %v2580 = vmul.f32 %v1789, %v2491
    %v2581 = vmul.f32 %v1793, %v2491
    %v2582 = vmul.f32 %v1797, %v2491
    %v2583 = vmul.f32 %v1801, %v2491
    %v2584 = vmul.f32 %v1805, %v2491
    %v2585 = vmul.f32 %v1809, %v2491
    %v2586 = vmul.f32 %v1813, %v2491
    %v2587 = vmul.f32 %v1817, %v2491
    %v2588 = vmul.f32 %v1824, %v2491
    %v2589 = vmul.f32 %v1828, %v2491
    %v2590 = vmul.f32 %v1832, %v2491
    %v2591 = vmul.f32 %v1836, %v2491
    %v2592 = vmul.f32 %v1840, %v2491
    %v2593 = vmul.f32 %v1844, %v2491
    %v2594 = vmul.f32 %v1848, %v2491
    %v2595 = vmul.f32 %v1852, %v2491
    %v2596 = vmul.f32 %v1856, %v2491
    %v2597 = vmul.f32 %v1860, %v2491
    %v2598 = vmul.f32 %v1864, %v2491
    %v2599 = vmul.f32 %v1868, %v2491
    %v2600 = vmul.f32 %v1872, %v2491
    %v2601 = vmul.f32 %v1876, %v2491
    %v2602 = vmul.f32 %v1880, %v2491
    %v2603 = vmul.f32 %v1884, %v2491
    %v2604 = vmul.f32 %v1891, %v2491
    %v2605 = vmul.f32 %v1895, %v2491
    %v2606 = vmul.f32 %v1899, %v2491
    %v2607 = vmul.f32 %v1903, %v2491
    %v2608 = vmul.f32 %v1907, %v2491
    %v2609 = vmul.f32 %v1911, %v2491
    %v2610 = vmul.f32 %v1915, %v2491
    %v2611 = vmul.f32 %v1919, %v2491
    %v2612 = vmul.f32 %v1923, %v2491
    %v2613 = vmul.f32 %v1927, %v2491
    %v2614 = vmul.f32 %v1931, %v2491
    %v2615 = vmul.f32 %v1935, %v2491
    %v2616 = vmul.f32 %v1939, %v2491
    %v2617 = vmul.f32 %v1943, %v2491
    %v2618 = vmul.f32 %v1947, %v2491
    %v2619 = vmul.f32 %v1951, %v2491
    %v2620 = vmul.f32 %v1958, %v2491
    %v2621 = vmul.f32 %v1962, %v2491
    %v2622 = vmul.f32 %v1966, %v2491
    %v2623 = vmul.f32 %v1970, %v2491
    %v2624 = vmul.f32 %v1974, %v2491
    %v2625 = vmul.f32 %v1978, %v2491
    %v2626 = vmul.f32 %v1982, %v2491
    %v2627 = vmul.f32 %v1986, %v2491
    %v2628 = vmul.f32 %v1990, %v2491
    %v2629 = vmul.f32 %v1994, %v2491
    %v2630 = vmul.f32 %v1998, %v2491
    %v2631 = vmul.f32 %v2002, %v2491
    %v2632 = vmul.f32 %v2006, %v2491
    %v2633 = vmul.f32 %v2010, %v2491
    %v2634 = vmul.f32 %v2014, %v2491
    %v2635 = vmul.f32 %v2018, %v2491
    %v2636 = vmul.f32 %v2025, %v2491
    %v2637 = vmul.f32 %v2029, %v2491
    %v2638 = vmul.f32 %v2033, %v2491
    %v2639 = vmul.f32 %v2037, %v2491
    %v2640 = vmul.f32 %v2041, %v2491
    %v2641 = vmul.f32 %v2045, %v2491
    %v2642 = vmul.f32 %v2049, %v2491
    %v2643 = vmul.f32 %v2053, %v2491
    %v2644 = vmul.f32 %v2057, %v2491
    %v2645 = vmul.f32 %v2061, %v2491
    %v2646 = vmul.f32 %v2065, %v2491
    %v2647 = vmul.f32 %v2069, %v2491
    %v2648 = vmul.f32 %v2073, %v2491
    %v2649 = vmul.f32 %v2077, %v2491
    %v2650 = vmul.f32 %v2081, %v2491
    %v2651 = vmul.f32 %v2085, %v2491
    %v2652 = vmul.f32 %v2092, %v2491
    %v2653 = vmul.f32 %v2096, %v2491
    %v2654 = vmul.f32 %v2100, %v2491
    %v2655 = vmul.f32 %v2104, %v2491
    %v2656 = vmul.f32 %v2108, %v2491
    %v2657 = vmul.f32 %v2112, %v2491
    %v2658 = vmul.f32 %v2116, %v2491
    %v2659 = vmul.f32 %v2120, %v2491
    %v2660 = vmul.f32 %v2124, %v2491
    %v2661 = vmul.f32 %v2128, %v2491
    %v2662 = vmul.f32 %v2132, %v2491
    %v2663 = vmul.f32 %v2136, %v2491
    %v2664 = vmul.f32 %v2140, %v2491
    %v2665 = vmul.f32 %v2144, %v2491
    %v2666 = vmul.f32 %v2148, %v2491
    %v2667 = vmul.f32 %v2152, %v2491
    %v2668 = vmul.f32 %v2159, %v2491
    %v2669 = vmul.f32 %v2163, %v2491
    %v2670 = vmul.f32 %v2167, %v2491
    %v2671 = vmul.f32 %v2171, %v2491
    %v2672 = vmul.f32 %v2175, %v2491
    %v2673 = vmul.f32 %v2179, %v2491
    %v2674 = vmul.f32 %v2183, %v2491
    %v2675 = vmul.f32 %v2187, %v2491
    %v2676 = vmul.f32 %v2191, %v2491
    %v2677 = vmul.f32 %v2195, %v2491
    %v2678 = vmul.f32 %v2199, %v2491
    %v2679 = vmul.f32 %v2203, %v2491
    %v2680 = vmul.f32 %v2207, %v2491
    %v2681 = vmul.f32 %v2211, %v2491
    %v2682 = vmul.f32 %v2215, %v2491
    %v2683 = vmul.f32 %v2219, %v2491
    %v2684 = vmul.f32 %v2226, %v2491
    %v2685 = vmul.f32 %v2230, %v2491
    %v2686 = vmul.f32 %v2234, %v2491
    %v2687 = vmul.f32 %v2238, %v2491
    %v2688 = vmul.f32 %v2242, %v2491
    %v2689 = vmul.f32 %v2246, %v2491
    %v2690 = vmul.f32 %v2250, %v2491
    %v2691 = vmul.f32 %v2254, %v2491
    %v2692 = vmul.f32 %v2258, %v2491
    %v2693 = vmul.f32 %v2262, %v2491
    %v2694 = vmul.f32 %v2266, %v2491
    %v2695 = vmul.f32 %v2270, %v2491
    %v2696 = vmul.f32 %v2274, %v2491
    %v2697 = vmul.f32 %v2278, %v2491
    %v2698 = vmul.f32 %v2282, %v2491
    %v2699 = vmul.f32 %v2286, %v2491
    %v2700 = vmul.f32 %v2293, %v2491
    %v2701 = vmul.f32 %v2297, %v2491
    %v2702 = vmul.f32 %v2301, %v2491
    %v2703 = vmul.f32 %v2305, %v2491
    %v2704 = vmul.f32 %v2309, %v2491
    %v2705 = vmul.f32 %v2313, %v2491
    %v2706 = vmul.f32 %v2317, %v2491
    %v2707 = vmul.f32 %v2321, %v2491
    %v2708 = vmul.f32 %v2325, %v2491
    %v2709 = vmul.f32 %v2329, %v2491
    %v2710 = vmul.f32 %v2333, %v2491
    %v2711 = vmul.f32 %v2337, %v2491
    %v2712 = vmul.f32 %v2341, %v2491
    %v2713 = vmul.f32 %v2345, %v2491
    %v2714 = vmul.f32 %v2349, %v2491
    %v2715 = vmul.f32 %v2353, %v2491
    %v2716 = vmul.f32 %v2360, %v2491
    %v2717 = vmul.f32 %v2364, %v2491
    %v2718 = vmul.f32 %v2368, %v2491
    %v2719 = vmul.f32 %v2372, %v2491
    %v2720 = vmul.f32 %v2376, %v2491
    %v2721 = vmul.f32 %v2380, %v2491
    %v2722 = vmul.f32 %v2384, %v2491
    %v2723 = vmul.f32 %v2388, %v2491
    %v2724 = vmul.f32 %v2392, %v2491
    %v2725 = vmul.f32 %v2396, %v2491
    %v2726 = vmul.f32 %v2400, %v2491
    %v2727 = vmul.f32 %v2404, %v2491
    %v2728 = vmul.f32 %v2408, %v2491
    %v2729 = vmul.f32 %v2412, %v2491
    %v2730 = vmul.f32 %v2416, %v2491
    %v2731 = vmul.f32 %v2420, %v2491
    %v2732 = vmul.f32 %v2427, %v2491
    %v2733 = vmul.f32 %v2431, %v2491
    %v2734 = vmul.f32 %v2435, %v2491
    %v2735 = vmul.f32 %v2439, %v2491
    %v2736 = vmul.f32 %v2443, %v2491
    %v2737 = vmul.f32 %v2447, %v2491
    %v2738 = vmul.f32 %v2451, %v2491
    %v2739 = vmul.f32 %v2455, %v2491
    %v2740 = vmul.f32 %v2459, %v2491
    %v2741 = vmul.f32 %v2463, %v2491
    %v2742 = vmul.f32 %v2467, %v2491
    %v2743 = vmul.f32 %v2471, %v2491
    %v2744 = vmul.f32 %v2475, %v2491
    %v2745 = vmul.f32 %v2479, %v2491
    %v2746 = vmul.f32 %v2483, %v2491
    %v2747 = vmul.f32 %v2487, %v2491
    %v2748 = vadd.f32 %v1160, %v2492
    %v2749 = vadd.f32 %v1161, %v2493
    %v2750 = vadd.f32 %v1162, %v2494
    %v2751 = vadd.f32 %v1163, %v2495
    %v2752 = vadd.f32 %v1164, %v2496
    %v2753 = vadd.f32 %v1165, %v2497
    %v2754 = vadd.f32 %v1166, %v2498
    %v2755 = vadd.f32 %v1167, %v2499
    %v2756 = vadd.f32 %v1168, %v2500
    %v2757 = vadd.f32 %v1169, %v2501
    %v2758 = vadd.f32 %v1170, %v2502
    %v2759 = vadd.f32 %v1171, %v2503
    %v2760 = vadd.f32 %v1172, %v2504
    %v2761 = vadd.f32 %v1173, %v2505
    %v2762 = vadd.f32 %v1174, %v2506
    %v2763 = vadd.f32 %v1175, %v2507
    %v2764 = vadd.f32 %v1176, %v2508
    %v2765 = vadd.f32 %v1177, %v2509
    %v2766 = vadd.f32 %v1178, %v2510
    %v2767 = vadd.f32 %v1179, %v2511
    %v2768 = vadd.f32 %v1180, %v2512
    %v2769 = vadd.f32 %v1181, %v2513
    %v2770 = vadd.f32 %v1182, %v2514
    %v2771 = vadd.f32 %v1183, %v2515
    %v2772 = vadd.f32 %v1184, %v2516
    %v2773 = vadd.f32 %v1185, %v2517
    %v2774 = vadd.f32 %v1186, %v2518
    %v2775 = vadd.f32 %v1187, %v2519
    %v2776 = vadd.f32 %v1188, %v2520
    %v2777 = vadd.f32 %v1189, %v2521
    %v2778 = vadd.f32 %v1190, %v2522
    %v2779 = vadd.f32 %v1191, %v2523
    %v2780 = vadd.f32 %v1192, %v2524
    %v2781 = vadd.f32 %v1193, %v2525
    %v2782 = vadd.f32 %v1194, %v2526
    %v2783 = vadd.f32 %v1195, %v2527
    %v2784 = vadd.f32 %v1196, %v2528
    %v2785 = vadd.f32 %v1197, %v2529
    %v2786 = vadd.f32 %v1198, %v2530
    %v2787 = vadd.f32 %v1199, %v2531
    %v2788 = vadd.f32 %v1200, %v2532
    %v2789 = vadd.f32 %v1201, %v2533
    %v2790 = vadd.f32 %v1202, %v2534
    %v2791 = vadd.f32 %v1203, %v2535
    %v2792 = vadd.f32 %v1204, %v2536
    %v2793 = vadd.f32 %v1205, %v2537
    %v2794 = vadd.f32 %v1206, %v2538
    %v2795 = vadd.f32 %v1207, %v2539
    %v2796 = vadd.f32 %v1208, %v2540
    %v2797 = vadd.f32 %v1209, %v2541
    %v2798 = vadd.f32 %v1210, %v2542
    %v2799 = vadd.f32 %v1211, %v2543
    %v2800 = vadd.f32 %v1212, %v2544
    %v2801 = vadd.f32 %v1213, %v2545
    %v2802 = vadd.f32 %v1214, %v2546
    %v2803 = vadd.f32 %v1215, %v2547
    %v2804 = vadd.f32 %v1216, %v2548
    %v2805 = vadd.f32 %v1217, %v2549
    %v2806 = vadd.f32 %v1218, %v2550
    %v2807 = vadd.f32 %v1219, %v2551
    %v2808 = vadd.f32 %v1220, %v2552
    %v2809 = vadd.f32 %v1221, %v2553
    %v2810 = vadd.f32 %v1222, %v2554
    %v2811 = vadd.f32 %v1223, %v2555
    %v2812 = vadd.f32 %v1224, %v2556
    %v2813 = vadd.f32 %v1225, %v2557
    %v2814 = vadd.f32 %v1226, %v2558
    %v2815 = vadd.f32 %v1227, %v2559
    %v2816 = vadd.f32 %v1228, %v2560
    %v2817 = vadd.f32 %v1229, %v2561
    %v2818 = vadd.f32 %v1230, %v2562
    %v2819 = vadd.f32 %v1231, %v2563
    %v2820 = vadd.f32 %v1232, %v2564
    %v2821 = vadd.f32 %v1233, %v2565
    %v2822 = vadd.f32 %v1234, %v2566
    %v2823 = vadd.f32 %v1235, %v2567
    %v2824 = vadd.f32 %v1236, %v2568
    %v2825 = vadd.f32 %v1237, %v2569
    %v2826 = vadd.f32 %v1238, %v2570
    %v2827 = vadd.f32 %v1239, %v2571
    %v2828 = vadd.f32 %v1240, %v2572
    %v2829 = vadd.f32 %v1241, %v2573
    %v2830 = vadd.f32 %v1242, %v2574
    %v2831 = vadd.f32 %v1243, %v2575
    %v2832 = vadd.f32 %v1244, %v2576
    %v2833 = vadd.f32 %v1245, %v2577
    %v2834 = vadd.f32 %v1246, %v2578
    %v2835 = vadd.f32 %v1247, %v2579
    %v2836 = vadd.f32 %v1248, %v2580
    %v2837 = vadd.f32 %v1249, %v2581
    %v2838 = vadd.f32 %v1250, %v2582
    %v2839 = vadd.f32 %v1251, %v2583
    %v2840 = vadd.f32 %v1252, %v2584
    %v2841 = vadd.f32 %v1253, %v2585
    %v2842 = vadd.f32 %v1254, %v2586
    %v2843 = vadd.f32 %v1255, %v2587
    %v2844 = vadd.f32 %v1256, %v2588
    %v2845 = vadd.f32 %v1257, %v2589
    %v2846 = vadd.f32 %v1258, %v2590
    %v2847 = vadd.f32 %v1259, %v2591
    %v2848 = vadd.f32 %v1260, %v2592
    %v2849 = vadd.f32 %v1261, %v2593
    %v2850 = vadd.f32 %v1262, %v2594
    %v2851 = vadd.f32 %v1263, %v2595
    %v2852 = vadd.f32 %v1264, %v2596
    %v2853 = vadd.f32 %v1265, %v2597
    %v2854 = vadd.f32 %v1266, %v2598
    %v2855 = vadd.f32 %v1267, %v2599
    %v2856 = vadd.f32 %v1268, %v2600
    %v2857 = vadd.f32 %v1269, %v2601
    %v2858 = vadd.f32 %v1270, %v2602
    %v2859 = vadd.f32 %v1271, %v2603
    %v2860 = vadd.f32 %v1272, %v2604
    %v2861 = vadd.f32 %v1273, %v2605
    %v2862 = vadd.f32 %v1274, %v2606
    %v2863 = vadd.f32 %v1275, %v2607
    %v2864 = vadd.f32 %v1276, %v2608
    %v2865 = vadd.f32 %v1277, %v2609
    %v2866 = vadd.f32 %v1278, %v2610
    %v2867 = vadd.f32 %v1279, %v2611
    %v2868 = vadd.f32 %v1280, %v2612
    %v2869 = vadd.f32 %v1281, %v2613
    %v2870 = vadd.f32 %v1282, %v2614
    %v2871 = vadd.f32 %v1283, %v2615
    %v2872 = vadd.f32 %v1284, %v2616
    %v2873 = vadd.f32 %v1285, %v2617
    %v2874 = vadd.f32 %v1286, %v2618
    %v2875 = vadd.f32 %v1287, %v2619
    %v2876 = vadd.f32 %v1288, %v2620
    %v2877 = vadd.f32 %v1289, %v2621
    %v2878 = vadd.f32 %v1290, %v2622
    %v2879 = vadd.f32 %v1291, %v2623
    %v2880 = vadd.f32 %v1292, %v2624
    %v2881 = vadd.f32 %v1293, %v2625
    %v2882 = vadd.f32 %v1294, %v2626
    %v2883 = vadd.f32 %v1295, %v2627
    %v2884 = vadd.f32 %v1296, %v2628
    %v2885 = vadd.f32 %v1297, %v2629
    %v2886 = vadd.f32 %v1298, %v2630
    %v2887 = vadd.f32 %v1299, %v2631
    %v2888 = vadd.f32 %v1300, %v2632
    %v2889 = vadd.f32 %v1301, %v2633
    %v2890 = vadd.f32 %v1302, %v2634
    %v2891 = vadd.f32 %v1303, %v2635
    %v2892 = vadd.f32 %v1304, %v2636
    %v2893 = vadd.f32 %v1305, %v2637
    %v2894 = vadd.f32 %v1306, %v2638
    %v2895 = vadd.f32 %v1307, %v2639
    %v2896 = vadd.f32 %v1308, %v2640
    %v2897 = vadd.f32 %v1309, %v2641
    %v2898 = vadd.f32 %v1310, %v2642
    %v2899 = vadd.f32 %v1311, %v2643
    %v2900 = vadd.f32 %v1312, %v2644
    %v2901 = vadd.f32 %v1313, %v2645
    %v2902 = vadd.f32 %v1314, %v2646
    %v2903 = vadd.f32 %v1315, %v2647
    %v2904 = vadd.f32 %v1316, %v2648
    %v2905 = vadd.f32 %v1317, %v2649
    %v2906 = vadd.f32 %v1318, %v2650
    %v2907 = vadd.f32 %v1319, %v2651
    %v2908 = vadd.f32 %v1320, %v2652
    %v2909 = vadd.f32 %v1321, %v2653
    %v2910 = vadd.f32 %v1322, %v2654
    %v2911 = vadd.f32 %v1323, %v2655
    %v2912 = vadd.f32 %v1324, %v2656
    %v2913 = vadd.f32 %v1325, %v2657
    %v2914 = vadd.f32 %v1326, %v2658
    %v2915 = vadd.f32 %v1327, %v2659
    %v2916 = vadd.f32 %v1328, %v2660
    %v2917 = vadd.f32 %v1329, %v2661
    %v2918 = vadd.f32 %v1330, %v2662
    %v2919 = vadd.f32 %v1331, %v2663
    %v2920 = vadd.f32 %v1332, %v2664
    %v2921 = vadd.f32 %v1333, %v2665
    %v2922 = vadd.f32 %v1334, %v2666
    %v2923 = vadd.f32 %v1335, %v2667
    %v2924 = vadd.f32 %v1336, %v2668
    %v2925 = vadd.f32 %v1337, %v2669
    %v2926 = vadd.f32 %v1338, %v2670
    %v2927 = vadd.f32 %v1339, %v2671
    %v2928 = vadd.f32 %v1340, %v2672
    %v2929 = vadd.f32 %v1341, %v2673
    %v2930 = vadd.f32 %v1342, %v2674
    %v2931 = vadd.f32 %v1343, %v2675
    %v2932 = vadd.f32 %v1344, %v2676
    %v2933 = vadd.f32 %v1345, %v2677
    %v2934 = vadd.f32 %v1346, %v2678
    %v2935 = vadd.f32 %v1347, %v2679
    %v2936 = vadd.f32 %v1348, %v2680
    %v2937 = vadd.f32 %v1349, %v2681
    %v2938 = vadd.f32 %v1350, %v2682
    %v2939 = vadd.f32 %v1351, %v2683
    %v2940 = vadd.f32 %v1352, %v2684
    %v2941 = vadd.f32 %v1353, %v2685
    %v2942 = vadd.f32 %v1354, %v2686
    %v2943 = vadd.f32 %v1355, %v2687
    %v2944 = vadd.f32 %v1356, %v2688
    %v2945 = vadd.f32 %v1357, %v2689
    %v2946 = vadd.f32 %v1358, %v2690
    %v2947 = vadd.f32 %v1359, %v2691
    %v2948 = vadd.f32 %v1360, %v2692
    %v2949 = vadd.f32 %v1361, %v2693
    %v2950 = vadd.f32 %v1362, %v2694
    %v2951 = vadd.f32 %v1363, %v2695
    %v2952 = vadd.f32 %v1364, %v2696
    %v2953 = vadd.f32 %v1365, %v2697
    %v2954 = vadd.f32 %v1366, %v2698
    %v2955 = vadd.f32 %v1367, %v2699
    %v2956 = vadd.f32 %v1368, %v2700
    %v2957 = vadd.f32 %v1369, %v2701
    %v2958 = vadd.f32 %v1370, %v2702
    %v2959 = vadd.f32 %v1371, %v2703
    %v2960 = vadd.f32 %v1372, %v2704
    %v2961 = vadd.f32 %v1373, %v2705
    %v2962 = vadd.f32 %v1374, %v2706
    %v2963 = vadd.f32 %v1375, %v2707
    %v2964 = vadd.f32 %v1376, %v2708
    %v2965 = vadd.f32 %v1377, %v2709
    %v2966 = vadd.f32 %v1378, %v2710
    %v2967 = vadd.f32 %v1379, %v2711
    %v2968 = vadd.f32 %v1380, %v2712
    %v2969 = vadd.f32 %v1381, %v2713
    %v2970 = vadd.f32 %v1382, %v2714
    %v2971 = vadd.f32 %v1383, %v2715
    %v2972 = vadd.f32 %v1384, %v2716
    %v2973 = vadd.f32 %v1385, %v2717
    %v2974 = vadd.f32 %v1386, %v2718
    %v2975 = vadd.f32 %v1387, %v2719
    %v2976 = vadd.f32 %v1388, %v2720
    %v2977 = vadd.f32 %v1389, %v2721
    %v2978 = vadd.f32 %v1390, %v2722
    %v2979 = vadd.f32 %v1391, %v2723
    %v2980 = vadd.f32 %v1392, %v2724
    %v2981 = vadd.f32 %v1393, %v2725
    %v2982 = vadd.f32 %v1394, %v2726
    %v2983 = vadd.f32 %v1395, %v2727
    %v2984 = vadd.f32 %v1396, %v2728
    %v2985 = vadd.f32 %v1397, %v2729
    %v2986 = vadd.f32 %v1398, %v2730
    %v2987 = vadd.f32 %v1399, %v2731
    %v2988 = vadd.f32 %v1400, %v2732
    %v2989 = vadd.f32 %v1401, %v2733
    %v2990 = vadd.f32 %v1402, %v2734
    %v2991 = vadd.f32 %v1403, %v2735
    %v2992 = vadd.f32 %v1404, %v2736
    %v2993 = vadd.f32 %v1405, %v2737
    %v2994 = vadd.f32 %v1406, %v2738
    %v2995 = vadd.f32 %v1407, %v2739
    %v2996 = vadd.f32 %v1408, %v2740
    %v2997 = vadd.f32 %v1409, %v2741
    %v2998 = vadd.f32 %v1410, %v2742
    %v2999 = vadd.f32 %v1411, %v2743
    %v3000 = vadd.f32 %v1412, %v2744
    %v3001 = vadd.f32 %v1413, %v2745
    %v3002 = vadd.f32 %v1414, %v2746
    %v3003 = vadd.f32 %v1415, %v2747
    %v3004 = vlaneseq
    %v3005 = vshrl.u32 %v3004, 7
    %v3006 = vsub.s32 0, %v3005
    %v3007 = vrot.slane %v79, %v3006
    %3009 = vbcast.lane.b32.xlu0 %v3007, 256
    %v3010 = vpop.permute.xlu0 %3009
    %s3012 = sor.u32 256, 8
    %3013 = vbcast.lane.b32.xlu0 %v3007, %s3012
    %v3014 = vpop.permute.xlu0 %3013
    %s3016 = sor.u32 256, 16
    %3017 = vbcast.lane.b32.xlu0 %v3007, %s3016
    %v3018 = vpop.permute.xlu0 %3017
    %s3020 = sor.u32 256, 24
    %3021 = vbcast.lane.b32.xlu0 %v3007, %s3020
    %v3022 = vpop.permute.xlu0 %3021
    %s3024 = sor.u32 256, 32
    %3025 = vbcast.lane.b32.xlu0 %v3007, %s3024
    %v3026 = vpop.permute.xlu0 %3025
    %s3028 = sor.u32 256, 40
    %3029 = vbcast.lane.b32.xlu0 %v3007, %s3028
    %v3030 = vpop.permute.xlu0 %3029
    %s3032 = sor.u32 256, 48
    %3033 = vbcast.lane.b32.xlu0 %v3007, %s3032
    %v3034 = vpop.permute.xlu0 %3033
    %s3036 = sor.u32 256, 56
    %3037 = vbcast.lane.b32.xlu0 %v3007, %s3036
    %v3038 = vpop.permute.xlu0 %3037
    %s3040 = sor.u32 256, 64
    %3041 = vbcast.lane.b32.xlu0 %v3007, %s3040
    %v3042 = vpop.permute.xlu0 %3041
    %s3044 = sor.u32 256, 72
    %3045 = vbcast.lane.b32.xlu0 %v3007, %s3044
    %v3046 = vpop.permute.xlu0 %3045
    %s3048 = sor.u32 256, 80
    %3049 = vbcast.lane.b32.xlu0 %v3007, %s3048
    %v3050 = vpop.permute.xlu0 %3049
    %s3052 = sor.u32 256, 88
    %3053 = vbcast.lane.b32.xlu0 %v3007, %s3052
    %v3054 = vpop.permute.xlu0 %3053
    %s3056 = sor.u32 256, 96
    %3057 = vbcast.lane.b32.xlu0 %v3007, %s3056
    %v3058 = vpop.permute.xlu0 %3057
    %s3060 = sor.u32 256, 104
    %3061 = vbcast.lane.b32.xlu0 %v3007, %s3060
    %v3062 = vpop.permute.xlu0 %3061
    %s3064 = sor.u32 256, 112
    %3065 = vbcast.lane.b32.xlu0 %v3007, %s3064
    %v3066 = vpop.permute.xlu0 %3065
    %s3068 = sor.u32 256, 120
    %3069 = vbcast.lane.b32.xlu0 %v3007, %s3068
    %v3070 = vpop.permute.xlu0 %3069
    %v3071 = vlaneseq
    %v3072 = vshrl.u32 %v3071, 7
    %v3073 = vsub.s32 0, %v3072
    %v3074 = vrot.slane %v80, %v3073
    %3076 = vbcast.lane.b32.xlu0 %v3074, 256
    %v3077 = vpop.permute.xlu0 %3076
    %s3079 = sor.u32 256, 8
    %3080 = vbcast.lane.b32.xlu0 %v3074, %s3079
    %v3081 = vpop.permute.xlu0 %3080
    %s3083 = sor.u32 256, 16
    %3084 = vbcast.lane.b32.xlu0 %v3074, %s3083
    %v3085 = vpop.permute.xlu0 %3084
    %s3087 = sor.u32 256, 24
    %3088 = vbcast.lane.b32.xlu0 %v3074, %s3087
    %v3089 = vpop.permute.xlu0 %3088
    %s3091 = sor.u32 256, 32
    %3092 = vbcast.lane.b32.xlu0 %v3074, %s3091
    %v3093 = vpop.permute.xlu0 %3092
    %s3095 = sor.u32 256, 40
    %3096 = vbcast.lane.b32.xlu0 %v3074, %s3095
    %v3097 = vpop.permute.xlu0 %3096
    %s3099 = sor.u32 256, 48
    %3100 = vbcast.lane.b32.xlu0 %v3074, %s3099
    %v3101 = vpop.permute.xlu0 %3100
    %s3103 = sor.u32 256, 56
    %3104 = vbcast.lane.b32.xlu0 %v3074, %s3103
    %v3105 = vpop.permute.xlu0 %3104
    %s3107 = sor.u32 256, 64
    %3108 = vbcast.lane.b32.xlu0 %v3074, %s3107
    %v3109 = vpop.permute.xlu0 %3108
    %s3111 = sor.u32 256, 72
    %3112 = vbcast.lane.b32.xlu0 %v3074, %s3111
    %v3113 = vpop.permute.xlu0 %3112
    %s3115 = sor.u32 256, 80
    %3116 = vbcast.lane.b32.xlu0 %v3074, %s3115
    %v3117 = vpop.permute.xlu0 %3116
    %s3119 = sor.u32 256, 88
    %3120 = vbcast.lane.b32.xlu0 %v3074, %s3119
    %v3121 = vpop.permute.xlu0 %3120
    %s3123 = sor.u32 256, 96
    %3124 = vbcast.lane.b32.xlu0 %v3074, %s3123
    %v3125 = vpop.permute.xlu0 %3124
    %s3127 = sor.u32 256, 104
    %3128 = vbcast.lane.b32.xlu0 %v3074, %s3127
    %v3129 = vpop.permute.xlu0 %3128
    %s3131 = sor.u32 256, 112
    %3132 = vbcast.lane.b32.xlu0 %v3074, %s3131
    %v3133 = vpop.permute.xlu0 %3132
    %s3135 = sor.u32 256, 120
    %3136 = vbcast.lane.b32.xlu0 %v3074, %s3135
    %v3137 = vpop.permute.xlu0 %3136
    %v3138 = vlaneseq
    %v3139 = vshrl.u32 %v3138, 7
    %v3140 = vsub.s32 1, %v3139
    %v3141 = vrot.slane %v79, %v3140
    %3143 = vbcast.lane.b32.xlu0 %v3141, 256
    %v3144 = vpop.permute.xlu0 %3143
    %s3146 = sor.u32 256, 8
    %3147 = vbcast.lane.b32.xlu0 %v3141, %s3146
    %v3148 = vpop.permute.xlu0 %3147
    %s3150 = sor.u32 256, 16
    %3151 = vbcast.lane.b32.xlu0 %v3141, %s3150
    %v3152 = vpop.permute.xlu0 %3151
    %s3154 = sor.u32 256, 24
    %3155 = vbcast.lane.b32.xlu0 %v3141, %s3154
    %v3156 = vpop.permute.xlu0 %3155
    %s3158 = sor.u32 256, 32
    %3159 = vbcast.lane.b32.xlu0 %v3141, %s3158
    %v3160 = vpop.permute.xlu0 %3159
    %s3162 = sor.u32 256, 40
    %3163 = vbcast.lane.b32.xlu0 %v3141, %s3162
    %v3164 = vpop.permute.xlu0 %3163
    %s3166 = sor.u32 256, 48
    %3167 = vbcast.lane.b32.xlu0 %v3141, %s3166
    %v3168 = vpop.permute.xlu0 %3167
    %s3170 = sor.u32 256, 56
    %3171 = vbcast.lane.b32.xlu0 %v3141, %s3170
    %v3172 = vpop.permute.xlu0 %3171
    %s3174 = sor.u32 256, 64
    %3175 = vbcast.lane.b32.xlu0 %v3141, %s3174
    %v3176 = vpop.permute.xlu0 %3175
    %s3178 = sor.u32 256, 72
    %3179 = vbcast.lane.b32.xlu0 %v3141, %s3178
    %v3180 = vpop.permute.xlu0 %3179
    %s3182 = sor.u32 256, 80
    %3183 = vbcast.lane.b32.xlu0 %v3141, %s3182
    %v3184 = vpop.permute.xlu0 %3183
    %s3186 = sor.u32 256, 88
    %3187 = vbcast.lane.b32.xlu0 %v3141, %s3186
    %v3188 = vpop.permute.xlu0 %3187
    %s3190 = sor.u32 256, 96
    %3191 = vbcast.lane.b32.xlu0 %v3141, %s3190
    %v3192 = vpop.permute.xlu0 %3191
    %s3194 = sor.u32 256, 104
    %3195 = vbcast.lane.b32.xlu0 %v3141, %s3194
    %v3196 = vpop.permute.xlu0 %3195
    %s3198 = sor.u32 256, 112
    %3199 = vbcast.lane.b32.xlu0 %v3141, %s3198
    %v3200 = vpop.permute.xlu0 %3199
    %s3202 = sor.u32 256, 120
    %3203 = vbcast.lane.b32.xlu0 %v3141, %s3202
    %v3204 = vpop.permute.xlu0 %3203
    %v3205 = vlaneseq
    %v3206 = vshrl.u32 %v3205, 7
    %v3207 = vsub.s32 1, %v3206
    %v3208 = vrot.slane %v80, %v3207
    %3210 = vbcast.lane.b32.xlu0 %v3208, 256
    %v3211 = vpop.permute.xlu0 %3210
    %s3213 = sor.u32 256, 8
    %3214 = vbcast.lane.b32.xlu0 %v3208, %s3213
    %v3215 = vpop.permute.xlu0 %3214
    %s3217 = sor.u32 256, 16
    %3218 = vbcast.lane.b32.xlu0 %v3208, %s3217
    %v3219 = vpop.permute.xlu0 %3218
    %s3221 = sor.u32 256, 24
    %3222 = vbcast.lane.b32.xlu0 %v3208, %s3221
    %v3223 = vpop.permute.xlu0 %3222
    %s3225 = sor.u32 256, 32
    %3226 = vbcast.lane.b32.xlu0 %v3208, %s3225
    %v3227 = vpop.permute.xlu0 %3226
    %s3229 = sor.u32 256, 40
    %3230 = vbcast.lane.b32.xlu0 %v3208, %s3229
    %v3231 = vpop.permute.xlu0 %3230
    %s3233 = sor.u32 256, 48
    %3234 = vbcast.lane.b32.xlu0 %v3208, %s3233
    %v3235 = vpop.permute.xlu0 %3234
    %s3237 = sor.u32 256, 56
    %3238 = vbcast.lane.b32.xlu0 %v3208, %s3237
    %v3239 = vpop.permute.xlu0 %3238
    %s3241 = sor.u32 256, 64
    %3242 = vbcast.lane.b32.xlu0 %v3208, %s3241
    %v3243 = vpop.permute.xlu0 %3242
    %s3245 = sor.u32 256, 72
    %3246 = vbcast.lane.b32.xlu0 %v3208, %s3245
    %v3247 = vpop.permute.xlu0 %3246
    %s3249 = sor.u32 256, 80
    %3250 = vbcast.lane.b32.xlu0 %v3208, %s3249
    %v3251 = vpop.permute.xlu0 %3250
    %s3253 = sor.u32 256, 88
    %3254 = vbcast.lane.b32.xlu0 %v3208, %s3253
    %v3255 = vpop.permute.xlu0 %3254
    %s3257 = sor.u32 256, 96
    %3258 = vbcast.lane.b32.xlu0 %v3208, %s3257
    %v3259 = vpop.permute.xlu0 %3258
    %s3261 = sor.u32 256, 104
    %3262 = vbcast.lane.b32.xlu0 %v3208, %s3261
    %v3263 = vpop.permute.xlu0 %3262
    %s3265 = sor.u32 256, 112
    %3266 = vbcast.lane.b32.xlu0 %v3208, %s3265
    %v3267 = vpop.permute.xlu0 %3266
    %s3269 = sor.u32 256, 120
    %3270 = vbcast.lane.b32.xlu0 %v3208, %s3269
    %v3271 = vpop.permute.xlu0 %3270
    %v3272 = vlaneseq
    %v3273 = vshrl.u32 %v3272, 7
    %v3274 = vsub.s32 2, %v3273
    %v3275 = vrot.slane %v79, %v3274
    %3277 = vbcast.lane.b32.xlu0 %v3275, 256
    %v3278 = vpop.permute.xlu0 %3277
    %s3280 = sor.u32 256, 8
    %3281 = vbcast.lane.b32.xlu0 %v3275, %s3280
    %v3282 = vpop.permute.xlu0 %3281
    %s3284 = sor.u32 256, 16
    %3285 = vbcast.lane.b32.xlu0 %v3275, %s3284
    %v3286 = vpop.permute.xlu0 %3285
    %s3288 = sor.u32 256, 24
    %3289 = vbcast.lane.b32.xlu0 %v3275, %s3288
    %v3290 = vpop.permute.xlu0 %3289
    %s3292 = sor.u32 256, 32
    %3293 = vbcast.lane.b32.xlu0 %v3275, %s3292
    %v3294 = vpop.permute.xlu0 %3293
    %s3296 = sor.u32 256, 40
    %3297 = vbcast.lane.b32.xlu0 %v3275, %s3296
    %v3298 = vpop.permute.xlu0 %3297
    %s3300 = sor.u32 256, 48
    %3301 = vbcast.lane.b32.xlu0 %v3275, %s3300
    %v3302 = vpop.permute.xlu0 %3301
    %s3304 = sor.u32 256, 56
    %3305 = vbcast.lane.b32.xlu0 %v3275, %s3304
    %v3306 = vpop.permute.xlu0 %3305
    %s3308 = sor.u32 256, 64
    %3309 = vbcast.lane.b32.xlu0 %v3275, %s3308
    %v3310 = vpop.permute.xlu0 %3309
    %s3312 = sor.u32 256, 72
    %3313 = vbcast.lane.b32.xlu0 %v3275, %s3312
    %v3314 = vpop.permute.xlu0 %3313
    %s3316 = sor.u32 256, 80
    %3317 = vbcast.lane.b32.xlu0 %v3275, %s3316
    %v3318 = vpop.permute.xlu0 %3317
    %s3320 = sor.u32 256, 88
    %3321 = vbcast.lane.b32.xlu0 %v3275, %s3320
    %v3322 = vpop.permute.xlu0 %3321
    %s3324 = sor.u32 256, 96
    %3325 = vbcast.lane.b32.xlu0 %v3275, %s3324
    %v3326 = vpop.permute.xlu0 %3325
    %s3328 = sor.u32 256, 104
    %3329 = vbcast.lane.b32.xlu0 %v3275, %s3328
    %v3330 = vpop.permute.xlu0 %3329
    %s3332 = sor.u32 256, 112
    %3333 = vbcast.lane.b32.xlu0 %v3275, %s3332
    %v3334 = vpop.permute.xlu0 %3333
    %s3336 = sor.u32 256, 120
    %3337 = vbcast.lane.b32.xlu0 %v3275, %s3336
    %v3338 = vpop.permute.xlu0 %3337
    %v3339 = vlaneseq
    %v3340 = vshrl.u32 %v3339, 7
    %v3341 = vsub.s32 2, %v3340
    %v3342 = vrot.slane %v80, %v3341
    %3344 = vbcast.lane.b32.xlu0 %v3342, 256
    %v3345 = vpop.permute.xlu0 %3344
    %s3347 = sor.u32 256, 8
    %3348 = vbcast.lane.b32.xlu0 %v3342, %s3347
    %v3349 = vpop.permute.xlu0 %3348
    %s3351 = sor.u32 256, 16
    %3352 = vbcast.lane.b32.xlu0 %v3342, %s3351
    %v3353 = vpop.permute.xlu0 %3352
    %s3355 = sor.u32 256, 24
    %3356 = vbcast.lane.b32.xlu0 %v3342, %s3355
    %v3357 = vpop.permute.xlu0 %3356
    %s3359 = sor.u32 256, 32
    %3360 = vbcast.lane.b32.xlu0 %v3342, %s3359
    %v3361 = vpop.permute.xlu0 %3360
    %s3363 = sor.u32 256, 40
    %3364 = vbcast.lane.b32.xlu0 %v3342, %s3363
    %v3365 = vpop.permute.xlu0 %3364
    %s3367 = sor.u32 256, 48
    %3368 = vbcast.lane.b32.xlu0 %v3342, %s3367
    %v3369 = vpop.permute.xlu0 %3368
    %s3371 = sor.u32 256, 56
    %3372 = vbcast.lane.b32.xlu0 %v3342, %s3371
    %v3373 = vpop.permute.xlu0 %3372
    %s3375 = sor.u32 256, 64
    %3376 = vbcast.lane.b32.xlu0 %v3342, %s3375
    %v3377 = vpop.permute.xlu0 %3376
    %s3379 = sor.u32 256, 72
    %3380 = vbcast.lane.b32.xlu0 %v3342, %s3379
    %v3381 = vpop.permute.xlu0 %3380
    %s3383 = sor.u32 256, 80
    %3384 = vbcast.lane.b32.xlu0 %v3342, %s3383
    %v3385 = vpop.permute.xlu0 %3384
    %s3387 = sor.u32 256, 88
    %3388 = vbcast.lane.b32.xlu0 %v3342, %s3387
    %v3389 = vpop.permute.xlu0 %3388
    %s3391 = sor.u32 256, 96
    %3392 = vbcast.lane.b32.xlu0 %v3342, %s3391
    %v3393 = vpop.permute.xlu0 %3392
    %s3395 = sor.u32 256, 104
    %3396 = vbcast.lane.b32.xlu0 %v3342, %s3395
    %v3397 = vpop.permute.xlu0 %3396
    %s3399 = sor.u32 256, 112
    %3400 = vbcast.lane.b32.xlu0 %v3342, %s3399
    %v3401 = vpop.permute.xlu0 %3400
    %s3403 = sor.u32 256, 120
    %3404 = vbcast.lane.b32.xlu0 %v3342, %s3403
    %v3405 = vpop.permute.xlu0 %3404
    %v3406 = vlaneseq
    %v3407 = vshrl.u32 %v3406, 7
    %v3408 = vsub.s32 3, %v3407
    %v3409 = vrot.slane %v79, %v3408
    %3411 = vbcast.lane.b32.xlu0 %v3409, 256
    %v3412 = vpop.permute.xlu0 %3411
    %s3414 = sor.u32 256, 8
    %3415 = vbcast.lane.b32.xlu0 %v3409, %s3414
    %v3416 = vpop.permute.xlu0 %3415
    %s3418 = sor.u32 256, 16
    %3419 = vbcast.lane.b32.xlu0 %v3409, %s3418
    %v3420 = vpop.permute.xlu0 %3419
    %s3422 = sor.u32 256, 24
    %3423 = vbcast.lane.b32.xlu0 %v3409, %s3422
    %v3424 = vpop.permute.xlu0 %3423
    %s3426 = sor.u32 256, 32
    %3427 = vbcast.lane.b32.xlu0 %v3409, %s3426
    %v3428 = vpop.permute.xlu0 %3427
    %s3430 = sor.u32 256, 40
    %3431 = vbcast.lane.b32.xlu0 %v3409, %s3430
    %v3432 = vpop.permute.xlu0 %3431
    %s3434 = sor.u32 256, 48
    %3435 = vbcast.lane.b32.xlu0 %v3409, %s3434
    %v3436 = vpop.permute.xlu0 %3435
    %s3438 = sor.u32 256, 56
    %3439 = vbcast.lane.b32.xlu0 %v3409, %s3438
    %v3440 = vpop.permute.xlu0 %3439
    %s3442 = sor.u32 256, 64
    %3443 = vbcast.lane.b32.xlu0 %v3409, %s3442
    %v3444 = vpop.permute.xlu0 %3443
    %s3446 = sor.u32 256, 72
    %3447 = vbcast.lane.b32.xlu0 %v3409, %s3446
    %v3448 = vpop.permute.xlu0 %3447
    %s3450 = sor.u32 256, 80
    %3451 = vbcast.lane.b32.xlu0 %v3409, %s3450
    %v3452 = vpop.permute.xlu0 %3451
    %s3454 = sor.u32 256, 88
    %3455 = vbcast.lane.b32.xlu0 %v3409, %s3454
    %v3456 = vpop.permute.xlu0 %3455
    %s3458 = sor.u32 256, 96
    %3459 = vbcast.lane.b32.xlu0 %v3409, %s3458
    %v3460 = vpop.permute.xlu0 %3459
    %s3462 = sor.u32 256, 104
    %3463 = vbcast.lane.b32.xlu0 %v3409, %s3462
    %v3464 = vpop.permute.xlu0 %3463
    %s3466 = sor.u32 256, 112
    %3467 = vbcast.lane.b32.xlu0 %v3409, %s3466
    %v3468 = vpop.permute.xlu0 %3467
    %s3470 = sor.u32 256, 120
    %3471 = vbcast.lane.b32.xlu0 %v3409, %s3470
    %v3472 = vpop.permute.xlu0 %3471
    %v3473 = vlaneseq
    %v3474 = vshrl.u32 %v3473, 7
    %v3475 = vsub.s32 3, %v3474
    %v3476 = vrot.slane %v80, %v3475
    %3478 = vbcast.lane.b32.xlu0 %v3476, 256
    %v3479 = vpop.permute.xlu0 %3478
    %s3481 = sor.u32 256, 8
    %3482 = vbcast.lane.b32.xlu0 %v3476, %s3481
    %v3483 = vpop.permute.xlu0 %3482
    %s3485 = sor.u32 256, 16
    %3486 = vbcast.lane.b32.xlu0 %v3476, %s3485
    %v3487 = vpop.permute.xlu0 %3486
    %s3489 = sor.u32 256, 24
    %3490 = vbcast.lane.b32.xlu0 %v3476, %s3489
    %v3491 = vpop.permute.xlu0 %3490
    %s3493 = sor.u32 256, 32
    %3494 = vbcast.lane.b32.xlu0 %v3476, %s3493
    %v3495 = vpop.permute.xlu0 %3494
    %s3497 = sor.u32 256, 40
    %3498 = vbcast.lane.b32.xlu0 %v3476, %s3497
    %v3499 = vpop.permute.xlu0 %3498
    %s3501 = sor.u32 256, 48
    %3502 = vbcast.lane.b32.xlu0 %v3476, %s3501
    %v3503 = vpop.permute.xlu0 %3502
    %s3505 = sor.u32 256, 56
    %3506 = vbcast.lane.b32.xlu0 %v3476, %s3505
    %v3507 = vpop.permute.xlu0 %3506
    %s3509 = sor.u32 256, 64
    %3510 = vbcast.lane.b32.xlu0 %v3476, %s3509
    %v3511 = vpop.permute.xlu0 %3510
    %s3513 = sor.u32 256, 72
    %3514 = vbcast.lane.b32.xlu0 %v3476, %s3513
    %v3515 = vpop.permute.xlu0 %3514
    %s3517 = sor.u32 256, 80
    %3518 = vbcast.lane.b32.xlu0 %v3476, %s3517
    %v3519 = vpop.permute.xlu0 %3518
    %s3521 = sor.u32 256, 88
    %3522 = vbcast.lane.b32.xlu0 %v3476, %s3521
    %v3523 = vpop.permute.xlu0 %3522
    %s3525 = sor.u32 256, 96
    %3526 = vbcast.lane.b32.xlu0 %v3476, %s3525
    %v3527 = vpop.permute.xlu0 %3526
    %s3529 = sor.u32 256, 104
    %3530 = vbcast.lane.b32.xlu0 %v3476, %s3529
    %v3531 = vpop.permute.xlu0 %3530
    %s3533 = sor.u32 256, 112
    %3534 = vbcast.lane.b32.xlu0 %v3476, %s3533
    %v3535 = vpop.permute.xlu0 %3534
    %s3537 = sor.u32 256, 120
    %3538 = vbcast.lane.b32.xlu0 %v3476, %s3537
    %v3539 = vpop.permute.xlu0 %3538
    %v3540 = vlaneseq
    %v3541 = vshrl.u32 %v3540, 7
    %v3542 = vsub.s32 4, %v3541
    %v3543 = vrot.slane %v79, %v3542
    %3545 = vbcast.lane.b32.xlu0 %v3543, 256
    %v3546 = vpop.permute.xlu0 %3545
    %s3548 = sor.u32 256, 8
    %3549 = vbcast.lane.b32.xlu0 %v3543, %s3548
    %v3550 = vpop.permute.xlu0 %3549
    %s3552 = sor.u32 256, 16
    %3553 = vbcast.lane.b32.xlu0 %v3543, %s3552
    %v3554 = vpop.permute.xlu0 %3553
    %s3556 = sor.u32 256, 24
    %3557 = vbcast.lane.b32.xlu0 %v3543, %s3556
    %v3558 = vpop.permute.xlu0 %3557
    %s3560 = sor.u32 256, 32
    %3561 = vbcast.lane.b32.xlu0 %v3543, %s3560
    %v3562 = vpop.permute.xlu0 %3561
    %s3564 = sor.u32 256, 40
    %3565 = vbcast.lane.b32.xlu0 %v3543, %s3564
    %v3566 = vpop.permute.xlu0 %3565
    %s3568 = sor.u32 256, 48
    %3569 = vbcast.lane.b32.xlu0 %v3543, %s3568
    %v3570 = vpop.permute.xlu0 %3569
    %s3572 = sor.u32 256, 56
    %3573 = vbcast.lane.b32.xlu0 %v3543, %s3572
    %v3574 = vpop.permute.xlu0 %3573
    %s3576 = sor.u32 256, 64
    %3577 = vbcast.lane.b32.xlu0 %v3543, %s3576
    %v3578 = vpop.permute.xlu0 %3577
    %s3580 = sor.u32 256, 72
    %3581 = vbcast.lane.b32.xlu0 %v3543, %s3580
    %v3582 = vpop.permute.xlu0 %3581
    %s3584 = sor.u32 256, 80
    %3585 = vbcast.lane.b32.xlu0 %v3543, %s3584
    %v3586 = vpop.permute.xlu0 %3585
    %s3588 = sor.u32 256, 88
    %3589 = vbcast.lane.b32.xlu0 %v3543, %s3588
    %v3590 = vpop.permute.xlu0 %3589
    %s3592 = sor.u32 256, 96
    %3593 = vbcast.lane.b32.xlu0 %v3543, %s3592
    %v3594 = vpop.permute.xlu0 %3593
    %s3596 = sor.u32 256, 104
    %3597 = vbcast.lane.b32.xlu0 %v3543, %s3596
    %v3598 = vpop.permute.xlu0 %3597
    %s3600 = sor.u32 256, 112
    %3601 = vbcast.lane.b32.xlu0 %v3543, %s3600
    %v3602 = vpop.permute.xlu0 %3601
    %s3604 = sor.u32 256, 120
    %3605 = vbcast.lane.b32.xlu0 %v3543, %s3604
    %v3606 = vpop.permute.xlu0 %3605
    %v3607 = vlaneseq
    %v3608 = vshrl.u32 %v3607, 7
    %v3609 = vsub.s32 4, %v3608
    %v3610 = vrot.slane %v80, %v3609
    %3612 = vbcast.lane.b32.xlu0 %v3610, 256
    %v3613 = vpop.permute.xlu0 %3612
    %s3615 = sor.u32 256, 8
    %3616 = vbcast.lane.b32.xlu0 %v3610, %s3615
    %v3617 = vpop.permute.xlu0 %3616
    %s3619 = sor.u32 256, 16
    %3620 = vbcast.lane.b32.xlu0 %v3610, %s3619
    %v3621 = vpop.permute.xlu0 %3620
    %s3623 = sor.u32 256, 24
    %3624 = vbcast.lane.b32.xlu0 %v3610, %s3623
    %v3625 = vpop.permute.xlu0 %3624
    %s3627 = sor.u32 256, 32
    %3628 = vbcast.lane.b32.xlu0 %v3610, %s3627
    %v3629 = vpop.permute.xlu0 %3628
    %s3631 = sor.u32 256, 40
    %3632 = vbcast.lane.b32.xlu0 %v3610, %s3631
    %v3633 = vpop.permute.xlu0 %3632
    %s3635 = sor.u32 256, 48
    %3636 = vbcast.lane.b32.xlu0 %v3610, %s3635
    %v3637 = vpop.permute.xlu0 %3636
    %s3639 = sor.u32 256, 56
    %3640 = vbcast.lane.b32.xlu0 %v3610, %s3639
    %v3641 = vpop.permute.xlu0 %3640
    %s3643 = sor.u32 256, 64
    %3644 = vbcast.lane.b32.xlu0 %v3610, %s3643
    %v3645 = vpop.permute.xlu0 %3644
    %s3647 = sor.u32 256, 72
    %3648 = vbcast.lane.b32.xlu0 %v3610, %s3647
    %v3649 = vpop.permute.xlu0 %3648
    %s3651 = sor.u32 256, 80
    %3652 = vbcast.lane.b32.xlu0 %v3610, %s3651
    %v3653 = vpop.permute.xlu0 %3652
    %s3655 = sor.u32 256, 88
    %3656 = vbcast.lane.b32.xlu0 %v3610, %s3655
    %v3657 = vpop.permute.xlu0 %3656
    %s3659 = sor.u32 256, 96
    %3660 = vbcast.lane.b32.xlu0 %v3610, %s3659
    %v3661 = vpop.permute.xlu0 %3660
    %s3663 = sor.u32 256, 104
    %3664 = vbcast.lane.b32.xlu0 %v3610, %s3663
    %v3665 = vpop.permute.xlu0 %3664
    %s3667 = sor.u32 256, 112
    %3668 = vbcast.lane.b32.xlu0 %v3610, %s3667
    %v3669 = vpop.permute.xlu0 %3668
    %s3671 = sor.u32 256, 120
    %3672 = vbcast.lane.b32.xlu0 %v3610, %s3671
    %v3673 = vpop.permute.xlu0 %3672
    %v3674 = vlaneseq
    %v3675 = vshrl.u32 %v3674, 7
    %v3676 = vsub.s32 5, %v3675
    %v3677 = vrot.slane %v79, %v3676
    %3679 = vbcast.lane.b32.xlu0 %v3677, 256
    %v3680 = vpop.permute.xlu0 %3679
    %s3682 = sor.u32 256, 8
    %3683 = vbcast.lane.b32.xlu0 %v3677, %s3682
    %v3684 = vpop.permute.xlu0 %3683
    %s3686 = sor.u32 256, 16
    %3687 = vbcast.lane.b32.xlu0 %v3677, %s3686
    %v3688 = vpop.permute.xlu0 %3687
    %s3690 = sor.u32 256, 24
    %3691 = vbcast.lane.b32.xlu0 %v3677, %s3690
    %v3692 = vpop.permute.xlu0 %3691
    %s3694 = sor.u32 256, 32
    %3695 = vbcast.lane.b32.xlu0 %v3677, %s3694
    %v3696 = vpop.permute.xlu0 %3695
    %s3698 = sor.u32 256, 40
    %3699 = vbcast.lane.b32.xlu0 %v3677, %s3698
    %v3700 = vpop.permute.xlu0 %3699
    %s3702 = sor.u32 256, 48
    %3703 = vbcast.lane.b32.xlu0 %v3677, %s3702
    %v3704 = vpop.permute.xlu0 %3703
    %s3706 = sor.u32 256, 56
    %3707 = vbcast.lane.b32.xlu0 %v3677, %s3706
    %v3708 = vpop.permute.xlu0 %3707
    %s3710 = sor.u32 256, 64
    %3711 = vbcast.lane.b32.xlu0 %v3677, %s3710
    %v3712 = vpop.permute.xlu0 %3711
    %s3714 = sor.u32 256, 72
    %3715 = vbcast.lane.b32.xlu0 %v3677, %s3714
    %v3716 = vpop.permute.xlu0 %3715
    %s3718 = sor.u32 256, 80
    %3719 = vbcast.lane.b32.xlu0 %v3677, %s3718
    %v3720 = vpop.permute.xlu0 %3719
    %s3722 = sor.u32 256, 88
    %3723 = vbcast.lane.b32.xlu0 %v3677, %s3722
    %v3724 = vpop.permute.xlu0 %3723
    %s3726 = sor.u32 256, 96
    %3727 = vbcast.lane.b32.xlu0 %v3677, %s3726
    %v3728 = vpop.permute.xlu0 %3727
    %s3730 = sor.u32 256, 104
    %3731 = vbcast.lane.b32.xlu0 %v3677, %s3730
    %v3732 = vpop.permute.xlu0 %3731
    %s3734 = sor.u32 256, 112
    %3735 = vbcast.lane.b32.xlu0 %v3677, %s3734
    %v3736 = vpop.permute.xlu0 %3735
    %s3738 = sor.u32 256, 120
    %3739 = vbcast.lane.b32.xlu0 %v3677, %s3738
    %v3740 = vpop.permute.xlu0 %3739
    %v3741 = vlaneseq
    %v3742 = vshrl.u32 %v3741, 7
    %v3743 = vsub.s32 5, %v3742
    %v3744 = vrot.slane %v80, %v3743
    %3746 = vbcast.lane.b32.xlu0 %v3744, 256
    %v3747 = vpop.permute.xlu0 %3746
    %s3749 = sor.u32 256, 8
    %3750 = vbcast.lane.b32.xlu0 %v3744, %s3749
    %v3751 = vpop.permute.xlu0 %3750
    %s3753 = sor.u32 256, 16
    %3754 = vbcast.lane.b32.xlu0 %v3744, %s3753
    %v3755 = vpop.permute.xlu0 %3754
    %s3757 = sor.u32 256, 24
    %3758 = vbcast.lane.b32.xlu0 %v3744, %s3757
    %v3759 = vpop.permute.xlu0 %3758
    %s3761 = sor.u32 256, 32
    %3762 = vbcast.lane.b32.xlu0 %v3744, %s3761
    %v3763 = vpop.permute.xlu0 %3762
    %s3765 = sor.u32 256, 40
    %3766 = vbcast.lane.b32.xlu0 %v3744, %s3765
    %v3767 = vpop.permute.xlu0 %3766
    %s3769 = sor.u32 256, 48
    %3770 = vbcast.lane.b32.xlu0 %v3744, %s3769
    %v3771 = vpop.permute.xlu0 %3770
    %s3773 = sor.u32 256, 56
    %3774 = vbcast.lane.b32.xlu0 %v3744, %s3773
    %v3775 = vpop.permute.xlu0 %3774
    %s3777 = sor.u32 256, 64
    %3778 = vbcast.lane.b32.xlu0 %v3744, %s3777
    %v3779 = vpop.permute.xlu0 %3778
    %s3781 = sor.u32 256, 72
    %3782 = vbcast.lane.b32.xlu0 %v3744, %s3781
    %v3783 = vpop.permute.xlu0 %3782
    %s3785 = sor.u32 256, 80
    %3786 = vbcast.lane.b32.xlu0 %v3744, %s3785
    %v3787 = vpop.permute.xlu0 %3786
    %s3789 = sor.u32 256, 88
    %3790 = vbcast.lane.b32.xlu0 %v3744, %s3789
    %v3791 = vpop.permute.xlu0 %3790
    %s3793 = sor.u32 256, 96
    %3794 = vbcast.lane.b32.xlu0 %v3744, %s3793
    %v3795 = vpop.permute.xlu0 %3794
    %s3797 = sor.u32 256, 104
    %3798 = vbcast.lane.b32.xlu0 %v3744, %s3797
    %v3799 = vpop.permute.xlu0 %3798
    %s3801 = sor.u32 256, 112
    %3802 = vbcast.lane.b32.xlu0 %v3744, %s3801
    %v3803 = vpop.permute.xlu0 %3802
    %s3805 = sor.u32 256, 120
    %3806 = vbcast.lane.b32.xlu0 %v3744, %s3805
    %v3807 = vpop.permute.xlu0 %3806
    %v3808 = vlaneseq
    %v3809 = vshrl.u32 %v3808, 7
    %v3810 = vsub.s32 6, %v3809
    %v3811 = vrot.slane %v79, %v3810
    %3813 = vbcast.lane.b32.xlu0 %v3811, 256
    %v3814 = vpop.permute.xlu0 %3813
    %s3816 = sor.u32 256, 8
    %3817 = vbcast.lane.b32.xlu0 %v3811, %s3816
    %v3818 = vpop.permute.xlu0 %3817
    %s3820 = sor.u32 256, 16
    %3821 = vbcast.lane.b32.xlu0 %v3811, %s3820
    %v3822 = vpop.permute.xlu0 %3821
    %s3824 = sor.u32 256, 24
    %3825 = vbcast.lane.b32.xlu0 %v3811, %s3824
    %v3826 = vpop.permute.xlu0 %3825
    %s3828 = sor.u32 256, 32
    %3829 = vbcast.lane.b32.xlu0 %v3811, %s3828
    %v3830 = vpop.permute.xlu0 %3829
    %s3832 = sor.u32 256, 40
    %3833 = vbcast.lane.b32.xlu0 %v3811, %s3832
    %v3834 = vpop.permute.xlu0 %3833
    %s3836 = sor.u32 256, 48
    %3837 = vbcast.lane.b32.xlu0 %v3811, %s3836
    %v3838 = vpop.permute.xlu0 %3837
    %s3840 = sor.u32 256, 56
    %3841 = vbcast.lane.b32.xlu0 %v3811, %s3840
    %v3842 = vpop.permute.xlu0 %3841
    %s3844 = sor.u32 256, 64
    %3845 = vbcast.lane.b32.xlu0 %v3811, %s3844
    %v3846 = vpop.permute.xlu0 %3845
    %s3848 = sor.u32 256, 72
    %3849 = vbcast.lane.b32.xlu0 %v3811, %s3848
    %v3850 = vpop.permute.xlu0 %3849
    %s3852 = sor.u32 256, 80
    %3853 = vbcast.lane.b32.xlu0 %v3811, %s3852
    %v3854 = vpop.permute.xlu0 %3853
    %s3856 = sor.u32 256, 88
    %3857 = vbcast.lane.b32.xlu0 %v3811, %s3856
    %v3858 = vpop.permute.xlu0 %3857
    %s3860 = sor.u32 256, 96
    %3861 = vbcast.lane.b32.xlu0 %v3811, %s3860
    %v3862 = vpop.permute.xlu0 %3861
    %s3864 = sor.u32 256, 104
    %3865 = vbcast.lane.b32.xlu0 %v3811, %s3864
    %v3866 = vpop.permute.xlu0 %3865
    %s3868 = sor.u32 256, 112
    %3869 = vbcast.lane.b32.xlu0 %v3811, %s3868
    %v3870 = vpop.permute.xlu0 %3869
    %s3872 = sor.u32 256, 120
    %3873 = vbcast.lane.b32.xlu0 %v3811, %s3872
    %v3874 = vpop.permute.xlu0 %3873
    %v3875 = vlaneseq
    %v3876 = vshrl.u32 %v3875, 7
    %v3877 = vsub.s32 6, %v3876
    %v3878 = vrot.slane %v80, %v3877
    %3880 = vbcast.lane.b32.xlu0 %v3878, 256
    %v3881 = vpop.permute.xlu0 %3880
    %s3883 = sor.u32 256, 8
    %3884 = vbcast.lane.b32.xlu0 %v3878, %s3883
    %v3885 = vpop.permute.xlu0 %3884
    %s3887 = sor.u32 256, 16
    %3888 = vbcast.lane.b32.xlu0 %v3878, %s3887
    %v3889 = vpop.permute.xlu0 %3888
    %s3891 = sor.u32 256, 24
    %3892 = vbcast.lane.b32.xlu0 %v3878, %s3891
    %v3893 = vpop.permute.xlu0 %3892
    %s3895 = sor.u32 256, 32
    %3896 = vbcast.lane.b32.xlu0 %v3878, %s3895
    %v3897 = vpop.permute.xlu0 %3896
    %s3899 = sor.u32 256, 40
    %3900 = vbcast.lane.b32.xlu0 %v3878, %s3899
    %v3901 = vpop.permute.xlu0 %3900
    %s3903 = sor.u32 256, 48
    %3904 = vbcast.lane.b32.xlu0 %v3878, %s3903
    %v3905 = vpop.permute.xlu0 %3904
    %s3907 = sor.u32 256, 56
    %3908 = vbcast.lane.b32.xlu0 %v3878, %s3907
    %v3909 = vpop.permute.xlu0 %3908
    %s3911 = sor.u32 256, 64
    %3912 = vbcast.lane.b32.xlu0 %v3878, %s3911
    %v3913 = vpop.permute.xlu0 %3912
    %s3915 = sor.u32 256, 72
    %3916 = vbcast.lane.b32.xlu0 %v3878, %s3915
    %v3917 = vpop.permute.xlu0 %3916
    %s3919 = sor.u32 256, 80
    %3920 = vbcast.lane.b32.xlu0 %v3878, %s3919
    %v3921 = vpop.permute.xlu0 %3920
    %s3923 = sor.u32 256, 88
    %3924 = vbcast.lane.b32.xlu0 %v3878, %s3923
    %v3925 = vpop.permute.xlu0 %3924
    %s3927 = sor.u32 256, 96
    %3928 = vbcast.lane.b32.xlu0 %v3878, %s3927
    %v3929 = vpop.permute.xlu0 %3928
    %s3931 = sor.u32 256, 104
    %3932 = vbcast.lane.b32.xlu0 %v3878, %s3931
    %v3933 = vpop.permute.xlu0 %3932
    %s3935 = sor.u32 256, 112
    %3936 = vbcast.lane.b32.xlu0 %v3878, %s3935
    %v3937 = vpop.permute.xlu0 %3936
    %s3939 = sor.u32 256, 120
    %3940 = vbcast.lane.b32.xlu0 %v3878, %s3939
    %v3941 = vpop.permute.xlu0 %3940
    %v3942 = vlaneseq
    %v3943 = vshrl.u32 %v3942, 7
    %v3944 = vsub.s32 7, %v3943
    %v3945 = vrot.slane %v79, %v3944
    %3947 = vbcast.lane.b32.xlu0 %v3945, 256
    %v3948 = vpop.permute.xlu0 %3947
    %s3950 = sor.u32 256, 8
    %3951 = vbcast.lane.b32.xlu0 %v3945, %s3950
    %v3952 = vpop.permute.xlu0 %3951
    %s3954 = sor.u32 256, 16
    %3955 = vbcast.lane.b32.xlu0 %v3945, %s3954
    %v3956 = vpop.permute.xlu0 %3955
    %s3958 = sor.u32 256, 24
    %3959 = vbcast.lane.b32.xlu0 %v3945, %s3958
    %v3960 = vpop.permute.xlu0 %3959
    %s3962 = sor.u32 256, 32
    %3963 = vbcast.lane.b32.xlu0 %v3945, %s3962
    %v3964 = vpop.permute.xlu0 %3963
    %s3966 = sor.u32 256, 40
    %3967 = vbcast.lane.b32.xlu0 %v3945, %s3966
    %v3968 = vpop.permute.xlu0 %3967
    %s3970 = sor.u32 256, 48
    %3971 = vbcast.lane.b32.xlu0 %v3945, %s3970
    %v3972 = vpop.permute.xlu0 %3971
    %s3974 = sor.u32 256, 56
    %3975 = vbcast.lane.b32.xlu0 %v3945, %s3974
    %v3976 = vpop.permute.xlu0 %3975
    %s3978 = sor.u32 256, 64
    %3979 = vbcast.lane.b32.xlu0 %v3945, %s3978
    %v3980 = vpop.permute.xlu0 %3979
    %s3982 = sor.u32 256, 72
    %3983 = vbcast.lane.b32.xlu0 %v3945, %s3982
    %v3984 = vpop.permute.xlu0 %3983
    %s3986 = sor.u32 256, 80
    %3987 = vbcast.lane.b32.xlu0 %v3945, %s3986
    %v3988 = vpop.permute.xlu0 %3987
    %s3990 = sor.u32 256, 88
    %3991 = vbcast.lane.b32.xlu0 %v3945, %s3990
    %v3992 = vpop.permute.xlu0 %3991
    %s3994 = sor.u32 256, 96
    %3995 = vbcast.lane.b32.xlu0 %v3945, %s3994
    %v3996 = vpop.permute.xlu0 %3995
    %s3998 = sor.u32 256, 104
    %3999 = vbcast.lane.b32.xlu0 %v3945, %s3998
    %v4000 = vpop.permute.xlu0 %3999
    %s4002 = sor.u32 256, 112
    %4003 = vbcast.lane.b32.xlu0 %v3945, %s4002
    %v4004 = vpop.permute.xlu0 %4003
    %s4006 = sor.u32 256, 120
    %4007 = vbcast.lane.b32.xlu0 %v3945, %s4006
    %v4008 = vpop.permute.xlu0 %4007
    %v4009 = vlaneseq
    %v4010 = vshrl.u32 %v4009, 7
    %v4011 = vsub.s32 7, %v4010
    %v4012 = vrot.slane %v80, %v4011
    %4014 = vbcast.lane.b32.xlu0 %v4012, 256
    %v4015 = vpop.permute.xlu0 %4014
    %s4017 = sor.u32 256, 8
    %4018 = vbcast.lane.b32.xlu0 %v4012, %s4017
    %v4019 = vpop.permute.xlu0 %4018
    %s4021 = sor.u32 256, 16
    %4022 = vbcast.lane.b32.xlu0 %v4012, %s4021
    %v4023 = vpop.permute.xlu0 %4022
    %s4025 = sor.u32 256, 24
    %4026 = vbcast.lane.b32.xlu0 %v4012, %s4025
    %v4027 = vpop.permute.xlu0 %4026
    %s4029 = sor.u32 256, 32
    %4030 = vbcast.lane.b32.xlu0 %v4012, %s4029
    %v4031 = vpop.permute.xlu0 %4030
    %s4033 = sor.u32 256, 40
    %4034 = vbcast.lane.b32.xlu0 %v4012, %s4033
    %v4035 = vpop.permute.xlu0 %4034
    %s4037 = sor.u32 256, 48
    %4038 = vbcast.lane.b32.xlu0 %v4012, %s4037
    %v4039 = vpop.permute.xlu0 %4038
    %s4041 = sor.u32 256, 56
    %4042 = vbcast.lane.b32.xlu0 %v4012, %s4041
    %v4043 = vpop.permute.xlu0 %4042
    %s4045 = sor.u32 256, 64
    %4046 = vbcast.lane.b32.xlu0 %v4012, %s4045
    %v4047 = vpop.permute.xlu0 %4046
    %s4049 = sor.u32 256, 72
    %4050 = vbcast.lane.b32.xlu0 %v4012, %s4049
    %v4051 = vpop.permute.xlu0 %4050
    %s4053 = sor.u32 256, 80
    %4054 = vbcast.lane.b32.xlu0 %v4012, %s4053
    %v4055 = vpop.permute.xlu0 %4054
    %s4057 = sor.u32 256, 88
    %4058 = vbcast.lane.b32.xlu0 %v4012, %s4057
    %v4059 = vpop.permute.xlu0 %4058
    %s4061 = sor.u32 256, 96
    %4062 = vbcast.lane.b32.xlu0 %v4012, %s4061
    %v4063 = vpop.permute.xlu0 %4062
    %s4065 = sor.u32 256, 104
    %4066 = vbcast.lane.b32.xlu0 %v4012, %s4065
    %v4067 = vpop.permute.xlu0 %4066
    %s4069 = sor.u32 256, 112
    %4070 = vbcast.lane.b32.xlu0 %v4012, %s4069
    %v4071 = vpop.permute.xlu0 %4070
    %s4073 = sor.u32 256, 120
    %4074 = vbcast.lane.b32.xlu0 %v4012, %s4073
    %v4075 = vpop.permute.xlu0 %4074
    %v4076 = vlaneseq
    %v4077 = vshrl.u32 %v4076, 7
    %v4078 = vsub.s32 2, %v4077
    %v4079 = vrot.slane %v83, %v4078
    %v4080 = vmul.f32 %v3010, %v4079
    %v4081 = vmul.f32 %v3014, %v4079
    %v4082 = vmul.f32 %v3018, %v4079
    %v4083 = vmul.f32 %v3022, %v4079
    %v4084 = vmul.f32 %v3026, %v4079
    %v4085 = vmul.f32 %v3030, %v4079
    %v4086 = vmul.f32 %v3034, %v4079
    %v4087 = vmul.f32 %v3038, %v4079
    %v4088 = vmul.f32 %v3042, %v4079
    %v4089 = vmul.f32 %v3046, %v4079
    %v4090 = vmul.f32 %v3050, %v4079
    %v4091 = vmul.f32 %v3054, %v4079
    %v4092 = vmul.f32 %v3058, %v4079
    %v4093 = vmul.f32 %v3062, %v4079
    %v4094 = vmul.f32 %v3066, %v4079
    %v4095 = vmul.f32 %v3070, %v4079
    %v4096 = vmul.f32 %v3077, %v4079
    %v4097 = vmul.f32 %v3081, %v4079
    %v4098 = vmul.f32 %v3085, %v4079
    %v4099 = vmul.f32 %v3089, %v4079
    %v4100 = vmul.f32 %v3093, %v4079
    %v4101 = vmul.f32 %v3097, %v4079
    %v4102 = vmul.f32 %v3101, %v4079
    %v4103 = vmul.f32 %v3105, %v4079
    %v4104 = vmul.f32 %v3109, %v4079
    %v4105 = vmul.f32 %v3113, %v4079
    %v4106 = vmul.f32 %v3117, %v4079
    %v4107 = vmul.f32 %v3121, %v4079
    %v4108 = vmul.f32 %v3125, %v4079
    %v4109 = vmul.f32 %v3129, %v4079
    %v4110 = vmul.f32 %v3133, %v4079
    %v4111 = vmul.f32 %v3137, %v4079
    %v4112 = vmul.f32 %v3144, %v4079
    %v4113 = vmul.f32 %v3148, %v4079
    %v4114 = vmul.f32 %v3152, %v4079
    %v4115 = vmul.f32 %v3156, %v4079
    %v4116 = vmul.f32 %v3160, %v4079
    %v4117 = vmul.f32 %v3164, %v4079
    %v4118 = vmul.f32 %v3168, %v4079
    %v4119 = vmul.f32 %v3172, %v4079
    %v4120 = vmul.f32 %v3176, %v4079
    %v4121 = vmul.f32 %v3180, %v4079
    %v4122 = vmul.f32 %v3184, %v4079
    %v4123 = vmul.f32 %v3188, %v4079
    %v4124 = vmul.f32 %v3192, %v4079
    %v4125 = vmul.f32 %v3196, %v4079
    %v4126 = vmul.f32 %v3200, %v4079
    %v4127 = vmul.f32 %v3204, %v4079
    %v4128 = vmul.f32 %v3211, %v4079
    %v4129 = vmul.f32 %v3215, %v4079
    %v4130 = vmul.f32 %v3219, %v4079
    %v4131 = vmul.f32 %v3223, %v4079
    %v4132 = vmul.f32 %v3227, %v4079
    %v4133 = vmul.f32 %v3231, %v4079
    %v4134 = vmul.f32 %v3235, %v4079
    %v4135 = vmul.f32 %v3239, %v4079
    %v4136 = vmul.f32 %v3243, %v4079
    %v4137 = vmul.f32 %v3247, %v4079
    %v4138 = vmul.f32 %v3251, %v4079
    %v4139 = vmul.f32 %v3255, %v4079
    %v4140 = vmul.f32 %v3259, %v4079
    %v4141 = vmul.f32 %v3263, %v4079
    %v4142 = vmul.f32 %v3267, %v4079
    %v4143 = vmul.f32 %v3271, %v4079
    %v4144 = vmul.f32 %v3278, %v4079
    %v4145 = vmul.f32 %v3282, %v4079
    %v4146 = vmul.f32 %v3286, %v4079
    %v4147 = vmul.f32 %v3290, %v4079
    %v4148 = vmul.f32 %v3294, %v4079
    %v4149 = vmul.f32 %v3298, %v4079
    %v4150 = vmul.f32 %v3302, %v4079
    %v4151 = vmul.f32 %v3306, %v4079
    %v4152 = vmul.f32 %v3310, %v4079
    %v4153 = vmul.f32 %v3314, %v4079
    %v4154 = vmul.f32 %v3318, %v4079
    %v4155 = vmul.f32 %v3322, %v4079
    %v4156 = vmul.f32 %v3326, %v4079
    %v4157 = vmul.f32 %v3330, %v4079
    %v4158 = vmul.f32 %v3334, %v4079
    %v4159 = vmul.f32 %v3338, %v4079
    %v4160 = vmul.f32 %v3345, %v4079
    %v4161 = vmul.f32 %v3349, %v4079
    %v4162 = vmul.f32 %v3353, %v4079
    %v4163 = vmul.f32 %v3357, %v4079
    %v4164 = vmul.f32 %v3361, %v4079
    %v4165 = vmul.f32 %v3365, %v4079
    %v4166 = vmul.f32 %v3369, %v4079
    %v4167 = vmul.f32 %v3373, %v4079
    %v4168 = vmul.f32 %v3377, %v4079
    %v4169 = vmul.f32 %v3381, %v4079
    %v4170 = vmul.f32 %v3385, %v4079
    %v4171 = vmul.f32 %v3389, %v4079
    %v4172 = vmul.f32 %v3393, %v4079
    %v4173 = vmul.f32 %v3397, %v4079
    %v4174 = vmul.f32 %v3401, %v4079
    %v4175 = vmul.f32 %v3405, %v4079
    %v4176 = vmul.f32 %v3412, %v4079
    %v4177 = vmul.f32 %v3416, %v4079
    %v4178 = vmul.f32 %v3420, %v4079
    %v4179 = vmul.f32 %v3424, %v4079
    %v4180 = vmul.f32 %v3428, %v4079
    %v4181 = vmul.f32 %v3432, %v4079
    %v4182 = vmul.f32 %v3436, %v4079
    %v4183 = vmul.f32 %v3440, %v4079
    %v4184 = vmul.f32 %v3444, %v4079
    %v4185 = vmul.f32 %v3448, %v4079
    %v4186 = vmul.f32 %v3452, %v4079
    %v4187 = vmul.f32 %v3456, %v4079
    %v4188 = vmul.f32 %v3460, %v4079
    %v4189 = vmul.f32 %v3464, %v4079
    %v4190 = vmul.f32 %v3468, %v4079
    %v4191 = vmul.f32 %v3472, %v4079
    %v4192 = vmul.f32 %v3479, %v4079
    %v4193 = vmul.f32 %v3483, %v4079
    %v4194 = vmul.f32 %v3487, %v4079
    %v4195 = vmul.f32 %v3491, %v4079
    %v4196 = vmul.f32 %v3495, %v4079
    %v4197 = vmul.f32 %v3499, %v4079
    %v4198 = vmul.f32 %v3503, %v4079
    %v4199 = vmul.f32 %v3507, %v4079
    %v4200 = vmul.f32 %v3511, %v4079
    %v4201 = vmul.f32 %v3515, %v4079
    %v4202 = vmul.f32 %v3519, %v4079
    %v4203 = vmul.f32 %v3523, %v4079
    %v4204 = vmul.f32 %v3527, %v4079
    %v4205 = vmul.f32 %v3531, %v4079
    %v4206 = vmul.f32 %v3535, %v4079
    %v4207 = vmul.f32 %v3539, %v4079
    %v4208 = vmul.f32 %v3546, %v4079
    %v4209 = vmul.f32 %v3550, %v4079
    %v4210 = vmul.f32 %v3554, %v4079
    %v4211 = vmul.f32 %v3558, %v4079
    %v4212 = vmul.f32 %v3562, %v4079
    %v4213 = vmul.f32 %v3566, %v4079
    %v4214 = vmul.f32 %v3570, %v4079
    %v4215 = vmul.f32 %v3574, %v4079
    %v4216 = vmul.f32 %v3578, %v4079
    %v4217 = vmul.f32 %v3582, %v4079
    %v4218 = vmul.f32 %v3586, %v4079
    %v4219 = vmul.f32 %v3590, %v4079
    %v4220 = vmul.f32 %v3594, %v4079
    %v4221 = vmul.f32 %v3598, %v4079
    %v4222 = vmul.f32 %v3602, %v4079
    %v4223 = vmul.f32 %v3606, %v4079
    %v4224 = vmul.f32 %v3613, %v4079
    %v4225 = vmul.f32 %v3617, %v4079
    %v4226 = vmul.f32 %v3621, %v4079
    %v4227 = vmul.f32 %v3625, %v4079
    %v4228 = vmul.f32 %v3629, %v4079
    %v4229 = vmul.f32 %v3633, %v4079
    %v4230 = vmul.f32 %v3637, %v4079
    %v4231 = vmul.f32 %v3641, %v4079
    %v4232 = vmul.f32 %v3645, %v4079
    %v4233 = vmul.f32 %v3649, %v4079
    %v4234 = vmul.f32 %v3653, %v4079
    %v4235 = vmul.f32 %v3657, %v4079
    %v4236 = vmul.f32 %v3661, %v4079
    %v4237 = vmul.f32 %v3665, %v4079
    %v4238 = vmul.f32 %v3669, %v4079
    %v4239 = vmul.f32 %v3673, %v4079
    %v4240 = vmul.f32 %v3680, %v4079
    %v4241 = vmul.f32 %v3684, %v4079
    %v4242 = vmul.f32 %v3688, %v4079
    %v4243 = vmul.f32 %v3692, %v4079
    %v4244 = vmul.f32 %v3696, %v4079
    %v4245 = vmul.f32 %v3700, %v4079
    %v4246 = vmul.f32 %v3704, %v4079
    %v4247 = vmul.f32 %v3708, %v4079
    %v4248 = vmul.f32 %v3712, %v4079
    %v4249 = vmul.f32 %v3716, %v4079
    %v4250 = vmul.f32 %v3720, %v4079
    %v4251 = vmul.f32 %v3724, %v4079
    %v4252 = vmul.f32 %v3728, %v4079
    %v4253 = vmul.f32 %v3732, %v4079
    %v4254 = vmul.f32 %v3736, %v4079
    %v4255 = vmul.f32 %v3740, %v4079
    %v4256 = vmul.f32 %v3747, %v4079
    %v4257 = vmul.f32 %v3751, %v4079
    %v4258 = vmul.f32 %v3755, %v4079
    %v4259 = vmul.f32 %v3759, %v4079
    %v4260 = vmul.f32 %v3763, %v4079
    %v4261 = vmul.f32 %v3767, %v4079
    %v4262 = vmul.f32 %v3771, %v4079
    %v4263 = vmul.f32 %v3775, %v4079
    %v4264 = vmul.f32 %v3779, %v4079
    %v4265 = vmul.f32 %v3783, %v4079
    %v4266 = vmul.f32 %v3787, %v4079
    %v4267 = vmul.f32 %v3791, %v4079
    %v4268 = vmul.f32 %v3795, %v4079
    %v4269 = vmul.f32 %v3799, %v4079
    %v4270 = vmul.f32 %v3803, %v4079
    %v4271 = vmul.f32 %v3807, %v4079
    %v4272 = vmul.f32 %v3814, %v4079
    %v4273 = vmul.f32 %v3818, %v4079
    %v4274 = vmul.f32 %v3822, %v4079
    %v4275 = vmul.f32 %v3826, %v4079
    %v4276 = vmul.f32 %v3830, %v4079
    %v4277 = vmul.f32 %v3834, %v4079
    %v4278 = vmul.f32 %v3838, %v4079
    %v4279 = vmul.f32 %v3842, %v4079
    %v4280 = vmul.f32 %v3846, %v4079
    %v4281 = vmul.f32 %v3850, %v4079
    %v4282 = vmul.f32 %v3854, %v4079
    %v4283 = vmul.f32 %v3858, %v4079
    %v4284 = vmul.f32 %v3862, %v4079
    %v4285 = vmul.f32 %v3866, %v4079
    %v4286 = vmul.f32 %v3870, %v4079
    %v4287 = vmul.f32 %v3874, %v4079
    %v4288 = vmul.f32 %v3881, %v4079
    %v4289 = vmul.f32 %v3885, %v4079
    %v4290 = vmul.f32 %v3889, %v4079
    %v4291 = vmul.f32 %v3893, %v4079
    %v4292 = vmul.f32 %v3897, %v4079
    %v4293 = vmul.f32 %v3901, %v4079
    %v4294 = vmul.f32 %v3905, %v4079
    %v4295 = vmul.f32 %v3909, %v4079
    %v4296 = vmul.f32 %v3913, %v4079
    %v4297 = vmul.f32 %v3917, %v4079
    %v4298 = vmul.f32 %v3921, %v4079
    %v4299 = vmul.f32 %v3925, %v4079
    %v4300 = vmul.f32 %v3929, %v4079
    %v4301 = vmul.f32 %v3933, %v4079
    %v4302 = vmul.f32 %v3937, %v4079
    %v4303 = vmul.f32 %v3941, %v4079
    %v4304 = vmul.f32 %v3948, %v4079
    %v4305 = vmul.f32 %v3952, %v4079
    %v4306 = vmul.f32 %v3956, %v4079
    %v4307 = vmul.f32 %v3960, %v4079
    %v4308 = vmul.f32 %v3964, %v4079
    %v4309 = vmul.f32 %v3968, %v4079
    %v4310 = vmul.f32 %v3972, %v4079
    %v4311 = vmul.f32 %v3976, %v4079
    %v4312 = vmul.f32 %v3980, %v4079
    %v4313 = vmul.f32 %v3984, %v4079
    %v4314 = vmul.f32 %v3988, %v4079
    %v4315 = vmul.f32 %v3992, %v4079
    %v4316 = vmul.f32 %v3996, %v4079
    %v4317 = vmul.f32 %v4000, %v4079
    %v4318 = vmul.f32 %v4004, %v4079
    %v4319 = vmul.f32 %v4008, %v4079
    %v4320 = vmul.f32 %v4015, %v4079
    %v4321 = vmul.f32 %v4019, %v4079
    %v4322 = vmul.f32 %v4023, %v4079
    %v4323 = vmul.f32 %v4027, %v4079
    %v4324 = vmul.f32 %v4031, %v4079
    %v4325 = vmul.f32 %v4035, %v4079
    %v4326 = vmul.f32 %v4039, %v4079
    %v4327 = vmul.f32 %v4043, %v4079
    %v4328 = vmul.f32 %v4047, %v4079
    %v4329 = vmul.f32 %v4051, %v4079
    %v4330 = vmul.f32 %v4055, %v4079
    %v4331 = vmul.f32 %v4059, %v4079
    %v4332 = vmul.f32 %v4063, %v4079
    %v4333 = vmul.f32 %v4067, %v4079
    %v4334 = vmul.f32 %v4071, %v4079
    %v4335 = vmul.f32 %v4075, %v4079
    %v4336 = vadd.f32 %v2748, %v4080
    %v4337 = vadd.f32 %v2749, %v4081
    %v4338 = vadd.f32 %v2750, %v4082
    %v4339 = vadd.f32 %v2751, %v4083
    %v4340 = vadd.f32 %v2752, %v4084
    %v4341 = vadd.f32 %v2753, %v4085
    %v4342 = vadd.f32 %v2754, %v4086
    %v4343 = vadd.f32 %v2755, %v4087
    %v4344 = vadd.f32 %v2756, %v4088
    %v4345 = vadd.f32 %v2757, %v4089
    %v4346 = vadd.f32 %v2758, %v4090
    %v4347 = vadd.f32 %v2759, %v4091
    %v4348 = vadd.f32 %v2760, %v4092
    %v4349 = vadd.f32 %v2761, %v4093
    %v4350 = vadd.f32 %v2762, %v4094
    %v4351 = vadd.f32 %v2763, %v4095
    %v4352 = vadd.f32 %v2764, %v4096
    %v4353 = vadd.f32 %v2765, %v4097
    %v4354 = vadd.f32 %v2766, %v4098
    %v4355 = vadd.f32 %v2767, %v4099
    %v4356 = vadd.f32 %v2768, %v4100
    %v4357 = vadd.f32 %v2769, %v4101
    %v4358 = vadd.f32 %v2770, %v4102
    %v4359 = vadd.f32 %v2771, %v4103
    %v4360 = vadd.f32 %v2772, %v4104
    %v4361 = vadd.f32 %v2773, %v4105
    %v4362 = vadd.f32 %v2774, %v4106
    %v4363 = vadd.f32 %v2775, %v4107
    %v4364 = vadd.f32 %v2776, %v4108
    %v4365 = vadd.f32 %v2777, %v4109
    %v4366 = vadd.f32 %v2778, %v4110
    %v4367 = vadd.f32 %v2779, %v4111
    %v4368 = vadd.f32 %v2780, %v4112
    %v4369 = vadd.f32 %v2781, %v4113
    %v4370 = vadd.f32 %v2782, %v4114
    %v4371 = vadd.f32 %v2783, %v4115
    %v4372 = vadd.f32 %v2784, %v4116
    %v4373 = vadd.f32 %v2785, %v4117
    %v4374 = vadd.f32 %v2786, %v4118
    %v4375 = vadd.f32 %v2787, %v4119
    %v4376 = vadd.f32 %v2788, %v4120
    %v4377 = vadd.f32 %v2789, %v4121
    %v4378 = vadd.f32 %v2790, %v4122
    %v4379 = vadd.f32 %v2791, %v4123
    %v4380 = vadd.f32 %v2792, %v4124
    %v4381 = vadd.f32 %v2793, %v4125
    %v4382 = vadd.f32 %v2794, %v4126
    %v4383 = vadd.f32 %v2795, %v4127
    %v4384 = vadd.f32 %v2796, %v4128
    %v4385 = vadd.f32 %v2797, %v4129
    %v4386 = vadd.f32 %v2798, %v4130
    %v4387 = vadd.f32 %v2799, %v4131
    %v4388 = vadd.f32 %v2800, %v4132
    %v4389 = vadd.f32 %v2801, %v4133
    %v4390 = vadd.f32 %v2802, %v4134
    %v4391 = vadd.f32 %v2803, %v4135
    %v4392 = vadd.f32 %v2804, %v4136
    %v4393 = vadd.f32 %v2805, %v4137
    %v4394 = vadd.f32 %v2806, %v4138
    %v4395 = vadd.f32 %v2807, %v4139
    %v4396 = vadd.f32 %v2808, %v4140
    %v4397 = vadd.f32 %v2809, %v4141
    %v4398 = vadd.f32 %v2810, %v4142
    %v4399 = vadd.f32 %v2811, %v4143
    %v4400 = vadd.f32 %v2812, %v4144
    %v4401 = vadd.f32 %v2813, %v4145
    %v4402 = vadd.f32 %v2814, %v4146
    %v4403 = vadd.f32 %v2815, %v4147
    %v4404 = vadd.f32 %v2816, %v4148
    %v4405 = vadd.f32 %v2817, %v4149
    %v4406 = vadd.f32 %v2818, %v4150
    %v4407 = vadd.f32 %v2819, %v4151
    %v4408 = vadd.f32 %v2820, %v4152
    %v4409 = vadd.f32 %v2821, %v4153
    %v4410 = vadd.f32 %v2822, %v4154
    %v4411 = vadd.f32 %v2823, %v4155
    %v4412 = vadd.f32 %v2824, %v4156
    %v4413 = vadd.f32 %v2825, %v4157
    %v4414 = vadd.f32 %v2826, %v4158
    %v4415 = vadd.f32 %v2827, %v4159
    %v4416 = vadd.f32 %v2828, %v4160
    %v4417 = vadd.f32 %v2829, %v4161
    %v4418 = vadd.f32 %v2830, %v4162
    %v4419 = vadd.f32 %v2831, %v4163
    %v4420 = vadd.f32 %v2832, %v4164
    %v4421 = vadd.f32 %v2833, %v4165
    %v4422 = vadd.f32 %v2834, %v4166
    %v4423 = vadd.f32 %v2835, %v4167
    %v4424 = vadd.f32 %v2836, %v4168
    %v4425 = vadd.f32 %v2837, %v4169
    %v4426 = vadd.f32 %v2838, %v4170
    %v4427 = vadd.f32 %v2839, %v4171
    %v4428 = vadd.f32 %v2840, %v4172
    %v4429 = vadd.f32 %v2841, %v4173
    %v4430 = vadd.f32 %v2842, %v4174
    %v4431 = vadd.f32 %v2843, %v4175
    %v4432 = vadd.f32 %v2844, %v4176
    %v4433 = vadd.f32 %v2845, %v4177
    %v4434 = vadd.f32 %v2846, %v4178
    %v4435 = vadd.f32 %v2847, %v4179
    %v4436 = vadd.f32 %v2848, %v4180
    %v4437 = vadd.f32 %v2849, %v4181
    %v4438 = vadd.f32 %v2850, %v4182
    %v4439 = vadd.f32 %v2851, %v4183
    %v4440 = vadd.f32 %v2852, %v4184
    %v4441 = vadd.f32 %v2853, %v4185
    %v4442 = vadd.f32 %v2854, %v4186
    %v4443 = vadd.f32 %v2855, %v4187
    %v4444 = vadd.f32 %v2856, %v4188
    %v4445 = vadd.f32 %v2857, %v4189
    %v4446 = vadd.f32 %v2858, %v4190
    %v4447 = vadd.f32 %v2859, %v4191
    %v4448 = vadd.f32 %v2860, %v4192
    %v4449 = vadd.f32 %v2861, %v4193
    %v4450 = vadd.f32 %v2862, %v4194
    %v4451 = vadd.f32 %v2863, %v4195
    %v4452 = vadd.f32 %v2864, %v4196
    %v4453 = vadd.f32 %v2865, %v4197
    %v4454 = vadd.f32 %v2866, %v4198
    %v4455 = vadd.f32 %v2867, %v4199
    %v4456 = vadd.f32 %v2868, %v4200
    %v4457 = vadd.f32 %v2869, %v4201
    %v4458 = vadd.f32 %v2870, %v4202
    %v4459 = vadd.f32 %v2871, %v4203
    %v4460 = vadd.f32 %v2872, %v4204
    %v4461 = vadd.f32 %v2873, %v4205
    %v4462 = vadd.f32 %v2874, %v4206
    %v4463 = vadd.f32 %v2875, %v4207
    %v4464 = vadd.f32 %v2876, %v4208
    %v4465 = vadd.f32 %v2877, %v4209
    %v4466 = vadd.f32 %v2878, %v4210
    %v4467 = vadd.f32 %v2879, %v4211
    %v4468 = vadd.f32 %v2880, %v4212
    %v4469 = vadd.f32 %v2881, %v4213
    %v4470 = vadd.f32 %v2882, %v4214
    %v4471 = vadd.f32 %v2883, %v4215
    %v4472 = vadd.f32 %v2884, %v4216
    %v4473 = vadd.f32 %v2885, %v4217
    %v4474 = vadd.f32 %v2886, %v4218
    %v4475 = vadd.f32 %v2887, %v4219
    %v4476 = vadd.f32 %v2888, %v4220
    %v4477 = vadd.f32 %v2889, %v4221
    %v4478 = vadd.f32 %v2890, %v4222
    %v4479 = vadd.f32 %v2891, %v4223
    %v4480 = vadd.f32 %v2892, %v4224
    %v4481 = vadd.f32 %v2893, %v4225
    %v4482 = vadd.f32 %v2894, %v4226
    %v4483 = vadd.f32 %v2895, %v4227
    %v4484 = vadd.f32 %v2896, %v4228
    %v4485 = vadd.f32 %v2897, %v4229
    %v4486 = vadd.f32 %v2898, %v4230
    %v4487 = vadd.f32 %v2899, %v4231
    %v4488 = vadd.f32 %v2900, %v4232
    %v4489 = vadd.f32 %v2901, %v4233
    %v4490 = vadd.f32 %v2902, %v4234
    %v4491 = vadd.f32 %v2903, %v4235
    %v4492 = vadd.f32 %v2904, %v4236
    %v4493 = vadd.f32 %v2905, %v4237
    %v4494 = vadd.f32 %v2906, %v4238
    %v4495 = vadd.f32 %v2907, %v4239
    %v4496 = vadd.f32 %v2908, %v4240
    %v4497 = vadd.f32 %v2909, %v4241
    %v4498 = vadd.f32 %v2910, %v4242
    %v4499 = vadd.f32 %v2911, %v4243
    %v4500 = vadd.f32 %v2912, %v4244
    %v4501 = vadd.f32 %v2913, %v4245
    %v4502 = vadd.f32 %v2914, %v4246
    %v4503 = vadd.f32 %v2915, %v4247
    %v4504 = vadd.f32 %v2916, %v4248
    %v4505 = vadd.f32 %v2917, %v4249
    %v4506 = vadd.f32 %v2918, %v4250
    %v4507 = vadd.f32 %v2919, %v4251
    %v4508 = vadd.f32 %v2920, %v4252
    %v4509 = vadd.f32 %v2921, %v4253
    %v4510 = vadd.f32 %v2922, %v4254
    %v4511 = vadd.f32 %v2923, %v4255
    %v4512 = vadd.f32 %v2924, %v4256
    %v4513 = vadd.f32 %v2925, %v4257
    %v4514 = vadd.f32 %v2926, %v4258
    %v4515 = vadd.f32 %v2927, %v4259
    %v4516 = vadd.f32 %v2928, %v4260
    %v4517 = vadd.f32 %v2929, %v4261
    %v4518 = vadd.f32 %v2930, %v4262
    %v4519 = vadd.f32 %v2931, %v4263
    %v4520 = vadd.f32 %v2932, %v4264
    %v4521 = vadd.f32 %v2933, %v4265
    %v4522 = vadd.f32 %v2934, %v4266
    %v4523 = vadd.f32 %v2935, %v4267
    %v4524 = vadd.f32 %v2936, %v4268
    %v4525 = vadd.f32 %v2937, %v4269
    %v4526 = vadd.f32 %v2938, %v4270
    %v4527 = vadd.f32 %v2939, %v4271
    %v4528 = vadd.f32 %v2940, %v4272
    %v4529 = vadd.f32 %v2941, %v4273
    %v4530 = vadd.f32 %v2942, %v4274
    %v4531 = vadd.f32 %v2943, %v4275
    %v4532 = vadd.f32 %v2944, %v4276
    %v4533 = vadd.f32 %v2945, %v4277
    %v4534 = vadd.f32 %v2946, %v4278
    %v4535 = vadd.f32 %v2947, %v4279
    %v4536 = vadd.f32 %v2948, %v4280
    %v4537 = vadd.f32 %v2949, %v4281
    %v4538 = vadd.f32 %v2950, %v4282
    %v4539 = vadd.f32 %v2951, %v4283
    %v4540 = vadd.f32 %v2952, %v4284
    %v4541 = vadd.f32 %v2953, %v4285
    %v4542 = vadd.f32 %v2954, %v4286
    %v4543 = vadd.f32 %v2955, %v4287
    %v4544 = vadd.f32 %v2956, %v4288
    %v4545 = vadd.f32 %v2957, %v4289
    %v4546 = vadd.f32 %v2958, %v4290
    %v4547 = vadd.f32 %v2959, %v4291
    %v4548 = vadd.f32 %v2960, %v4292
    %v4549 = vadd.f32 %v2961, %v4293
    %v4550 = vadd.f32 %v2962, %v4294
    %v4551 = vadd.f32 %v2963, %v4295
    %v4552 = vadd.f32 %v2964, %v4296
    %v4553 = vadd.f32 %v2965, %v4297
    %v4554 = vadd.f32 %v2966, %v4298
    %v4555 = vadd.f32 %v2967, %v4299
    %v4556 = vadd.f32 %v2968, %v4300
    %v4557 = vadd.f32 %v2969, %v4301
    %v4558 = vadd.f32 %v2970, %v4302
    %v4559 = vadd.f32 %v2971, %v4303
    %v4560 = vadd.f32 %v2972, %v4304
    %v4561 = vadd.f32 %v2973, %v4305
    %v4562 = vadd.f32 %v2974, %v4306
    %v4563 = vadd.f32 %v2975, %v4307
    %v4564 = vadd.f32 %v2976, %v4308
    %v4565 = vadd.f32 %v2977, %v4309
    %v4566 = vadd.f32 %v2978, %v4310
    %v4567 = vadd.f32 %v2979, %v4311
    %v4568 = vadd.f32 %v2980, %v4312
    %v4569 = vadd.f32 %v2981, %v4313
    %v4570 = vadd.f32 %v2982, %v4314
    %v4571 = vadd.f32 %v2983, %v4315
    %v4572 = vadd.f32 %v2984, %v4316
    %v4573 = vadd.f32 %v2985, %v4317
    %v4574 = vadd.f32 %v2986, %v4318
    %v4575 = vadd.f32 %v2987, %v4319
    %v4576 = vadd.f32 %v2988, %v4320
    %v4577 = vadd.f32 %v2989, %v4321
    %v4578 = vadd.f32 %v2990, %v4322
    %v4579 = vadd.f32 %v2991, %v4323
    %v4580 = vadd.f32 %v2992, %v4324
    %v4581 = vadd.f32 %v2993, %v4325
    %v4582 = vadd.f32 %v2994, %v4326
    %v4583 = vadd.f32 %v2995, %v4327
    %v4584 = vadd.f32 %v2996, %v4328
    %v4585 = vadd.f32 %v2997, %v4329
    %v4586 = vadd.f32 %v2998, %v4330
    %v4587 = vadd.f32 %v2999, %v4331
    %v4588 = vadd.f32 %v3000, %v4332
    %v4589 = vadd.f32 %v3001, %v4333
    %v4590 = vadd.f32 %v3002, %v4334
    %v4591 = vadd.f32 %v3003, %v4335
    %v4592 = vlaneseq
    %v4593 = vshrl.u32 %v4592, 7
    %v4594 = vsub.s32 0, %v4593
    %v4595 = vrot.slane %v81, %v4594
    %4597 = vbcast.lane.b32.xlu0 %v4595, 256
    %v4598 = vpop.permute.xlu0 %4597
    %s4600 = sor.u32 256, 8
    %4601 = vbcast.lane.b32.xlu0 %v4595, %s4600
    %v4602 = vpop.permute.xlu0 %4601
    %s4604 = sor.u32 256, 16
    %4605 = vbcast.lane.b32.xlu0 %v4595, %s4604
    %v4606 = vpop.permute.xlu0 %4605
    %s4608 = sor.u32 256, 24
    %4609 = vbcast.lane.b32.xlu0 %v4595, %s4608
    %v4610 = vpop.permute.xlu0 %4609
    %s4612 = sor.u32 256, 32
    %4613 = vbcast.lane.b32.xlu0 %v4595, %s4612
    %v4614 = vpop.permute.xlu0 %4613
    %s4616 = sor.u32 256, 40
    %4617 = vbcast.lane.b32.xlu0 %v4595, %s4616
    %v4618 = vpop.permute.xlu0 %4617
    %s4620 = sor.u32 256, 48
    %4621 = vbcast.lane.b32.xlu0 %v4595, %s4620
    %v4622 = vpop.permute.xlu0 %4621
    %s4624 = sor.u32 256, 56
    %4625 = vbcast.lane.b32.xlu0 %v4595, %s4624
    %v4626 = vpop.permute.xlu0 %4625
    %s4628 = sor.u32 256, 64
    %4629 = vbcast.lane.b32.xlu0 %v4595, %s4628
    %v4630 = vpop.permute.xlu0 %4629
    %s4632 = sor.u32 256, 72
    %4633 = vbcast.lane.b32.xlu0 %v4595, %s4632
    %v4634 = vpop.permute.xlu0 %4633
    %s4636 = sor.u32 256, 80
    %4637 = vbcast.lane.b32.xlu0 %v4595, %s4636
    %v4638 = vpop.permute.xlu0 %4637
    %s4640 = sor.u32 256, 88
    %4641 = vbcast.lane.b32.xlu0 %v4595, %s4640
    %v4642 = vpop.permute.xlu0 %4641
    %s4644 = sor.u32 256, 96
    %4645 = vbcast.lane.b32.xlu0 %v4595, %s4644
    %v4646 = vpop.permute.xlu0 %4645
    %s4648 = sor.u32 256, 104
    %4649 = vbcast.lane.b32.xlu0 %v4595, %s4648
    %v4650 = vpop.permute.xlu0 %4649
    %s4652 = sor.u32 256, 112
    %4653 = vbcast.lane.b32.xlu0 %v4595, %s4652
    %v4654 = vpop.permute.xlu0 %4653
    %s4656 = sor.u32 256, 120
    %4657 = vbcast.lane.b32.xlu0 %v4595, %s4656
    %v4658 = vpop.permute.xlu0 %4657
    %v4659 = vlaneseq
    %v4660 = vshrl.u32 %v4659, 7
    %v4661 = vsub.s32 0, %v4660
    %v4662 = vrot.slane %v82, %v4661
    %4664 = vbcast.lane.b32.xlu0 %v4662, 256
    %v4665 = vpop.permute.xlu0 %4664
    %s4667 = sor.u32 256, 8
    %4668 = vbcast.lane.b32.xlu0 %v4662, %s4667
    %v4669 = vpop.permute.xlu0 %4668
    %s4671 = sor.u32 256, 16
    %4672 = vbcast.lane.b32.xlu0 %v4662, %s4671
    %v4673 = vpop.permute.xlu0 %4672
    %s4675 = sor.u32 256, 24
    %4676 = vbcast.lane.b32.xlu0 %v4662, %s4675
    %v4677 = vpop.permute.xlu0 %4676
    %s4679 = sor.u32 256, 32
    %4680 = vbcast.lane.b32.xlu0 %v4662, %s4679
    %v4681 = vpop.permute.xlu0 %4680
    %s4683 = sor.u32 256, 40
    %4684 = vbcast.lane.b32.xlu0 %v4662, %s4683
    %v4685 = vpop.permute.xlu0 %4684
    %s4687 = sor.u32 256, 48
    %4688 = vbcast.lane.b32.xlu0 %v4662, %s4687
    %v4689 = vpop.permute.xlu0 %4688
    %s4691 = sor.u32 256, 56
    %4692 = vbcast.lane.b32.xlu0 %v4662, %s4691
    %v4693 = vpop.permute.xlu0 %4692
    %s4695 = sor.u32 256, 64
    %4696 = vbcast.lane.b32.xlu0 %v4662, %s4695
    %v4697 = vpop.permute.xlu0 %4696
    %s4699 = sor.u32 256, 72
    %4700 = vbcast.lane.b32.xlu0 %v4662, %s4699
    %v4701 = vpop.permute.xlu0 %4700
    %s4703 = sor.u32 256, 80
    %4704 = vbcast.lane.b32.xlu0 %v4662, %s4703
    %v4705 = vpop.permute.xlu0 %4704
    %s4707 = sor.u32 256, 88
    %4708 = vbcast.lane.b32.xlu0 %v4662, %s4707
    %v4709 = vpop.permute.xlu0 %4708
    %s4711 = sor.u32 256, 96
    %4712 = vbcast.lane.b32.xlu0 %v4662, %s4711
    %v4713 = vpop.permute.xlu0 %4712
    %s4715 = sor.u32 256, 104
    %4716 = vbcast.lane.b32.xlu0 %v4662, %s4715
    %v4717 = vpop.permute.xlu0 %4716
    %s4719 = sor.u32 256, 112
    %4720 = vbcast.lane.b32.xlu0 %v4662, %s4719
    %v4721 = vpop.permute.xlu0 %4720
    %s4723 = sor.u32 256, 120
    %4724 = vbcast.lane.b32.xlu0 %v4662, %s4723
    %v4725 = vpop.permute.xlu0 %4724
    %v4726 = vlaneseq
    %v4727 = vshrl.u32 %v4726, 7
    %v4728 = vsub.s32 1, %v4727
    %v4729 = vrot.slane %v81, %v4728
    %4731 = vbcast.lane.b32.xlu0 %v4729, 256
    %v4732 = vpop.permute.xlu0 %4731
    %s4734 = sor.u32 256, 8
    %4735 = vbcast.lane.b32.xlu0 %v4729, %s4734
    %v4736 = vpop.permute.xlu0 %4735
    %s4738 = sor.u32 256, 16
    %4739 = vbcast.lane.b32.xlu0 %v4729, %s4738
    %v4740 = vpop.permute.xlu0 %4739
    %s4742 = sor.u32 256, 24
    %4743 = vbcast.lane.b32.xlu0 %v4729, %s4742
    %v4744 = vpop.permute.xlu0 %4743
    %s4746 = sor.u32 256, 32
    %4747 = vbcast.lane.b32.xlu0 %v4729, %s4746
    %v4748 = vpop.permute.xlu0 %4747
    %s4750 = sor.u32 256, 40
    %4751 = vbcast.lane.b32.xlu0 %v4729, %s4750
    %v4752 = vpop.permute.xlu0 %4751
    %s4754 = sor.u32 256, 48
    %4755 = vbcast.lane.b32.xlu0 %v4729, %s4754
    %v4756 = vpop.permute.xlu0 %4755
    %s4758 = sor.u32 256, 56
    %4759 = vbcast.lane.b32.xlu0 %v4729, %s4758
    %v4760 = vpop.permute.xlu0 %4759
    %s4762 = sor.u32 256, 64
    %4763 = vbcast.lane.b32.xlu0 %v4729, %s4762
    %v4764 = vpop.permute.xlu0 %4763
    %s4766 = sor.u32 256, 72
    %4767 = vbcast.lane.b32.xlu0 %v4729, %s4766
    %v4768 = vpop.permute.xlu0 %4767
    %s4770 = sor.u32 256, 80
    %4771 = vbcast.lane.b32.xlu0 %v4729, %s4770
    %v4772 = vpop.permute.xlu0 %4771
    %s4774 = sor.u32 256, 88
    %4775 = vbcast.lane.b32.xlu0 %v4729, %s4774
    %v4776 = vpop.permute.xlu0 %4775
    %s4778 = sor.u32 256, 96
    %4779 = vbcast.lane.b32.xlu0 %v4729, %s4778
    %v4780 = vpop.permute.xlu0 %4779
    %s4782 = sor.u32 256, 104
    %4783 = vbcast.lane.b32.xlu0 %v4729, %s4782
    %v4784 = vpop.permute.xlu0 %4783
    %s4786 = sor.u32 256, 112
    %4787 = vbcast.lane.b32.xlu0 %v4729, %s4786
    %v4788 = vpop.permute.xlu0 %4787
    %s4790 = sor.u32 256, 120
    %4791 = vbcast.lane.b32.xlu0 %v4729, %s4790
    %v4792 = vpop.permute.xlu0 %4791
    %v4793 = vlaneseq
    %v4794 = vshrl.u32 %v4793, 7
    %v4795 = vsub.s32 1, %v4794
    %v4796 = vrot.slane %v82, %v4795
    %4798 = vbcast.lane.b32.xlu0 %v4796, 256
    %v4799 = vpop.permute.xlu0 %4798
    %s4801 = sor.u32 256, 8
    %4802 = vbcast.lane.b32.xlu0 %v4796, %s4801
    %v4803 = vpop.permute.xlu0 %4802
    %s4805 = sor.u32 256, 16
    %4806 = vbcast.lane.b32.xlu0 %v4796, %s4805
    %v4807 = vpop.permute.xlu0 %4806
    %s4809 = sor.u32 256, 24
    %4810 = vbcast.lane.b32.xlu0 %v4796, %s4809
    %v4811 = vpop.permute.xlu0 %4810
    %s4813 = sor.u32 256, 32
    %4814 = vbcast.lane.b32.xlu0 %v4796, %s4813
    %v4815 = vpop.permute.xlu0 %4814
    %s4817 = sor.u32 256, 40
    %4818 = vbcast.lane.b32.xlu0 %v4796, %s4817
    %v4819 = vpop.permute.xlu0 %4818
    %s4821 = sor.u32 256, 48
    %4822 = vbcast.lane.b32.xlu0 %v4796, %s4821
    %v4823 = vpop.permute.xlu0 %4822
    %s4825 = sor.u32 256, 56
    %4826 = vbcast.lane.b32.xlu0 %v4796, %s4825
    %v4827 = vpop.permute.xlu0 %4826
    %s4829 = sor.u32 256, 64
    %4830 = vbcast.lane.b32.xlu0 %v4796, %s4829
    %v4831 = vpop.permute.xlu0 %4830
    %s4833 = sor.u32 256, 72
    %4834 = vbcast.lane.b32.xlu0 %v4796, %s4833
    %v4835 = vpop.permute.xlu0 %4834
    %s4837 = sor.u32 256, 80
    %4838 = vbcast.lane.b32.xlu0 %v4796, %s4837
    %v4839 = vpop.permute.xlu0 %4838
    %s4841 = sor.u32 256, 88
    %4842 = vbcast.lane.b32.xlu0 %v4796, %s4841
    %v4843 = vpop.permute.xlu0 %4842
    %s4845 = sor.u32 256, 96
    %4846 = vbcast.lane.b32.xlu0 %v4796, %s4845
    %v4847 = vpop.permute.xlu0 %4846
    %s4849 = sor.u32 256, 104
    %4850 = vbcast.lane.b32.xlu0 %v4796, %s4849
    %v4851 = vpop.permute.xlu0 %4850
    %s4853 = sor.u32 256, 112
    %4854 = vbcast.lane.b32.xlu0 %v4796, %s4853
    %v4855 = vpop.permute.xlu0 %4854
    %s4857 = sor.u32 256, 120
    %4858 = vbcast.lane.b32.xlu0 %v4796, %s4857
    %v4859 = vpop.permute.xlu0 %4858
    %v4860 = vlaneseq
    %v4861 = vshrl.u32 %v4860, 7
    %v4862 = vsub.s32 2, %v4861
    %v4863 = vrot.slane %v81, %v4862
    %4865 = vbcast.lane.b32.xlu0 %v4863, 256
    %v4866 = vpop.permute.xlu0 %4865
    %s4868 = sor.u32 256, 8
    %4869 = vbcast.lane.b32.xlu0 %v4863, %s4868
    %v4870 = vpop.permute.xlu0 %4869
    %s4872 = sor.u32 256, 16
    %4873 = vbcast.lane.b32.xlu0 %v4863, %s4872
    %v4874 = vpop.permute.xlu0 %4873
    %s4876 = sor.u32 256, 24
    %4877 = vbcast.lane.b32.xlu0 %v4863, %s4876
    %v4878 = vpop.permute.xlu0 %4877
    %s4880 = sor.u32 256, 32
    %4881 = vbcast.lane.b32.xlu0 %v4863, %s4880
    %v4882 = vpop.permute.xlu0 %4881
    %s4884 = sor.u32 256, 40
    %4885 = vbcast.lane.b32.xlu0 %v4863, %s4884
    %v4886 = vpop.permute.xlu0 %4885
    %s4888 = sor.u32 256, 48
    %4889 = vbcast.lane.b32.xlu0 %v4863, %s4888
    %v4890 = vpop.permute.xlu0 %4889
    %s4892 = sor.u32 256, 56
    %4893 = vbcast.lane.b32.xlu0 %v4863, %s4892
    %v4894 = vpop.permute.xlu0 %4893
    %s4896 = sor.u32 256, 64
    %4897 = vbcast.lane.b32.xlu0 %v4863, %s4896
    %v4898 = vpop.permute.xlu0 %4897
    %s4900 = sor.u32 256, 72
    %4901 = vbcast.lane.b32.xlu0 %v4863, %s4900
    %v4902 = vpop.permute.xlu0 %4901
    %s4904 = sor.u32 256, 80
    %4905 = vbcast.lane.b32.xlu0 %v4863, %s4904
    %v4906 = vpop.permute.xlu0 %4905
    %s4908 = sor.u32 256, 88
    %4909 = vbcast.lane.b32.xlu0 %v4863, %s4908
    %v4910 = vpop.permute.xlu0 %4909
    %s4912 = sor.u32 256, 96
    %4913 = vbcast.lane.b32.xlu0 %v4863, %s4912
    %v4914 = vpop.permute.xlu0 %4913
    %s4916 = sor.u32 256, 104
    %4917 = vbcast.lane.b32.xlu0 %v4863, %s4916
    %v4918 = vpop.permute.xlu0 %4917
    %s4920 = sor.u32 256, 112
    %4921 = vbcast.lane.b32.xlu0 %v4863, %s4920
    %v4922 = vpop.permute.xlu0 %4921
    %s4924 = sor.u32 256, 120
    %4925 = vbcast.lane.b32.xlu0 %v4863, %s4924
    %v4926 = vpop.permute.xlu0 %4925
    %v4927 = vlaneseq
    %v4928 = vshrl.u32 %v4927, 7
    %v4929 = vsub.s32 2, %v4928
    %v4930 = vrot.slane %v82, %v4929
    %4932 = vbcast.lane.b32.xlu0 %v4930, 256
    %v4933 = vpop.permute.xlu0 %4932
    %s4935 = sor.u32 256, 8
    %4936 = vbcast.lane.b32.xlu0 %v4930, %s4935
    %v4937 = vpop.permute.xlu0 %4936
    %s4939 = sor.u32 256, 16
    %4940 = vbcast.lane.b32.xlu0 %v4930, %s4939
    %v4941 = vpop.permute.xlu0 %4940
    %s4943 = sor.u32 256, 24
    %4944 = vbcast.lane.b32.xlu0 %v4930, %s4943
    %v4945 = vpop.permute.xlu0 %4944
    %s4947 = sor.u32 256, 32
    %4948 = vbcast.lane.b32.xlu0 %v4930, %s4947
    %v4949 = vpop.permute.xlu0 %4948
    %s4951 = sor.u32 256, 40
    %4952 = vbcast.lane.b32.xlu0 %v4930, %s4951
    %v4953 = vpop.permute.xlu0 %4952
    %s4955 = sor.u32 256, 48
    %4956 = vbcast.lane.b32.xlu0 %v4930, %s4955
    %v4957 = vpop.permute.xlu0 %4956
    %s4959 = sor.u32 256, 56
    %4960 = vbcast.lane.b32.xlu0 %v4930, %s4959
    %v4961 = vpop.permute.xlu0 %4960
    %s4963 = sor.u32 256, 64
    %4964 = vbcast.lane.b32.xlu0 %v4930, %s4963
    %v4965 = vpop.permute.xlu0 %4964
    %s4967 = sor.u32 256, 72
    %4968 = vbcast.lane.b32.xlu0 %v4930, %s4967
    %v4969 = vpop.permute.xlu0 %4968
    %s4971 = sor.u32 256, 80
    %4972 = vbcast.lane.b32.xlu0 %v4930, %s4971
    %v4973 = vpop.permute.xlu0 %4972
    %s4975 = sor.u32 256, 88
    %4976 = vbcast.lane.b32.xlu0 %v4930, %s4975
    %v4977 = vpop.permute.xlu0 %4976
    %s4979 = sor.u32 256, 96
    %4980 = vbcast.lane.b32.xlu0 %v4930, %s4979
    %v4981 = vpop.permute.xlu0 %4980
    %s4983 = sor.u32 256, 104
    %4984 = vbcast.lane.b32.xlu0 %v4930, %s4983
    %v4985 = vpop.permute.xlu0 %4984
    %s4987 = sor.u32 256, 112
    %4988 = vbcast.lane.b32.xlu0 %v4930, %s4987
    %v4989 = vpop.permute.xlu0 %4988
    %s4991 = sor.u32 256, 120
    %4992 = vbcast.lane.b32.xlu0 %v4930, %s4991
    %v4993 = vpop.permute.xlu0 %4992
    %v4994 = vlaneseq
    %v4995 = vshrl.u32 %v4994, 7
    %v4996 = vsub.s32 3, %v4995
    %v4997 = vrot.slane %v81, %v4996
    %4999 = vbcast.lane.b32.xlu0 %v4997, 256
    %v5000 = vpop.permute.xlu0 %4999
    %s5002 = sor.u32 256, 8
    %5003 = vbcast.lane.b32.xlu0 %v4997, %s5002
    %v5004 = vpop.permute.xlu0 %5003
    %s5006 = sor.u32 256, 16
    %5007 = vbcast.lane.b32.xlu0 %v4997, %s5006
    %v5008 = vpop.permute.xlu0 %5007
    %s5010 = sor.u32 256, 24
    %5011 = vbcast.lane.b32.xlu0 %v4997, %s5010
    %v5012 = vpop.permute.xlu0 %5011
    %s5014 = sor.u32 256, 32
    %5015 = vbcast.lane.b32.xlu0 %v4997, %s5014
    %v5016 = vpop.permute.xlu0 %5015
    %s5018 = sor.u32 256, 40
    %5019 = vbcast.lane.b32.xlu0 %v4997, %s5018
    %v5020 = vpop.permute.xlu0 %5019
    %s5022 = sor.u32 256, 48
    %5023 = vbcast.lane.b32.xlu0 %v4997, %s5022
    %v5024 = vpop.permute.xlu0 %5023
    %s5026 = sor.u32 256, 56
    %5027 = vbcast.lane.b32.xlu0 %v4997, %s5026
    %v5028 = vpop.permute.xlu0 %5027
    %s5030 = sor.u32 256, 64
    %5031 = vbcast.lane.b32.xlu0 %v4997, %s5030
    %v5032 = vpop.permute.xlu0 %5031
    %s5034 = sor.u32 256, 72
    %5035 = vbcast.lane.b32.xlu0 %v4997, %s5034
    %v5036 = vpop.permute.xlu0 %5035
    %s5038 = sor.u32 256, 80
    %5039 = vbcast.lane.b32.xlu0 %v4997, %s5038
    %v5040 = vpop.permute.xlu0 %5039
    %s5042 = sor.u32 256, 88
    %5043 = vbcast.lane.b32.xlu0 %v4997, %s5042
    %v5044 = vpop.permute.xlu0 %5043
    %s5046 = sor.u32 256, 96
    %5047 = vbcast.lane.b32.xlu0 %v4997, %s5046
    %v5048 = vpop.permute.xlu0 %5047
    %s5050 = sor.u32 256, 104
    %5051 = vbcast.lane.b32.xlu0 %v4997, %s5050
    %v5052 = vpop.permute.xlu0 %5051
    %s5054 = sor.u32 256, 112
    %5055 = vbcast.lane.b32.xlu0 %v4997, %s5054
    %v5056 = vpop.permute.xlu0 %5055
    %s5058 = sor.u32 256, 120
    %5059 = vbcast.lane.b32.xlu0 %v4997, %s5058
    %v5060 = vpop.permute.xlu0 %5059
    %v5061 = vlaneseq
    %v5062 = vshrl.u32 %v5061, 7
    %v5063 = vsub.s32 3, %v5062
    %v5064 = vrot.slane %v82, %v5063
    %5066 = vbcast.lane.b32.xlu0 %v5064, 256
    %v5067 = vpop.permute.xlu0 %5066
    %s5069 = sor.u32 256, 8
    %5070 = vbcast.lane.b32.xlu0 %v5064, %s5069
    %v5071 = vpop.permute.xlu0 %5070
    %s5073 = sor.u32 256, 16
    %5074 = vbcast.lane.b32.xlu0 %v5064, %s5073
    %v5075 = vpop.permute.xlu0 %5074
    %s5077 = sor.u32 256, 24
    %5078 = vbcast.lane.b32.xlu0 %v5064, %s5077
    %v5079 = vpop.permute.xlu0 %5078
    %s5081 = sor.u32 256, 32
    %5082 = vbcast.lane.b32.xlu0 %v5064, %s5081
    %v5083 = vpop.permute.xlu0 %5082
    %s5085 = sor.u32 256, 40
    %5086 = vbcast.lane.b32.xlu0 %v5064, %s5085
    %v5087 = vpop.permute.xlu0 %5086
    %s5089 = sor.u32 256, 48
    %5090 = vbcast.lane.b32.xlu0 %v5064, %s5089
    %v5091 = vpop.permute.xlu0 %5090
    %s5093 = sor.u32 256, 56
    %5094 = vbcast.lane.b32.xlu0 %v5064, %s5093
    %v5095 = vpop.permute.xlu0 %5094
    %s5097 = sor.u32 256, 64
    %5098 = vbcast.lane.b32.xlu0 %v5064, %s5097
    %v5099 = vpop.permute.xlu0 %5098
    %s5101 = sor.u32 256, 72
    %5102 = vbcast.lane.b32.xlu0 %v5064, %s5101
    %v5103 = vpop.permute.xlu0 %5102
    %s5105 = sor.u32 256, 80
    %5106 = vbcast.lane.b32.xlu0 %v5064, %s5105
    %v5107 = vpop.permute.xlu0 %5106
    %s5109 = sor.u32 256, 88
    %5110 = vbcast.lane.b32.xlu0 %v5064, %s5109
    %v5111 = vpop.permute.xlu0 %5110
    %s5113 = sor.u32 256, 96
    %5114 = vbcast.lane.b32.xlu0 %v5064, %s5113
    %v5115 = vpop.permute.xlu0 %5114
    %s5117 = sor.u32 256, 104
    %5118 = vbcast.lane.b32.xlu0 %v5064, %s5117
    %v5119 = vpop.permute.xlu0 %5118
    %s5121 = sor.u32 256, 112
    %5122 = vbcast.lane.b32.xlu0 %v5064, %s5121
    %v5123 = vpop.permute.xlu0 %5122
    %s5125 = sor.u32 256, 120
    %5126 = vbcast.lane.b32.xlu0 %v5064, %s5125
    %v5127 = vpop.permute.xlu0 %5126
    %v5128 = vlaneseq
    %v5129 = vshrl.u32 %v5128, 7
    %v5130 = vsub.s32 4, %v5129
    %v5131 = vrot.slane %v81, %v5130
    %5133 = vbcast.lane.b32.xlu0 %v5131, 256
    %v5134 = vpop.permute.xlu0 %5133
    %s5136 = sor.u32 256, 8
    %5137 = vbcast.lane.b32.xlu0 %v5131, %s5136
    %v5138 = vpop.permute.xlu0 %5137
    %s5140 = sor.u32 256, 16
    %5141 = vbcast.lane.b32.xlu0 %v5131, %s5140
    %v5142 = vpop.permute.xlu0 %5141
    %s5144 = sor.u32 256, 24
    %5145 = vbcast.lane.b32.xlu0 %v5131, %s5144
    %v5146 = vpop.permute.xlu0 %5145
    %s5148 = sor.u32 256, 32
    %5149 = vbcast.lane.b32.xlu0 %v5131, %s5148
    %v5150 = vpop.permute.xlu0 %5149
    %s5152 = sor.u32 256, 40
    %5153 = vbcast.lane.b32.xlu0 %v5131, %s5152
    %v5154 = vpop.permute.xlu0 %5153
    %s5156 = sor.u32 256, 48
    %5157 = vbcast.lane.b32.xlu0 %v5131, %s5156
    %v5158 = vpop.permute.xlu0 %5157
    %s5160 = sor.u32 256, 56
    %5161 = vbcast.lane.b32.xlu0 %v5131, %s5160
    %v5162 = vpop.permute.xlu0 %5161
    %s5164 = sor.u32 256, 64
    %5165 = vbcast.lane.b32.xlu0 %v5131, %s5164
    %v5166 = vpop.permute.xlu0 %5165
    %s5168 = sor.u32 256, 72
    %5169 = vbcast.lane.b32.xlu0 %v5131, %s5168
    %v5170 = vpop.permute.xlu0 %5169
    %s5172 = sor.u32 256, 80
    %5173 = vbcast.lane.b32.xlu0 %v5131, %s5172
    %v5174 = vpop.permute.xlu0 %5173
    %s5176 = sor.u32 256, 88
    %5177 = vbcast.lane.b32.xlu0 %v5131, %s5176
    %v5178 = vpop.permute.xlu0 %5177
    %s5180 = sor.u32 256, 96
    %5181 = vbcast.lane.b32.xlu0 %v5131, %s5180
    %v5182 = vpop.permute.xlu0 %5181
    %s5184 = sor.u32 256, 104
    %5185 = vbcast.lane.b32.xlu0 %v5131, %s5184
    %v5186 = vpop.permute.xlu0 %5185
    %s5188 = sor.u32 256, 112
    %5189 = vbcast.lane.b32.xlu0 %v5131, %s5188
    %v5190 = vpop.permute.xlu0 %5189
    %s5192 = sor.u32 256, 120
    %5193 = vbcast.lane.b32.xlu0 %v5131, %s5192
    %v5194 = vpop.permute.xlu0 %5193
    %v5195 = vlaneseq
    %v5196 = vshrl.u32 %v5195, 7
    %v5197 = vsub.s32 4, %v5196
    %v5198 = vrot.slane %v82, %v5197
    %5200 = vbcast.lane.b32.xlu0 %v5198, 256
    %v5201 = vpop.permute.xlu0 %5200
    %s5203 = sor.u32 256, 8
    %5204 = vbcast.lane.b32.xlu0 %v5198, %s5203
    %v5205 = vpop.permute.xlu0 %5204
    %s5207 = sor.u32 256, 16
    %5208 = vbcast.lane.b32.xlu0 %v5198, %s5207
    %v5209 = vpop.permute.xlu0 %5208
    %s5211 = sor.u32 256, 24
    %5212 = vbcast.lane.b32.xlu0 %v5198, %s5211
    %v5213 = vpop.permute.xlu0 %5212
    %s5215 = sor.u32 256, 32
    %5216 = vbcast.lane.b32.xlu0 %v5198, %s5215
    %v5217 = vpop.permute.xlu0 %5216
    %s5219 = sor.u32 256, 40
    %5220 = vbcast.lane.b32.xlu0 %v5198, %s5219
    %v5221 = vpop.permute.xlu0 %5220
    %s5223 = sor.u32 256, 48
    %5224 = vbcast.lane.b32.xlu0 %v5198, %s5223
    %v5225 = vpop.permute.xlu0 %5224
    %s5227 = sor.u32 256, 56
    %5228 = vbcast.lane.b32.xlu0 %v5198, %s5227
    %v5229 = vpop.permute.xlu0 %5228
    %s5231 = sor.u32 256, 64
    %5232 = vbcast.lane.b32.xlu0 %v5198, %s5231
    %v5233 = vpop.permute.xlu0 %5232
    %s5235 = sor.u32 256, 72
    %5236 = vbcast.lane.b32.xlu0 %v5198, %s5235
    %v5237 = vpop.permute.xlu0 %5236
    %s5239 = sor.u32 256, 80
    %5240 = vbcast.lane.b32.xlu0 %v5198, %s5239
    %v5241 = vpop.permute.xlu0 %5240
    %s5243 = sor.u32 256, 88
    %5244 = vbcast.lane.b32.xlu0 %v5198, %s5243
    %v5245 = vpop.permute.xlu0 %5244
    %s5247 = sor.u32 256, 96
    %5248 = vbcast.lane.b32.xlu0 %v5198, %s5247
    %v5249 = vpop.permute.xlu0 %5248
    %s5251 = sor.u32 256, 104
    %5252 = vbcast.lane.b32.xlu0 %v5198, %s5251
    %v5253 = vpop.permute.xlu0 %5252
    %s5255 = sor.u32 256, 112
    %5256 = vbcast.lane.b32.xlu0 %v5198, %s5255
    %v5257 = vpop.permute.xlu0 %5256
    %s5259 = sor.u32 256, 120
    %5260 = vbcast.lane.b32.xlu0 %v5198, %s5259
    %v5261 = vpop.permute.xlu0 %5260
    %v5262 = vlaneseq
    %v5263 = vshrl.u32 %v5262, 7
    %v5264 = vsub.s32 5, %v5263
    %v5265 = vrot.slane %v81, %v5264
    %5267 = vbcast.lane.b32.xlu0 %v5265, 256
    %v5268 = vpop.permute.xlu0 %5267
    %s5270 = sor.u32 256, 8
    %5271 = vbcast.lane.b32.xlu0 %v5265, %s5270
    %v5272 = vpop.permute.xlu0 %5271
    %s5274 = sor.u32 256, 16
    %5275 = vbcast.lane.b32.xlu0 %v5265, %s5274
    %v5276 = vpop.permute.xlu0 %5275
    %s5278 = sor.u32 256, 24
    %5279 = vbcast.lane.b32.xlu0 %v5265, %s5278
    %v5280 = vpop.permute.xlu0 %5279
    %s5282 = sor.u32 256, 32
    %5283 = vbcast.lane.b32.xlu0 %v5265, %s5282
    %v5284 = vpop.permute.xlu0 %5283
    %s5286 = sor.u32 256, 40
    %5287 = vbcast.lane.b32.xlu0 %v5265, %s5286
    %v5288 = vpop.permute.xlu0 %5287
    %s5290 = sor.u32 256, 48
    %5291 = vbcast.lane.b32.xlu0 %v5265, %s5290
    %v5292 = vpop.permute.xlu0 %5291
    %s5294 = sor.u32 256, 56
    %5295 = vbcast.lane.b32.xlu0 %v5265, %s5294
    %v5296 = vpop.permute.xlu0 %5295
    %s5298 = sor.u32 256, 64
    %5299 = vbcast.lane.b32.xlu0 %v5265, %s5298
    %v5300 = vpop.permute.xlu0 %5299
    %s5302 = sor.u32 256, 72
    %5303 = vbcast.lane.b32.xlu0 %v5265, %s5302
    %v5304 = vpop.permute.xlu0 %5303
    %s5306 = sor.u32 256, 80
    %5307 = vbcast.lane.b32.xlu0 %v5265, %s5306
    %v5308 = vpop.permute.xlu0 %5307
    %s5310 = sor.u32 256, 88
    %5311 = vbcast.lane.b32.xlu0 %v5265, %s5310
    %v5312 = vpop.permute.xlu0 %5311
    %s5314 = sor.u32 256, 96
    %5315 = vbcast.lane.b32.xlu0 %v5265, %s5314
    %v5316 = vpop.permute.xlu0 %5315
    %s5318 = sor.u32 256, 104
    %5319 = vbcast.lane.b32.xlu0 %v5265, %s5318
    %v5320 = vpop.permute.xlu0 %5319
    %s5322 = sor.u32 256, 112
    %5323 = vbcast.lane.b32.xlu0 %v5265, %s5322
    %v5324 = vpop.permute.xlu0 %5323
    %s5326 = sor.u32 256, 120
    %5327 = vbcast.lane.b32.xlu0 %v5265, %s5326
    %v5328 = vpop.permute.xlu0 %5327
    %v5329 = vlaneseq
    %v5330 = vshrl.u32 %v5329, 7
    %v5331 = vsub.s32 5, %v5330
    %v5332 = vrot.slane %v82, %v5331
    %5334 = vbcast.lane.b32.xlu0 %v5332, 256
    %v5335 = vpop.permute.xlu0 %5334
    %s5337 = sor.u32 256, 8
    %5338 = vbcast.lane.b32.xlu0 %v5332, %s5337
    %v5339 = vpop.permute.xlu0 %5338
    %s5341 = sor.u32 256, 16
    %5342 = vbcast.lane.b32.xlu0 %v5332, %s5341
    %v5343 = vpop.permute.xlu0 %5342
    %s5345 = sor.u32 256, 24
    %5346 = vbcast.lane.b32.xlu0 %v5332, %s5345
    %v5347 = vpop.permute.xlu0 %5346
    %s5349 = sor.u32 256, 32
    %5350 = vbcast.lane.b32.xlu0 %v5332, %s5349
    %v5351 = vpop.permute.xlu0 %5350
    %s5353 = sor.u32 256, 40
    %5354 = vbcast.lane.b32.xlu0 %v5332, %s5353
    %v5355 = vpop.permute.xlu0 %5354
    %s5357 = sor.u32 256, 48
    %5358 = vbcast.lane.b32.xlu0 %v5332, %s5357
    %v5359 = vpop.permute.xlu0 %5358
    %s5361 = sor.u32 256, 56
    %5362 = vbcast.lane.b32.xlu0 %v5332, %s5361
    %v5363 = vpop.permute.xlu0 %5362
    %s5365 = sor.u32 256, 64
    %5366 = vbcast.lane.b32.xlu0 %v5332, %s5365
    %v5367 = vpop.permute.xlu0 %5366
    %s5369 = sor.u32 256, 72
    %5370 = vbcast.lane.b32.xlu0 %v5332, %s5369
    %v5371 = vpop.permute.xlu0 %5370
    %s5373 = sor.u32 256, 80
    %5374 = vbcast.lane.b32.xlu0 %v5332, %s5373
    %v5375 = vpop.permute.xlu0 %5374
    %s5377 = sor.u32 256, 88
    %5378 = vbcast.lane.b32.xlu0 %v5332, %s5377
    %v5379 = vpop.permute.xlu0 %5378
    %s5381 = sor.u32 256, 96
    %5382 = vbcast.lane.b32.xlu0 %v5332, %s5381
    %v5383 = vpop.permute.xlu0 %5382
    %s5385 = sor.u32 256, 104
    %5386 = vbcast.lane.b32.xlu0 %v5332, %s5385
    %v5387 = vpop.permute.xlu0 %5386
    %s5389 = sor.u32 256, 112
    %5390 = vbcast.lane.b32.xlu0 %v5332, %s5389
    %v5391 = vpop.permute.xlu0 %5390
    %s5393 = sor.u32 256, 120
    %5394 = vbcast.lane.b32.xlu0 %v5332, %s5393
    %v5395 = vpop.permute.xlu0 %5394
    %v5396 = vlaneseq
    %v5397 = vshrl.u32 %v5396, 7
    %v5398 = vsub.s32 6, %v5397
    %v5399 = vrot.slane %v81, %v5398
    %5401 = vbcast.lane.b32.xlu0 %v5399, 256
    %v5402 = vpop.permute.xlu0 %5401
    %s5404 = sor.u32 256, 8
    %5405 = vbcast.lane.b32.xlu0 %v5399, %s5404
    %v5406 = vpop.permute.xlu0 %5405
    %s5408 = sor.u32 256, 16
    %5409 = vbcast.lane.b32.xlu0 %v5399, %s5408
    %v5410 = vpop.permute.xlu0 %5409
    %s5412 = sor.u32 256, 24
    %5413 = vbcast.lane.b32.xlu0 %v5399, %s5412
    %v5414 = vpop.permute.xlu0 %5413
    %s5416 = sor.u32 256, 32
    %5417 = vbcast.lane.b32.xlu0 %v5399, %s5416
    %v5418 = vpop.permute.xlu0 %5417
    %s5420 = sor.u32 256, 40
    %5421 = vbcast.lane.b32.xlu0 %v5399, %s5420
    %v5422 = vpop.permute.xlu0 %5421
    %s5424 = sor.u32 256, 48
    %5425 = vbcast.lane.b32.xlu0 %v5399, %s5424
    %v5426 = vpop.permute.xlu0 %5425
    %s5428 = sor.u32 256, 56
    %5429 = vbcast.lane.b32.xlu0 %v5399, %s5428
    %v5430 = vpop.permute.xlu0 %5429
    %s5432 = sor.u32 256, 64
    %5433 = vbcast.lane.b32.xlu0 %v5399, %s5432
    %v5434 = vpop.permute.xlu0 %5433
    %s5436 = sor.u32 256, 72
    %5437 = vbcast.lane.b32.xlu0 %v5399, %s5436
    %v5438 = vpop.permute.xlu0 %5437
    %s5440 = sor.u32 256, 80
    %5441 = vbcast.lane.b32.xlu0 %v5399, %s5440
    %v5442 = vpop.permute.xlu0 %5441
    %s5444 = sor.u32 256, 88
    %5445 = vbcast.lane.b32.xlu0 %v5399, %s5444
    %v5446 = vpop.permute.xlu0 %5445
    %s5448 = sor.u32 256, 96
    %5449 = vbcast.lane.b32.xlu0 %v5399, %s5448
    %v5450 = vpop.permute.xlu0 %5449
    %s5452 = sor.u32 256, 104
    %5453 = vbcast.lane.b32.xlu0 %v5399, %s5452
    %v5454 = vpop.permute.xlu0 %5453
    %s5456 = sor.u32 256, 112
    %5457 = vbcast.lane.b32.xlu0 %v5399, %s5456
    %v5458 = vpop.permute.xlu0 %5457
    %s5460 = sor.u32 256, 120
    %5461 = vbcast.lane.b32.xlu0 %v5399, %s5460
    %v5462 = vpop.permute.xlu0 %5461
    %v5463 = vlaneseq
    %v5464 = vshrl.u32 %v5463, 7
    %v5465 = vsub.s32 6, %v5464
    %v5466 = vrot.slane %v82, %v5465
    %5468 = vbcast.lane.b32.xlu0 %v5466, 256
    %v5469 = vpop.permute.xlu0 %5468
    %s5471 = sor.u32 256, 8
    %5472 = vbcast.lane.b32.xlu0 %v5466, %s5471
    %v5473 = vpop.permute.xlu0 %5472
    %s5475 = sor.u32 256, 16
    %5476 = vbcast.lane.b32.xlu0 %v5466, %s5475
    %v5477 = vpop.permute.xlu0 %5476
    %s5479 = sor.u32 256, 24
    %5480 = vbcast.lane.b32.xlu0 %v5466, %s5479
    %v5481 = vpop.permute.xlu0 %5480
    %s5483 = sor.u32 256, 32
    %5484 = vbcast.lane.b32.xlu0 %v5466, %s5483
    %v5485 = vpop.permute.xlu0 %5484
    %s5487 = sor.u32 256, 40
    %5488 = vbcast.lane.b32.xlu0 %v5466, %s5487
    %v5489 = vpop.permute.xlu0 %5488
    %s5491 = sor.u32 256, 48
    %5492 = vbcast.lane.b32.xlu0 %v5466, %s5491
    %v5493 = vpop.permute.xlu0 %5492
    %s5495 = sor.u32 256, 56
    %5496 = vbcast.lane.b32.xlu0 %v5466, %s5495
    %v5497 = vpop.permute.xlu0 %5496
    %s5499 = sor.u32 256, 64
    %5500 = vbcast.lane.b32.xlu0 %v5466, %s5499
    %v5501 = vpop.permute.xlu0 %5500
    %s5503 = sor.u32 256, 72
    %5504 = vbcast.lane.b32.xlu0 %v5466, %s5503
    %v5505 = vpop.permute.xlu0 %5504
    %s5507 = sor.u32 256, 80
    %5508 = vbcast.lane.b32.xlu0 %v5466, %s5507
    %v5509 = vpop.permute.xlu0 %5508
    %s5511 = sor.u32 256, 88
    %5512 = vbcast.lane.b32.xlu0 %v5466, %s5511
    %v5513 = vpop.permute.xlu0 %5512
    %s5515 = sor.u32 256, 96
    %5516 = vbcast.lane.b32.xlu0 %v5466, %s5515
    %v5517 = vpop.permute.xlu0 %5516
    %s5519 = sor.u32 256, 104
    %5520 = vbcast.lane.b32.xlu0 %v5466, %s5519
    %v5521 = vpop.permute.xlu0 %5520
    %s5523 = sor.u32 256, 112
    %5524 = vbcast.lane.b32.xlu0 %v5466, %s5523
    %v5525 = vpop.permute.xlu0 %5524
    %s5527 = sor.u32 256, 120
    %5528 = vbcast.lane.b32.xlu0 %v5466, %s5527
    %v5529 = vpop.permute.xlu0 %5528
    %v5530 = vlaneseq
    %v5531 = vshrl.u32 %v5530, 7
    %v5532 = vsub.s32 7, %v5531
    %v5533 = vrot.slane %v81, %v5532
    %5535 = vbcast.lane.b32.xlu0 %v5533, 256
    %v5536 = vpop.permute.xlu0 %5535
    %s5538 = sor.u32 256, 8
    %5539 = vbcast.lane.b32.xlu0 %v5533, %s5538
    %v5540 = vpop.permute.xlu0 %5539
    %s5542 = sor.u32 256, 16
    %5543 = vbcast.lane.b32.xlu0 %v5533, %s5542
    %v5544 = vpop.permute.xlu0 %5543
    %s5546 = sor.u32 256, 24
    %5547 = vbcast.lane.b32.xlu0 %v5533, %s5546
    %v5548 = vpop.permute.xlu0 %5547
    %s5550 = sor.u32 256, 32
    %5551 = vbcast.lane.b32.xlu0 %v5533, %s5550
    %v5552 = vpop.permute.xlu0 %5551
    %s5554 = sor.u32 256, 40
    %5555 = vbcast.lane.b32.xlu0 %v5533, %s5554
    %v5556 = vpop.permute.xlu0 %5555
    %s5558 = sor.u32 256, 48
    %5559 = vbcast.lane.b32.xlu0 %v5533, %s5558
    %v5560 = vpop.permute.xlu0 %5559
    %s5562 = sor.u32 256, 56
    %5563 = vbcast.lane.b32.xlu0 %v5533, %s5562
    %v5564 = vpop.permute.xlu0 %5563
    %s5566 = sor.u32 256, 64
    %5567 = vbcast.lane.b32.xlu0 %v5533, %s5566
    %v5568 = vpop.permute.xlu0 %5567
    %s5570 = sor.u32 256, 72
    %5571 = vbcast.lane.b32.xlu0 %v5533, %s5570
    %v5572 = vpop.permute.xlu0 %5571
    %s5574 = sor.u32 256, 80
    %5575 = vbcast.lane.b32.xlu0 %v5533, %s5574
    %v5576 = vpop.permute.xlu0 %5575
    %s5578 = sor.u32 256, 88
    %5579 = vbcast.lane.b32.xlu0 %v5533, %s5578
    %v5580 = vpop.permute.xlu0 %5579
    %s5582 = sor.u32 256, 96
    %5583 = vbcast.lane.b32.xlu0 %v5533, %s5582
    %v5584 = vpop.permute.xlu0 %5583
    %s5586 = sor.u32 256, 104
    %5587 = vbcast.lane.b32.xlu0 %v5533, %s5586
    %v5588 = vpop.permute.xlu0 %5587
    %s5590 = sor.u32 256, 112
    %5591 = vbcast.lane.b32.xlu0 %v5533, %s5590
    %v5592 = vpop.permute.xlu0 %5591
    %s5594 = sor.u32 256, 120
    %5595 = vbcast.lane.b32.xlu0 %v5533, %s5594
    %v5596 = vpop.permute.xlu0 %5595
    %v5597 = vlaneseq
    %v5598 = vshrl.u32 %v5597, 7
    %v5599 = vsub.s32 7, %v5598
    %v5600 = vrot.slane %v82, %v5599
    %5602 = vbcast.lane.b32.xlu0 %v5600, 256
    %v5603 = vpop.permute.xlu0 %5602
    %s5605 = sor.u32 256, 8
    %5606 = vbcast.lane.b32.xlu0 %v5600, %s5605
    %v5607 = vpop.permute.xlu0 %5606
    %s5609 = sor.u32 256, 16
    %5610 = vbcast.lane.b32.xlu0 %v5600, %s5609
    %v5611 = vpop.permute.xlu0 %5610
    %s5613 = sor.u32 256, 24
    %5614 = vbcast.lane.b32.xlu0 %v5600, %s5613
    %v5615 = vpop.permute.xlu0 %5614
    %s5617 = sor.u32 256, 32
    %5618 = vbcast.lane.b32.xlu0 %v5600, %s5617
    %v5619 = vpop.permute.xlu0 %5618
    %s5621 = sor.u32 256, 40
    %5622 = vbcast.lane.b32.xlu0 %v5600, %s5621
    %v5623 = vpop.permute.xlu0 %5622
    %s5625 = sor.u32 256, 48
    %5626 = vbcast.lane.b32.xlu0 %v5600, %s5625
    %v5627 = vpop.permute.xlu0 %5626
    %s5629 = sor.u32 256, 56
    %5630 = vbcast.lane.b32.xlu0 %v5600, %s5629
    %v5631 = vpop.permute.xlu0 %5630
    %s5633 = sor.u32 256, 64
    %5634 = vbcast.lane.b32.xlu0 %v5600, %s5633
    %v5635 = vpop.permute.xlu0 %5634
    %s5637 = sor.u32 256, 72
    %5638 = vbcast.lane.b32.xlu0 %v5600, %s5637
    %v5639 = vpop.permute.xlu0 %5638
    %s5641 = sor.u32 256, 80
    %5642 = vbcast.lane.b32.xlu0 %v5600, %s5641
    %v5643 = vpop.permute.xlu0 %5642
    %s5645 = sor.u32 256, 88
    %5646 = vbcast.lane.b32.xlu0 %v5600, %s5645
    %v5647 = vpop.permute.xlu0 %5646
    %s5649 = sor.u32 256, 96
    %5650 = vbcast.lane.b32.xlu0 %v5600, %s5649
    %v5651 = vpop.permute.xlu0 %5650
    %s5653 = sor.u32 256, 104
    %5654 = vbcast.lane.b32.xlu0 %v5600, %s5653
    %v5655 = vpop.permute.xlu0 %5654
    %s5657 = sor.u32 256, 112
    %5658 = vbcast.lane.b32.xlu0 %v5600, %s5657
    %v5659 = vpop.permute.xlu0 %5658
    %s5661 = sor.u32 256, 120
    %5662 = vbcast.lane.b32.xlu0 %v5600, %s5661
    %v5663 = vpop.permute.xlu0 %5662
    %v5664 = vlaneseq
    %v5665 = vshrl.u32 %v5664, 7
    %v5666 = vsub.s32 3, %v5665
    %v5667 = vrot.slane %v83, %v5666
    %v5668 = vmul.f32 %v4598, %v5667
    %v5669 = vmul.f32 %v4602, %v5667
    %v5670 = vmul.f32 %v4606, %v5667
    %v5671 = vmul.f32 %v4610, %v5667
    %v5672 = vmul.f32 %v4614, %v5667
    %v5673 = vmul.f32 %v4618, %v5667
    %v5674 = vmul.f32 %v4622, %v5667
    %v5675 = vmul.f32 %v4626, %v5667
    %v5676 = vmul.f32 %v4630, %v5667
    %v5677 = vmul.f32 %v4634, %v5667
    %v5678 = vmul.f32 %v4638, %v5667
    %v5679 = vmul.f32 %v4642, %v5667
    %v5680 = vmul.f32 %v4646, %v5667
    %v5681 = vmul.f32 %v4650, %v5667
    %v5682 = vmul.f32 %v4654, %v5667
    %v5683 = vmul.f32 %v4658, %v5667
    %v5684 = vmul.f32 %v4665, %v5667
    %v5685 = vmul.f32 %v4669, %v5667
    %v5686 = vmul.f32 %v4673, %v5667
    %v5687 = vmul.f32 %v4677, %v5667
    %v5688 = vmul.f32 %v4681, %v5667
    %v5689 = vmul.f32 %v4685, %v5667
    %v5690 = vmul.f32 %v4689, %v5667
    %v5691 = vmul.f32 %v4693, %v5667
    %v5692 = vmul.f32 %v4697, %v5667
    %v5693 = vmul.f32 %v4701, %v5667
    %v5694 = vmul.f32 %v4705, %v5667
    %v5695 = vmul.f32 %v4709, %v5667
    %v5696 = vmul.f32 %v4713, %v5667
    %v5697 = vmul.f32 %v4717, %v5667
    %v5698 = vmul.f32 %v4721, %v5667
    %v5699 = vmul.f32 %v4725, %v5667
    %v5700 = vmul.f32 %v4732, %v5667
    %v5701 = vmul.f32 %v4736, %v5667
    %v5702 = vmul.f32 %v4740, %v5667
    %v5703 = vmul.f32 %v4744, %v5667
    %v5704 = vmul.f32 %v4748, %v5667
    %v5705 = vmul.f32 %v4752, %v5667
    %v5706 = vmul.f32 %v4756, %v5667
    %v5707 = vmul.f32 %v4760, %v5667
    %v5708 = vmul.f32 %v4764, %v5667
    %v5709 = vmul.f32 %v4768, %v5667
    %v5710 = vmul.f32 %v4772, %v5667
    %v5711 = vmul.f32 %v4776, %v5667
    %v5712 = vmul.f32 %v4780, %v5667
    %v5713 = vmul.f32 %v4784, %v5667
    %v5714 = vmul.f32 %v4788, %v5667
    %v5715 = vmul.f32 %v4792, %v5667
    %v5716 = vmul.f32 %v4799, %v5667
    %v5717 = vmul.f32 %v4803, %v5667
    %v5718 = vmul.f32 %v4807, %v5667
    %v5719 = vmul.f32 %v4811, %v5667
    %v5720 = vmul.f32 %v4815, %v5667
    %v5721 = vmul.f32 %v4819, %v5667
    %v5722 = vmul.f32 %v4823, %v5667
    %v5723 = vmul.f32 %v4827, %v5667
    %v5724 = vmul.f32 %v4831, %v5667
    %v5725 = vmul.f32 %v4835, %v5667
    %v5726 = vmul.f32 %v4839, %v5667
    %v5727 = vmul.f32 %v4843, %v5667
    %v5728 = vmul.f32 %v4847, %v5667
    %v5729 = vmul.f32 %v4851, %v5667
    %v5730 = vmul.f32 %v4855, %v5667
    %v5731 = vmul.f32 %v4859, %v5667
    %v5732 = vmul.f32 %v4866, %v5667
    %v5733 = vmul.f32 %v4870, %v5667
    %v5734 = vmul.f32 %v4874, %v5667
    %v5735 = vmul.f32 %v4878, %v5667
    %v5736 = vmul.f32 %v4882, %v5667
    %v5737 = vmul.f32 %v4886, %v5667
    %v5738 = vmul.f32 %v4890, %v5667
    %v5739 = vmul.f32 %v4894, %v5667
    %v5740 = vmul.f32 %v4898, %v5667
    %v5741 = vmul.f32 %v4902, %v5667
    %v5742 = vmul.f32 %v4906, %v5667
    %v5743 = vmul.f32 %v4910, %v5667
    %v5744 = vmul.f32 %v4914, %v5667
    %v5745 = vmul.f32 %v4918, %v5667
    %v5746 = vmul.f32 %v4922, %v5667
    %v5747 = vmul.f32 %v4926, %v5667
    %v5748 = vmul.f32 %v4933, %v5667
    %v5749 = vmul.f32 %v4937, %v5667
    %v5750 = vmul.f32 %v4941, %v5667
    %v5751 = vmul.f32 %v4945, %v5667
    %v5752 = vmul.f32 %v4949, %v5667
    %v5753 = vmul.f32 %v4953, %v5667
    %v5754 = vmul.f32 %v4957, %v5667
    %v5755 = vmul.f32 %v4961, %v5667
    %v5756 = vmul.f32 %v4965, %v5667
    %v5757 = vmul.f32 %v4969, %v5667
    %v5758 = vmul.f32 %v4973, %v5667
    %v5759 = vmul.f32 %v4977, %v5667
    %v5760 = vmul.f32 %v4981, %v5667
    %v5761 = vmul.f32 %v4985, %v5667
    %v5762 = vmul.f32 %v4989, %v5667
    %v5763 = vmul.f32 %v4993, %v5667
    %v5764 = vmul.f32 %v5000, %v5667
    %v5765 = vmul.f32 %v5004, %v5667
    %v5766 = vmul.f32 %v5008, %v5667
    %v5767 = vmul.f32 %v5012, %v5667
    %v5768 = vmul.f32 %v5016, %v5667
    %v5769 = vmul.f32 %v5020, %v5667
    %v5770 = vmul.f32 %v5024, %v5667
    %v5771 = vmul.f32 %v5028, %v5667
    %v5772 = vmul.f32 %v5032, %v5667
    %v5773 = vmul.f32 %v5036, %v5667
    %v5774 = vmul.f32 %v5040, %v5667
    %v5775 = vmul.f32 %v5044, %v5667
    %v5776 = vmul.f32 %v5048, %v5667
    %v5777 = vmul.f32 %v5052, %v5667
    %v5778 = vmul.f32 %v5056, %v5667
    %v5779 = vmul.f32 %v5060, %v5667
    %v5780 = vmul.f32 %v5067, %v5667
    %v5781 = vmul.f32 %v5071, %v5667
    %v5782 = vmul.f32 %v5075, %v5667
    %v5783 = vmul.f32 %v5079, %v5667
    %v5784 = vmul.f32 %v5083, %v5667
    %v5785 = vmul.f32 %v5087, %v5667
    %v5786 = vmul.f32 %v5091, %v5667
    %v5787 = vmul.f32 %v5095, %v5667
    %v5788 = vmul.f32 %v5099, %v5667
    %v5789 = vmul.f32 %v5103, %v5667
    %v5790 = vmul.f32 %v5107, %v5667
    %v5791 = vmul.f32 %v5111, %v5667
    %v5792 = vmul.f32 %v5115, %v5667
    %v5793 = vmul.f32 %v5119, %v5667
    %v5794 = vmul.f32 %v5123, %v5667
    %v5795 = vmul.f32 %v5127, %v5667
    %v5796 = vmul.f32 %v5134, %v5667
    %v5797 = vmul.f32 %v5138, %v5667
    %v5798 = vmul.f32 %v5142, %v5667
    %v5799 = vmul.f32 %v5146, %v5667
    %v5800 = vmul.f32 %v5150, %v5667
    %v5801 = vmul.f32 %v5154, %v5667
    %v5802 = vmul.f32 %v5158, %v5667
    %v5803 = vmul.f32 %v5162, %v5667
    %v5804 = vmul.f32 %v5166, %v5667
    %v5805 = vmul.f32 %v5170, %v5667
    %v5806 = vmul.f32 %v5174, %v5667
    %v5807 = vmul.f32 %v5178, %v5667
    %v5808 = vmul.f32 %v5182, %v5667
    %v5809 = vmul.f32 %v5186, %v5667
    %v5810 = vmul.f32 %v5190, %v5667
    %v5811 = vmul.f32 %v5194, %v5667
    %v5812 = vmul.f32 %v5201, %v5667
    %v5813 = vmul.f32 %v5205, %v5667
    %v5814 = vmul.f32 %v5209, %v5667
    %v5815 = vmul.f32 %v5213, %v5667
    %v5816 = vmul.f32 %v5217, %v5667
    %v5817 = vmul.f32 %v5221, %v5667
    %v5818 = vmul.f32 %v5225, %v5667
    %v5819 = vmul.f32 %v5229, %v5667
    %v5820 = vmul.f32 %v5233, %v5667
    %v5821 = vmul.f32 %v5237, %v5667
    %v5822 = vmul.f32 %v5241, %v5667
    %v5823 = vmul.f32 %v5245, %v5667
    %v5824 = vmul.f32 %v5249, %v5667
    %v5825 = vmul.f32 %v5253, %v5667
    %v5826 = vmul.f32 %v5257, %v5667
    %v5827 = vmul.f32 %v5261, %v5667
    %v5828 = vmul.f32 %v5268, %v5667
    %v5829 = vmul.f32 %v5272, %v5667
    %v5830 = vmul.f32 %v5276, %v5667
    %v5831 = vmul.f32 %v5280, %v5667
    %v5832 = vmul.f32 %v5284, %v5667
    %v5833 = vmul.f32 %v5288, %v5667
    %v5834 = vmul.f32 %v5292, %v5667
    %v5835 = vmul.f32 %v5296, %v5667
    %v5836 = vmul.f32 %v5300, %v5667
    %v5837 = vmul.f32 %v5304, %v5667
    %v5838 = vmul.f32 %v5308, %v5667
    %v5839 = vmul.f32 %v5312, %v5667
    %v5840 = vmul.f32 %v5316, %v5667
    %v5841 = vmul.f32 %v5320, %v5667
    %v5842 = vmul.f32 %v5324, %v5667
    %v5843 = vmul.f32 %v5328, %v5667
    %v5844 = vmul.f32 %v5335, %v5667
    %v5845 = vmul.f32 %v5339, %v5667
    %v5846 = vmul.f32 %v5343, %v5667
    %v5847 = vmul.f32 %v5347, %v5667
    %v5848 = vmul.f32 %v5351, %v5667
    %v5849 = vmul.f32 %v5355, %v5667
    %v5850 = vmul.f32 %v5359, %v5667
    %v5851 = vmul.f32 %v5363, %v5667
    %v5852 = vmul.f32 %v5367, %v5667
    %v5853 = vmul.f32 %v5371, %v5667
    %v5854 = vmul.f32 %v5375, %v5667
    %v5855 = vmul.f32 %v5379, %v5667
    %v5856 = vmul.f32 %v5383, %v5667
    %v5857 = vmul.f32 %v5387, %v5667
    %v5858 = vmul.f32 %v5391, %v5667
    %v5859 = vmul.f32 %v5395, %v5667
    %v5860 = vmul.f32 %v5402, %v5667
    %v5861 = vmul.f32 %v5406, %v5667
    %v5862 = vmul.f32 %v5410, %v5667
    %v5863 = vmul.f32 %v5414, %v5667
    %v5864 = vmul.f32 %v5418, %v5667
    %v5865 = vmul.f32 %v5422, %v5667
    %v5866 = vmul.f32 %v5426, %v5667
    %v5867 = vmul.f32 %v5430, %v5667
    %v5868 = vmul.f32 %v5434, %v5667
    %v5869 = vmul.f32 %v5438, %v5667
    %v5870 = vmul.f32 %v5442, %v5667
    %v5871 = vmul.f32 %v5446, %v5667
    %v5872 = vmul.f32 %v5450, %v5667
    %v5873 = vmul.f32 %v5454, %v5667
    %v5874 = vmul.f32 %v5458, %v5667
    %v5875 = vmul.f32 %v5462, %v5667
    %v5876 = vmul.f32 %v5469, %v5667
    %v5877 = vmul.f32 %v5473, %v5667
    %v5878 = vmul.f32 %v5477, %v5667
    %v5879 = vmul.f32 %v5481, %v5667
    %v5880 = vmul.f32 %v5485, %v5667
    %v5881 = vmul.f32 %v5489, %v5667
    %v5882 = vmul.f32 %v5493, %v5667
    %v5883 = vmul.f32 %v5497, %v5667
    %v5884 = vmul.f32 %v5501, %v5667
    %v5885 = vmul.f32 %v5505, %v5667
    %v5886 = vmul.f32 %v5509, %v5667
    %v5887 = vmul.f32 %v5513, %v5667
    %v5888 = vmul.f32 %v5517, %v5667
    %v5889 = vmul.f32 %v5521, %v5667
    %v5890 = vmul.f32 %v5525, %v5667
    %v5891 = vmul.f32 %v5529, %v5667
    %v5892 = vmul.f32 %v5536, %v5667
    %v5893 = vmul.f32 %v5540, %v5667
    %v5894 = vmul.f32 %v5544, %v5667
    %v5895 = vmul.f32 %v5548, %v5667
    %v5896 = vmul.f32 %v5552, %v5667
    %v5897 = vmul.f32 %v5556, %v5667
    %v5898 = vmul.f32 %v5560, %v5667
    %v5899 = vmul.f32 %v5564, %v5667
    %v5900 = vmul.f32 %v5568, %v5667
    %v5901 = vmul.f32 %v5572, %v5667
    %v5902 = vmul.f32 %v5576, %v5667
    %v5903 = vmul.f32 %v5580, %v5667
    %v5904 = vmul.f32 %v5584, %v5667
    %v5905 = vmul.f32 %v5588, %v5667
    %v5906 = vmul.f32 %v5592, %v5667
    %v5907 = vmul.f32 %v5596, %v5667
    %v5908 = vmul.f32 %v5603, %v5667
    %v5909 = vmul.f32 %v5607, %v5667
    %v5910 = vmul.f32 %v5611, %v5667
    %v5911 = vmul.f32 %v5615, %v5667
    %v5912 = vmul.f32 %v5619, %v5667
    %v5913 = vmul.f32 %v5623, %v5667
    %v5914 = vmul.f32 %v5627, %v5667
    %v5915 = vmul.f32 %v5631, %v5667
    %v5916 = vmul.f32 %v5635, %v5667
    %v5917 = vmul.f32 %v5639, %v5667
    %v5918 = vmul.f32 %v5643, %v5667
    %v5919 = vmul.f32 %v5647, %v5667
    %v5920 = vmul.f32 %v5651, %v5667
    %v5921 = vmul.f32 %v5655, %v5667
    %v5922 = vmul.f32 %v5659, %v5667
    %v5923 = vmul.f32 %v5663, %v5667
    %v5924 = vadd.f32 %v4336, %v5668
    %v5925 = vadd.f32 %v4337, %v5669
    %v5926 = vadd.f32 %v4338, %v5670
    %v5927 = vadd.f32 %v4339, %v5671
    %v5928 = vadd.f32 %v4340, %v5672
    %v5929 = vadd.f32 %v4341, %v5673
    %v5930 = vadd.f32 %v4342, %v5674
    %v5931 = vadd.f32 %v4343, %v5675
    %v5932 = vadd.f32 %v4344, %v5676
    %v5933 = vadd.f32 %v4345, %v5677
    %v5934 = vadd.f32 %v4346, %v5678
    %v5935 = vadd.f32 %v4347, %v5679
    %v5936 = vadd.f32 %v4348, %v5680
    %v5937 = vadd.f32 %v4349, %v5681
    %v5938 = vadd.f32 %v4350, %v5682
    %v5939 = vadd.f32 %v4351, %v5683
    %v5940 = vadd.f32 %v4352, %v5684
    %v5941 = vadd.f32 %v4353, %v5685
    %v5942 = vadd.f32 %v4354, %v5686
    %v5943 = vadd.f32 %v4355, %v5687
    %v5944 = vadd.f32 %v4356, %v5688
    %v5945 = vadd.f32 %v4357, %v5689
    %v5946 = vadd.f32 %v4358, %v5690
    %v5947 = vadd.f32 %v4359, %v5691
    %v5948 = vadd.f32 %v4360, %v5692
    %v5949 = vadd.f32 %v4361, %v5693
    %v5950 = vadd.f32 %v4362, %v5694
    %v5951 = vadd.f32 %v4363, %v5695
    %v5952 = vadd.f32 %v4364, %v5696
    %v5953 = vadd.f32 %v4365, %v5697
    %v5954 = vadd.f32 %v4366, %v5698
    %v5955 = vadd.f32 %v4367, %v5699
    %v5956 = vadd.f32 %v4368, %v5700
    %v5957 = vadd.f32 %v4369, %v5701
    %v5958 = vadd.f32 %v4370, %v5702
    %v5959 = vadd.f32 %v4371, %v5703
    %v5960 = vadd.f32 %v4372, %v5704
    %v5961 = vadd.f32 %v4373, %v5705
    %v5962 = vadd.f32 %v4374, %v5706
    %v5963 = vadd.f32 %v4375, %v5707
    %v5964 = vadd.f32 %v4376, %v5708
    %v5965 = vadd.f32 %v4377, %v5709
    %v5966 = vadd.f32 %v4378, %v5710
    %v5967 = vadd.f32 %v4379, %v5711
    %v5968 = vadd.f32 %v4380, %v5712
    %v5969 = vadd.f32 %v4381, %v5713
    %v5970 = vadd.f32 %v4382, %v5714
    %v5971 = vadd.f32 %v4383, %v5715
    %v5972 = vadd.f32 %v4384, %v5716
    %v5973 = vadd.f32 %v4385, %v5717
    %v5974 = vadd.f32 %v4386, %v5718
    %v5975 = vadd.f32 %v4387, %v5719
    %v5976 = vadd.f32 %v4388, %v5720
    %v5977 = vadd.f32 %v4389, %v5721
    %v5978 = vadd.f32 %v4390, %v5722
    %v5979 = vadd.f32 %v4391, %v5723
    %v5980 = vadd.f32 %v4392, %v5724
    %v5981 = vadd.f32 %v4393, %v5725
    %v5982 = vadd.f32 %v4394, %v5726
    %v5983 = vadd.f32 %v4395, %v5727
    %v5984 = vadd.f32 %v4396, %v5728
    %v5985 = vadd.f32 %v4397, %v5729
    %v5986 = vadd.f32 %v4398, %v5730
    %v5987 = vadd.f32 %v4399, %v5731
    %v5988 = vadd.f32 %v4400, %v5732
    %v5989 = vadd.f32 %v4401, %v5733
    %v5990 = vadd.f32 %v4402, %v5734
    %v5991 = vadd.f32 %v4403, %v5735
    %v5992 = vadd.f32 %v4404, %v5736
    %v5993 = vadd.f32 %v4405, %v5737
    %v5994 = vadd.f32 %v4406, %v5738
    %v5995 = vadd.f32 %v4407, %v5739
    %v5996 = vadd.f32 %v4408, %v5740
    %v5997 = vadd.f32 %v4409, %v5741
    %v5998 = vadd.f32 %v4410, %v5742
    %v5999 = vadd.f32 %v4411, %v5743
    %v6000 = vadd.f32 %v4412, %v5744
    %v6001 = vadd.f32 %v4413, %v5745
    %v6002 = vadd.f32 %v4414, %v5746
    %v6003 = vadd.f32 %v4415, %v5747
    %v6004 = vadd.f32 %v4416, %v5748
    %v6005 = vadd.f32 %v4417, %v5749
    %v6006 = vadd.f32 %v4418, %v5750
    %v6007 = vadd.f32 %v4419, %v5751
    %v6008 = vadd.f32 %v4420, %v5752
    %v6009 = vadd.f32 %v4421, %v5753
    %v6010 = vadd.f32 %v4422, %v5754
    %v6011 = vadd.f32 %v4423, %v5755
    %v6012 = vadd.f32 %v4424, %v5756
    %v6013 = vadd.f32 %v4425, %v5757
    %v6014 = vadd.f32 %v4426, %v5758
    %v6015 = vadd.f32 %v4427, %v5759
    %v6016 = vadd.f32 %v4428, %v5760
    %v6017 = vadd.f32 %v4429, %v5761
    %v6018 = vadd.f32 %v4430, %v5762
    %v6019 = vadd.f32 %v4431, %v5763
    %v6020 = vadd.f32 %v4432, %v5764
    %v6021 = vadd.f32 %v4433, %v5765
    %v6022 = vadd.f32 %v4434, %v5766
    %v6023 = vadd.f32 %v4435, %v5767
    %v6024 = vadd.f32 %v4436, %v5768
    %v6025 = vadd.f32 %v4437, %v5769
    %v6026 = vadd.f32 %v4438, %v5770
    %v6027 = vadd.f32 %v4439, %v5771
    %v6028 = vadd.f32 %v4440, %v5772
    %v6029 = vadd.f32 %v4441, %v5773
    %v6030 = vadd.f32 %v4442, %v5774
    %v6031 = vadd.f32 %v4443, %v5775
    %v6032 = vadd.f32 %v4444, %v5776
    %v6033 = vadd.f32 %v4445, %v5777
    %v6034 = vadd.f32 %v4446, %v5778
    %v6035 = vadd.f32 %v4447, %v5779
    %v6036 = vadd.f32 %v4448, %v5780
    %v6037 = vadd.f32 %v4449, %v5781
    %v6038 = vadd.f32 %v4450, %v5782
    %v6039 = vadd.f32 %v4451, %v5783
    %v6040 = vadd.f32 %v4452, %v5784
    %v6041 = vadd.f32 %v4453, %v5785
    %v6042 = vadd.f32 %v4454, %v5786
    %v6043 = vadd.f32 %v4455, %v5787
    %v6044 = vadd.f32 %v4456, %v5788
    %v6045 = vadd.f32 %v4457, %v5789
    %v6046 = vadd.f32 %v4458, %v5790
    %v6047 = vadd.f32 %v4459, %v5791
    %v6048 = vadd.f32 %v4460, %v5792
    %v6049 = vadd.f32 %v4461, %v5793
    %v6050 = vadd.f32 %v4462, %v5794
    %v6051 = vadd.f32 %v4463, %v5795
    %v6052 = vadd.f32 %v4464, %v5796
    %v6053 = vadd.f32 %v4465, %v5797
    %v6054 = vadd.f32 %v4466, %v5798
    %v6055 = vadd.f32 %v4467, %v5799
    %v6056 = vadd.f32 %v4468, %v5800
    %v6057 = vadd.f32 %v4469, %v5801
    %v6058 = vadd.f32 %v4470, %v5802
    %v6059 = vadd.f32 %v4471, %v5803
    %v6060 = vadd.f32 %v4472, %v5804
    %v6061 = vadd.f32 %v4473, %v5805
    %v6062 = vadd.f32 %v4474, %v5806
    %v6063 = vadd.f32 %v4475, %v5807
    %v6064 = vadd.f32 %v4476, %v5808
    %v6065 = vadd.f32 %v4477, %v5809
    %v6066 = vadd.f32 %v4478, %v5810
    %v6067 = vadd.f32 %v4479, %v5811
    %v6068 = vadd.f32 %v4480, %v5812
    %v6069 = vadd.f32 %v4481, %v5813
    %v6070 = vadd.f32 %v4482, %v5814
    %v6071 = vadd.f32 %v4483, %v5815
    %v6072 = vadd.f32 %v4484, %v5816
    %v6073 = vadd.f32 %v4485, %v5817
    %v6074 = vadd.f32 %v4486, %v5818
    %v6075 = vadd.f32 %v4487, %v5819
    %v6076 = vadd.f32 %v4488, %v5820
    %v6077 = vadd.f32 %v4489, %v5821
    %v6078 = vadd.f32 %v4490, %v5822
    %v6079 = vadd.f32 %v4491, %v5823
    %v6080 = vadd.f32 %v4492, %v5824
    %v6081 = vadd.f32 %v4493, %v5825
    %v6082 = vadd.f32 %v4494, %v5826
    %v6083 = vadd.f32 %v4495, %v5827
    %v6084 = vadd.f32 %v4496, %v5828
    %v6085 = vadd.f32 %v4497, %v5829
    %v6086 = vadd.f32 %v4498, %v5830
    %v6087 = vadd.f32 %v4499, %v5831
    %v6088 = vadd.f32 %v4500, %v5832
    %v6089 = vadd.f32 %v4501, %v5833
    %v6090 = vadd.f32 %v4502, %v5834
    %v6091 = vadd.f32 %v4503, %v5835
    %v6092 = vadd.f32 %v4504, %v5836
    %v6093 = vadd.f32 %v4505, %v5837
    %v6094 = vadd.f32 %v4506, %v5838
    %v6095 = vadd.f32 %v4507, %v5839
    %v6096 = vadd.f32 %v4508, %v5840
    %v6097 = vadd.f32 %v4509, %v5841
    %v6098 = vadd.f32 %v4510, %v5842
    %v6099 = vadd.f32 %v4511, %v5843
    %v6100 = vadd.f32 %v4512, %v5844
    %v6101 = vadd.f32 %v4513, %v5845
    %v6102 = vadd.f32 %v4514, %v5846
    %v6103 = vadd.f32 %v4515, %v5847
    %v6104 = vadd.f32 %v4516, %v5848
    %v6105 = vadd.f32 %v4517, %v5849
    %v6106 = vadd.f32 %v4518, %v5850
    %v6107 = vadd.f32 %v4519, %v5851
    %v6108 = vadd.f32 %v4520, %v5852
    %v6109 = vadd.f32 %v4521, %v5853
    %v6110 = vadd.f32 %v4522, %v5854
    %v6111 = vadd.f32 %v4523, %v5855
    %v6112 = vadd.f32 %v4524, %v5856
    %v6113 = vadd.f32 %v4525, %v5857
    %v6114 = vadd.f32 %v4526, %v5858
    %v6115 = vadd.f32 %v4527, %v5859
    %v6116 = vadd.f32 %v4528, %v5860
    %v6117 = vadd.f32 %v4529, %v5861
    %v6118 = vadd.f32 %v4530, %v5862
    %v6119 = vadd.f32 %v4531, %v5863
    %v6120 = vadd.f32 %v4532, %v5864
    %v6121 = vadd.f32 %v4533, %v5865
    %v6122 = vadd.f32 %v4534, %v5866
    %v6123 = vadd.f32 %v4535, %v5867
    %v6124 = vadd.f32 %v4536, %v5868
    %v6125 = vadd.f32 %v4537, %v5869
    %v6126 = vadd.f32 %v4538, %v5870
    %v6127 = vadd.f32 %v4539, %v5871
    %v6128 = vadd.f32 %v4540, %v5872
    %v6129 = vadd.f32 %v4541, %v5873
    %v6130 = vadd.f32 %v4542, %v5874
    %v6131 = vadd.f32 %v4543, %v5875
    %v6132 = vadd.f32 %v4544, %v5876
    %v6133 = vadd.f32 %v4545, %v5877
    %v6134 = vadd.f32 %v4546, %v5878
    %v6135 = vadd.f32 %v4547, %v5879
    %v6136 = vadd.f32 %v4548, %v5880
    %v6137 = vadd.f32 %v4549, %v5881
    %v6138 = vadd.f32 %v4550, %v5882
    %v6139 = vadd.f32 %v4551, %v5883
    %v6140 = vadd.f32 %v4552, %v5884
    %v6141 = vadd.f32 %v4553, %v5885
    %v6142 = vadd.f32 %v4554, %v5886
    %v6143 = vadd.f32 %v4555, %v5887
    %v6144 = vadd.f32 %v4556, %v5888
    %v6145 = vadd.f32 %v4557, %v5889
    %v6146 = vadd.f32 %v4558, %v5890
    %v6147 = vadd.f32 %v4559, %v5891
    %v6148 = vadd.f32 %v4560, %v5892
    %v6149 = vadd.f32 %v4561, %v5893
    %v6150 = vadd.f32 %v4562, %v5894
    %v6151 = vadd.f32 %v4563, %v5895
    %v6152 = vadd.f32 %v4564, %v5896
    %v6153 = vadd.f32 %v4565, %v5897
    %v6154 = vadd.f32 %v4566, %v5898
    %v6155 = vadd.f32 %v4567, %v5899
    %v6156 = vadd.f32 %v4568, %v5900
    %v6157 = vadd.f32 %v4569, %v5901
    %v6158 = vadd.f32 %v4570, %v5902
    %v6159 = vadd.f32 %v4571, %v5903
    %v6160 = vadd.f32 %v4572, %v5904
    %v6161 = vadd.f32 %v4573, %v5905
    %v6162 = vadd.f32 %v4574, %v5906
    %v6163 = vadd.f32 %v4575, %v5907
    %v6164 = vadd.f32 %v4576, %v5908
    %v6165 = vadd.f32 %v4577, %v5909
    %v6166 = vadd.f32 %v4578, %v5910
    %v6167 = vadd.f32 %v4579, %v5911
    %v6168 = vadd.f32 %v4580, %v5912
    %v6169 = vadd.f32 %v4581, %v5913
    %v6170 = vadd.f32 %v4582, %v5914
    %v6171 = vadd.f32 %v4583, %v5915
    %v6172 = vadd.f32 %v4584, %v5916
    %v6173 = vadd.f32 %v4585, %v5917
    %v6174 = vadd.f32 %v4586, %v5918
    %v6175 = vadd.f32 %v4587, %v5919
    %v6176 = vadd.f32 %v4588, %v5920
    %v6177 = vadd.f32 %v4589, %v5921
    %v6178 = vadd.f32 %v4590, %v5922
    %v6179 = vadd.f32 %v4591, %v5923
    %v6180 = vmax.f32 %v5924, 0.0
    %v6181 = vmax.f32 %v5925, 0.0
    %v6182 = vmax.f32 %v5926, 0.0
    %v6183 = vmax.f32 %v5927, 0.0
    %v6184 = vmax.f32 %v5928, 0.0
    %v6185 = vmax.f32 %v5929, 0.0
    %v6186 = vmax.f32 %v5930, 0.0
    %v6187 = vmax.f32 %v5931, 0.0
    %v6188 = vmax.f32 %v5932, 0.0
    %v6189 = vmax.f32 %v5933, 0.0
    %v6190 = vmax.f32 %v5934, 0.0
    %v6191 = vmax.f32 %v5935, 0.0
    %v6192 = vmax.f32 %v5936, 0.0
    %v6193 = vmax.f32 %v5937, 0.0
    %v6194 = vmax.f32 %v5938, 0.0
    %v6195 = vmax.f32 %v5939, 0.0
    %v6196 = vmax.f32 %v5940, 0.0
    %v6197 = vmax.f32 %v5941, 0.0
    %v6198 = vmax.f32 %v5942, 0.0
    %v6199 = vmax.f32 %v5943, 0.0
    %v6200 = vmax.f32 %v5944, 0.0
    %v6201 = vmax.f32 %v5945, 0.0
    %v6202 = vmax.f32 %v5946, 0.0
    %v6203 = vmax.f32 %v5947, 0.0
    %v6204 = vmax.f32 %v5948, 0.0
    %v6205 = vmax.f32 %v5949, 0.0
    %v6206 = vmax.f32 %v5950, 0.0
    %v6207 = vmax.f32 %v5951, 0.0
    %v6208 = vmax.f32 %v5952, 0.0
    %v6209 = vmax.f32 %v5953, 0.0
    %v6210 = vmax.f32 %v5954, 0.0
    %v6211 = vmax.f32 %v5955, 0.0
    %v6212 = vmax.f32 %v5956, 0.0
    %v6213 = vmax.f32 %v5957, 0.0
    %v6214 = vmax.f32 %v5958, 0.0
    %v6215 = vmax.f32 %v5959, 0.0
    %v6216 = vmax.f32 %v5960, 0.0
    %v6217 = vmax.f32 %v5961, 0.0
    %v6218 = vmax.f32 %v5962, 0.0
    %v6219 = vmax.f32 %v5963, 0.0
    %v6220 = vmax.f32 %v5964, 0.0
    %v6221 = vmax.f32 %v5965, 0.0
    %v6222 = vmax.f32 %v5966, 0.0
    %v6223 = vmax.f32 %v5967, 0.0
    %v6224 = vmax.f32 %v5968, 0.0
    %v6225 = vmax.f32 %v5969, 0.0
    %v6226 = vmax.f32 %v5970, 0.0
    %v6227 = vmax.f32 %v5971, 0.0
    %v6228 = vmax.f32 %v5972, 0.0
    %v6229 = vmax.f32 %v5973, 0.0
    %v6230 = vmax.f32 %v5974, 0.0
    %v6231 = vmax.f32 %v5975, 0.0
    %v6232 = vmax.f32 %v5976, 0.0
    %v6233 = vmax.f32 %v5977, 0.0
    %v6234 = vmax.f32 %v5978, 0.0
    %v6235 = vmax.f32 %v5979, 0.0
    %v6236 = vmax.f32 %v5980, 0.0
    %v6237 = vmax.f32 %v5981, 0.0
    %v6238 = vmax.f32 %v5982, 0.0
    %v6239 = vmax.f32 %v5983, 0.0
    %v6240 = vmax.f32 %v5984, 0.0
    %v6241 = vmax.f32 %v5985, 0.0
    %v6242 = vmax.f32 %v5986, 0.0
    %v6243 = vmax.f32 %v5987, 0.0
    %v6244 = vmax.f32 %v5988, 0.0
    %v6245 = vmax.f32 %v5989, 0.0
    %v6246 = vmax.f32 %v5990, 0.0
    %v6247 = vmax.f32 %v5991, 0.0
    %v6248 = vmax.f32 %v5992, 0.0
    %v6249 = vmax.f32 %v5993, 0.0
    %v6250 = vmax.f32 %v5994, 0.0
    %v6251 = vmax.f32 %v5995, 0.0
    %v6252 = vmax.f32 %v5996, 0.0
    %v6253 = vmax.f32 %v5997, 0.0
    %v6254 = vmax.f32 %v5998, 0.0
    %v6255 = vmax.f32 %v5999, 0.0
    %v6256 = vmax.f32 %v6000, 0.0
    %v6257 = vmax.f32 %v6001, 0.0
    %v6258 = vmax.f32 %v6002, 0.0
    %v6259 = vmax.f32 %v6003, 0.0
    %v6260 = vmax.f32 %v6004, 0.0
    %v6261 = vmax.f32 %v6005, 0.0
    %v6262 = vmax.f32 %v6006, 0.0
    %v6263 = vmax.f32 %v6007, 0.0
    %v6264 = vmax.f32 %v6008, 0.0
    %v6265 = vmax.f32 %v6009, 0.0
    %v6266 = vmax.f32 %v6010, 0.0
    %v6267 = vmax.f32 %v6011, 0.0
    %v6268 = vmax.f32 %v6012, 0.0
    %v6269 = vmax.f32 %v6013, 0.0
    %v6270 = vmax.f32 %v6014, 0.0
    %v6271 = vmax.f32 %v6015, 0.0
    %v6272 = vmax.f32 %v6016, 0.0
    %v6273 = vmax.f32 %v6017, 0.0
    %v6274 = vmax.f32 %v6018, 0.0
    %v6275 = vmax.f32 %v6019, 0.0
    %v6276 = vmax.f32 %v6020, 0.0
    %v6277 = vmax.f32 %v6021, 0.0
    %v6278 = vmax.f32 %v6022, 0.0
    %v6279 = vmax.f32 %v6023, 0.0
    %v6280 = vmax.f32 %v6024, 0.0
    %v6281 = vmax.f32 %v6025, 0.0
    %v6282 = vmax.f32 %v6026, 0.0
    %v6283 = vmax.f32 %v6027, 0.0
    %v6284 = vmax.f32 %v6028, 0.0
    %v6285 = vmax.f32 %v6029, 0.0
    %v6286 = vmax.f32 %v6030, 0.0
    %v6287 = vmax.f32 %v6031, 0.0
    %v6288 = vmax.f32 %v6032, 0.0
    %v6289 = vmax.f32 %v6033, 0.0
    %v6290 = vmax.f32 %v6034, 0.0
    %v6291 = vmax.f32 %v6035, 0.0
    %v6292 = vmax.f32 %v6036, 0.0
    %v6293 = vmax.f32 %v6037, 0.0
    %v6294 = vmax.f32 %v6038, 0.0
    %v6295 = vmax.f32 %v6039, 0.0
    %v6296 = vmax.f32 %v6040, 0.0
    %v6297 = vmax.f32 %v6041, 0.0
    %v6298 = vmax.f32 %v6042, 0.0
    %v6299 = vmax.f32 %v6043, 0.0
    %v6300 = vmax.f32 %v6044, 0.0
    %v6301 = vmax.f32 %v6045, 0.0
    %v6302 = vmax.f32 %v6046, 0.0
    %v6303 = vmax.f32 %v6047, 0.0
    %v6304 = vmax.f32 %v6048, 0.0
    %v6305 = vmax.f32 %v6049, 0.0
    %v6306 = vmax.f32 %v6050, 0.0
    %v6307 = vmax.f32 %v6051, 0.0
    %v6308 = vmax.f32 %v6052, 0.0
    %v6309 = vmax.f32 %v6053, 0.0
    %v6310 = vmax.f32 %v6054, 0.0
    %v6311 = vmax.f32 %v6055, 0.0
    %v6312 = vmax.f32 %v6056, 0.0
    %v6313 = vmax.f32 %v6057, 0.0
    %v6314 = vmax.f32 %v6058, 0.0
    %v6315 = vmax.f32 %v6059, 0.0
    %v6316 = vmax.f32 %v6060, 0.0
    %v6317 = vmax.f32 %v6061, 0.0
    %v6318 = vmax.f32 %v6062, 0.0
    %v6319 = vmax.f32 %v6063, 0.0
    %v6320 = vmax.f32 %v6064, 0.0
    %v6321 = vmax.f32 %v6065, 0.0
    %v6322 = vmax.f32 %v6066, 0.0
    %v6323 = vmax.f32 %v6067, 0.0
    %v6324 = vmax.f32 %v6068, 0.0
    %v6325 = vmax.f32 %v6069, 0.0
    %v6326 = vmax.f32 %v6070, 0.0
    %v6327 = vmax.f32 %v6071, 0.0
    %v6328 = vmax.f32 %v6072, 0.0
    %v6329 = vmax.f32 %v6073, 0.0
    %v6330 = vmax.f32 %v6074, 0.0
    %v6331 = vmax.f32 %v6075, 0.0
    %v6332 = vmax.f32 %v6076, 0.0
    %v6333 = vmax.f32 %v6077, 0.0
    %v6334 = vmax.f32 %v6078, 0.0
    %v6335 = vmax.f32 %v6079, 0.0
    %v6336 = vmax.f32 %v6080, 0.0
    %v6337 = vmax.f32 %v6081, 0.0
    %v6338 = vmax.f32 %v6082, 0.0
    %v6339 = vmax.f32 %v6083, 0.0
    %v6340 = vmax.f32 %v6084, 0.0
    %v6341 = vmax.f32 %v6085, 0.0
    %v6342 = vmax.f32 %v6086, 0.0
    %v6343 = vmax.f32 %v6087, 0.0
    %v6344 = vmax.f32 %v6088, 0.0
    %v6345 = vmax.f32 %v6089, 0.0
    %v6346 = vmax.f32 %v6090, 0.0
    %v6347 = vmax.f32 %v6091, 0.0
    %v6348 = vmax.f32 %v6092, 0.0
    %v6349 = vmax.f32 %v6093, 0.0
    %v6350 = vmax.f32 %v6094, 0.0
    %v6351 = vmax.f32 %v6095, 0.0
    %v6352 = vmax.f32 %v6096, 0.0
    %v6353 = vmax.f32 %v6097, 0.0
    %v6354 = vmax.f32 %v6098, 0.0
    %v6355 = vmax.f32 %v6099, 0.0
    %v6356 = vmax.f32 %v6100, 0.0
    %v6357 = vmax.f32 %v6101, 0.0
    %v6358 = vmax.f32 %v6102, 0.0
    %v6359 = vmax.f32 %v6103, 0.0
    %v6360 = vmax.f32 %v6104, 0.0
    %v6361 = vmax.f32 %v6105, 0.0
    %v6362 = vmax.f32 %v6106, 0.0
    %v6363 = vmax.f32 %v6107, 0.0
    %v6364 = vmax.f32 %v6108, 0.0
    %v6365 = vmax.f32 %v6109, 0.0
    %v6366 = vmax.f32 %v6110, 0.0
    %v6367 = vmax.f32 %v6111, 0.0
    %v6368 = vmax.f32 %v6112, 0.0
    %v6369 = vmax.f32 %v6113, 0.0
    %v6370 = vmax.f32 %v6114, 0.0
    %v6371 = vmax.f32 %v6115, 0.0
    %v6372 = vmax.f32 %v6116, 0.0
    %v6373 = vmax.f32 %v6117, 0.0
    %v6374 = vmax.f32 %v6118, 0.0
    %v6375 = vmax.f32 %v6119, 0.0
    %v6376 = vmax.f32 %v6120, 0.0
    %v6377 = vmax.f32 %v6121, 0.0
    %v6378 = vmax.f32 %v6122, 0.0
    %v6379 = vmax.f32 %v6123, 0.0
    %v6380 = vmax.f32 %v6124, 0.0
    %v6381 = vmax.f32 %v6125, 0.0
    %v6382 = vmax.f32 %v6126, 0.0
    %v6383 = vmax.f32 %v6127, 0.0
    %v6384 = vmax.f32 %v6128, 0.0
    %v6385 = vmax.f32 %v6129, 0.0
    %v6386 = vmax.f32 %v6130, 0.0
    %v6387 = vmax.f32 %v6131, 0.0
    %v6388 = vmax.f32 %v6132, 0.0
    %v6389 = vmax.f32 %v6133, 0.0
    %v6390 = vmax.f32 %v6134, 0.0
    %v6391 = vmax.f32 %v6135, 0.0
    %v6392 = vmax.f32 %v6136, 0.0
    %v6393 = vmax.f32 %v6137, 0.0
    %v6394 = vmax.f32 %v6138, 0.0
    %v6395 = vmax.f32 %v6139, 0.0
    %v6396 = vmax.f32 %v6140, 0.0
    %v6397 = vmax.f32 %v6141, 0.0
    %v6398 = vmax.f32 %v6142, 0.0
    %v6399 = vmax.f32 %v6143, 0.0
    %v6400 = vmax.f32 %v6144, 0.0
    %v6401 = vmax.f32 %v6145, 0.0
    %v6402 = vmax.f32 %v6146, 0.0
    %v6403 = vmax.f32 %v6147, 0.0
    %v6404 = vmax.f32 %v6148, 0.0
    %v6405 = vmax.f32 %v6149, 0.0
    %v6406 = vmax.f32 %v6150, 0.0
    %v6407 = vmax.f32 %v6151, 0.0
    %v6408 = vmax.f32 %v6152, 0.0
    %v6409 = vmax.f32 %v6153, 0.0
    %v6410 = vmax.f32 %v6154, 0.0
    %v6411 = vmax.f32 %v6155, 0.0
    %v6412 = vmax.f32 %v6156, 0.0
    %v6413 = vmax.f32 %v6157, 0.0
    %v6414 = vmax.f32 %v6158, 0.0
    %v6415 = vmax.f32 %v6159, 0.0
    %v6416 = vmax.f32 %v6160, 0.0
    %v6417 = vmax.f32 %v6161, 0.0
    %v6418 = vmax.f32 %v6162, 0.0
    %v6419 = vmax.f32 %v6163, 0.0
    %v6420 = vmax.f32 %v6164, 0.0
    %v6421 = vmax.f32 %v6165, 0.0
    %v6422 = vmax.f32 %v6166, 0.0
    %v6423 = vmax.f32 %v6167, 0.0
    %v6424 = vmax.f32 %v6168, 0.0
    %v6425 = vmax.f32 %v6169, 0.0
    %v6426 = vmax.f32 %v6170, 0.0
    %v6427 = vmax.f32 %v6171, 0.0
    %v6428 = vmax.f32 %v6172, 0.0
    %v6429 = vmax.f32 %v6173, 0.0
    %v6430 = vmax.f32 %v6174, 0.0
    %v6431 = vmax.f32 %v6175, 0.0
    %v6432 = vmax.f32 %v6176, 0.0
    %v6433 = vmax.f32 %v6177, 0.0
    %v6434 = vmax.f32 %v6178, 0.0
    %v6435 = vmax.f32 %v6179, 0.0
    %v6436 = vadd.f32 %v6180, %v6181
    %v6437 = vadd.f32 %v6436, %v6182
    %v6438 = vadd.f32 %v6437, %v6183
    %v6439 = vadd.f32 %v6438, %v6184
    %v6440 = vadd.f32 %v6439, %v6185
    %v6441 = vadd.f32 %v6440, %v6186
    %v6442 = vadd.f32 %v6441, %v6187
    %v6443 = vadd.f32 %v6442, %v6188
    %v6444 = vadd.f32 %v6443, %v6189
    %v6445 = vadd.f32 %v6444, %v6190
    %v6446 = vadd.f32 %v6445, %v6191
    %v6447 = vadd.f32 %v6446, %v6192
    %v6448 = vadd.f32 %v6447, %v6193
    %v6449 = vadd.f32 %v6448, %v6194
    %v6450 = vadd.f32 %v6449, %v6195
    %v6451 = vadd.f32 %v6450, %v6196
    %v6452 = vadd.f32 %v6451, %v6197
    %v6453 = vadd.f32 %v6452, %v6198
    %v6454 = vadd.f32 %v6453, %v6199
    %v6455 = vadd.f32 %v6454, %v6200
    %v6456 = vadd.f32 %v6455, %v6201
    %v6457 = vadd.f32 %v6456, %v6202
    %v6458 = vadd.f32 %v6457, %v6203
    %v6459 = vadd.f32 %v6458, %v6204
    %v6460 = vadd.f32 %v6459, %v6205
    %v6461 = vadd.f32 %v6460, %v6206
    %v6462 = vadd.f32 %v6461, %v6207
    %v6463 = vadd.f32 %v6462, %v6208
    %v6464 = vadd.f32 %v6463, %v6209
    %v6465 = vadd.f32 %v6464, %v6210
    %v6466 = vadd.f32 %v6465, %v6211
    %v6467 = vrot.slane %v6466, 4
    %v6468 = vadd.f32 %v6466, %v6467
    %v6469 = vrot.slane %v6468, 2
    %v6470 = vadd.f32 %v6468, %v6469
    %v6471 = vrot.slane %v6470, 1
    %v6472 = vadd.f32 %v6470, %v6471
    %v6473 = vadd.f32 %v6212, %v6213
    %v6474 = vadd.f32 %v6473, %v6214
    %v6475 = vadd.f32 %v6474, %v6215
    %v6476 = vadd.f32 %v6475, %v6216
    %v6477 = vadd.f32 %v6476, %v6217
    %v6478 = vadd.f32 %v6477, %v6218
    %v6479 = vadd.f32 %v6478, %v6219
    %v6480 = vadd.f32 %v6479, %v6220
    %v6481 = vadd.f32 %v6480, %v6221
    %v6482 = vadd.f32 %v6481, %v6222
    %v6483 = vadd.f32 %v6482, %v6223
    %v6484 = vadd.f32 %v6483, %v6224
    %v6485 = vadd.f32 %v6484, %v6225
    %v6486 = vadd.f32 %v6485, %v6226
    %v6487 = vadd.f32 %v6486, %v6227
    %v6488 = vadd.f32 %v6487, %v6228
    %v6489 = vadd.f32 %v6488, %v6229
    %v6490 = vadd.f32 %v6489, %v6230
    %v6491 = vadd.f32 %v6490, %v6231
    %v6492 = vadd.f32 %v6491, %v6232
    %v6493 = vadd.f32 %v6492, %v6233
    %v6494 = vadd.f32 %v6493, %v6234
    %v6495 = vadd.f32 %v6494, %v6235
    %v6496 = vadd.f32 %v6495, %v6236
    %v6497 = vadd.f32 %v6496, %v6237
    %v6498 = vadd.f32 %v6497, %v6238
    %v6499 = vadd.f32 %v6498, %v6239
    %v6500 = vadd.f32 %v6499, %v6240
    %v6501 = vadd.f32 %v6500, %v6241
    %v6502 = vadd.f32 %v6501, %v6242
    %v6503 = vadd.f32 %v6502, %v6243
    %v6504 = vrot.slane %v6503, 4
    %v6505 = vadd.f32 %v6503, %v6504
    %v6506 = vrot.slane %v6505, 2
    %v6507 = vadd.f32 %v6505, %v6506
    %v6508 = vrot.slane %v6507, 1
    %v6509 = vadd.f32 %v6507, %v6508
    %v6510 = vadd.f32 %v6244, %v6245
    %v6511 = vadd.f32 %v6510, %v6246
    %v6512 = vadd.f32 %v6511, %v6247
    %v6513 = vadd.f32 %v6512, %v6248
    %v6514 = vadd.f32 %v6513, %v6249
    %v6515 = vadd.f32 %v6514, %v6250
    %v6516 = vadd.f32 %v6515, %v6251
    %v6517 = vadd.f32 %v6516, %v6252
    %v6518 = vadd.f32 %v6517, %v6253
    %v6519 = vadd.f32 %v6518, %v6254
    %v6520 = vadd.f32 %v6519, %v6255
    %v6521 = vadd.f32 %v6520, %v6256
    %v6522 = vadd.f32 %v6521, %v6257
    %v6523 = vadd.f32 %v6522, %v6258
    %v6524 = vadd.f32 %v6523, %v6259
    %v6525 = vadd.f32 %v6524, %v6260
    %v6526 = vadd.f32 %v6525, %v6261
    %v6527 = vadd.f32 %v6526, %v6262
    %v6528 = vadd.f32 %v6527, %v6263
    %v6529 = vadd.f32 %v6528, %v6264
    %v6530 = vadd.f32 %v6529, %v6265
    %v6531 = vadd.f32 %v6530, %v6266
    %v6532 = vadd.f32 %v6531, %v6267
    %v6533 = vadd.f32 %v6532, %v6268
    %v6534 = vadd.f32 %v6533, %v6269
    %v6535 = vadd.f32 %v6534, %v6270
    %v6536 = vadd.f32 %v6535, %v6271
    %v6537 = vadd.f32 %v6536, %v6272
    %v6538 = vadd.f32 %v6537, %v6273
    %v6539 = vadd.f32 %v6538, %v6274
    %v6540 = vadd.f32 %v6539, %v6275
    %v6541 = vrot.slane %v6540, 4
    %v6542 = vadd.f32 %v6540, %v6541
    %v6543 = vrot.slane %v6542, 2
    %v6544 = vadd.f32 %v6542, %v6543
    %v6545 = vrot.slane %v6544, 1
    %v6546 = vadd.f32 %v6544, %v6545
    %v6547 = vadd.f32 %v6276, %v6277
    %v6548 = vadd.f32 %v6547, %v6278
    %v6549 = vadd.f32 %v6548, %v6279
    %v6550 = vadd.f32 %v6549, %v6280
    %v6551 = vadd.f32 %v6550, %v6281
    %v6552 = vadd.f32 %v6551, %v6282
    %v6553 = vadd.f32 %v6552, %v6283
    %v6554 = vadd.f32 %v6553, %v6284
    %v6555 = vadd.f32 %v6554, %v6285
    %v6556 = vadd.f32 %v6555, %v6286
    %v6557 = vadd.f32 %v6556, %v6287
    %v6558 = vadd.f32 %v6557, %v6288
    %v6559 = vadd.f32 %v6558, %v6289
    %v6560 = vadd.f32 %v6559, %v6290
    %v6561 = vadd.f32 %v6560, %v6291
    %v6562 = vadd.f32 %v6561, %v6292
    %v6563 = vadd.f32 %v6562, %v6293
    %v6564 = vadd.f32 %v6563, %v6294
    %v6565 = vadd.f32 %v6564, %v6295
    %v6566 = vadd.f32 %v6565, %v6296
    %v6567 = vadd.f32 %v6566, %v6297
    %v6568 = vadd.f32 %v6567, %v6298
    %v6569 = vadd.f32 %v6568, %v6299
    %v6570 = vadd.f32 %v6569, %v6300
    %v6571 = vadd.f32 %v6570, %v6301
    %v6572 = vadd.f32 %v6571, %v6302
    %v6573 = vadd.f32 %v6572, %v6303
    %v6574 = vadd.f32 %v6573, %v6304
    %v6575 = vadd.f32 %v6574, %v6305
    %v6576 = vadd.f32 %v6575, %v6306
    %v6577 = vadd.f32 %v6576, %v6307
    %v6578 = vrot.slane %v6577, 4
    %v6579 = vadd.f32 %v6577, %v6578
    %v6580 = vrot.slane %v6579, 2
    %v6581 = vadd.f32 %v6579, %v6580
    %v6582 = vrot.slane %v6581, 1
    %v6583 = vadd.f32 %v6581, %v6582
    %v6584 = vadd.f32 %v6308, %v6309
    %v6585 = vadd.f32 %v6584, %v6310
    %v6586 = vadd.f32 %v6585, %v6311
    %v6587 = vadd.f32 %v6586, %v6312
    %v6588 = vadd.f32 %v6587, %v6313
    %v6589 = vadd.f32 %v6588, %v6314
    %v6590 = vadd.f32 %v6589, %v6315
    %v6591 = vadd.f32 %v6590, %v6316
    %v6592 = vadd.f32 %v6591, %v6317
    %v6593 = vadd.f32 %v6592, %v6318
    %v6594 = vadd.f32 %v6593, %v6319
    %v6595 = vadd.f32 %v6594, %v6320
    %v6596 = vadd.f32 %v6595, %v6321
    %v6597 = vadd.f32 %v6596, %v6322
    %v6598 = vadd.f32 %v6597, %v6323
    %v6599 = vadd.f32 %v6598, %v6324
    %v6600 = vadd.f32 %v6599, %v6325
    %v6601 = vadd.f32 %v6600, %v6326
    %v6602 = vadd.f32 %v6601, %v6327
    %v6603 = vadd.f32 %v6602, %v6328
    %v6604 = vadd.f32 %v6603, %v6329
    %v6605 = vadd.f32 %v6604, %v6330
    %v6606 = vadd.f32 %v6605, %v6331
    %v6607 = vadd.f32 %v6606, %v6332
    %v6608 = vadd.f32 %v6607, %v6333
    %v6609 = vadd.f32 %v6608, %v6334
    %v6610 = vadd.f32 %v6609, %v6335
    %v6611 = vadd.f32 %v6610, %v6336
    %v6612 = vadd.f32 %v6611, %v6337
    %v6613 = vadd.f32 %v6612, %v6338
    %v6614 = vadd.f32 %v6613, %v6339
    %v6615 = vrot.slane %v6614, 4
    %v6616 = vadd.f32 %v6614, %v6615
    %v6617 = vrot.slane %v6616, 2
    %v6618 = vadd.f32 %v6616, %v6617
    %v6619 = vrot.slane %v6618, 1
    %v6620 = vadd.f32 %v6618, %v6619
    %v6621 = vadd.f32 %v6340, %v6341
    %v6622 = vadd.f32 %v6621, %v6342
    %v6623 = vadd.f32 %v6622, %v6343
    %v6624 = vadd.f32 %v6623, %v6344
    %v6625 = vadd.f32 %v6624, %v6345
    %v6626 = vadd.f32 %v6625, %v6346
    %v6627 = vadd.f32 %v6626, %v6347
    %v6628 = vadd.f32 %v6627, %v6348
    %v6629 = vadd.f32 %v6628, %v6349
    %v6630 = vadd.f32 %v6629, %v6350
    %v6631 = vadd.f32 %v6630, %v6351
    %v6632 = vadd.f32 %v6631, %v6352
    %v6633 = vadd.f32 %v6632, %v6353
    %v6634 = vadd.f32 %v6633, %v6354
    %v6635 = vadd.f32 %v6634, %v6355
    %v6636 = vadd.f32 %v6635, %v6356
    %v6637 = vadd.f32 %v6636, %v6357
    %v6638 = vadd.f32 %v6637, %v6358
    %v6639 = vadd.f32 %v6638, %v6359
    %v6640 = vadd.f32 %v6639, %v6360
    %v6641 = vadd.f32 %v6640, %v6361
    %v6642 = vadd.f32 %v6641, %v6362
    %v6643 = vadd.f32 %v6642, %v6363
    %v6644 = vadd.f32 %v6643, %v6364
    %v6645 = vadd.f32 %v6644, %v6365
    %v6646 = vadd.f32 %v6645, %v6366
    %v6647 = vadd.f32 %v6646, %v6367
    %v6648 = vadd.f32 %v6647, %v6368
    %v6649 = vadd.f32 %v6648, %v6369
    %v6650 = vadd.f32 %v6649, %v6370
    %v6651 = vadd.f32 %v6650, %v6371
    %v6652 = vrot.slane %v6651, 4
    %v6653 = vadd.f32 %v6651, %v6652
    %v6654 = vrot.slane %v6653, 2
    %v6655 = vadd.f32 %v6653, %v6654
    %v6656 = vrot.slane %v6655, 1
    %v6657 = vadd.f32 %v6655, %v6656
    %v6658 = vadd.f32 %v6372, %v6373
    %v6659 = vadd.f32 %v6658, %v6374
    %v6660 = vadd.f32 %v6659, %v6375
    %v6661 = vadd.f32 %v6660, %v6376
    %v6662 = vadd.f32 %v6661, %v6377
    %v6663 = vadd.f32 %v6662, %v6378
    %v6664 = vadd.f32 %v6663, %v6379
    %v6665 = vadd.f32 %v6664, %v6380
    %v6666 = vadd.f32 %v6665, %v6381
    %v6667 = vadd.f32 %v6666, %v6382
    %v6668 = vadd.f32 %v6667, %v6383
    %v6669 = vadd.f32 %v6668, %v6384
    %v6670 = vadd.f32 %v6669, %v6385
    %v6671 = vadd.f32 %v6670, %v6386
    %v6672 = vadd.f32 %v6671, %v6387
    %v6673 = vadd.f32 %v6672, %v6388
    %v6674 = vadd.f32 %v6673, %v6389
    %v6675 = vadd.f32 %v6674, %v6390
    %v6676 = vadd.f32 %v6675, %v6391
    %v6677 = vadd.f32 %v6676, %v6392
    %v6678 = vadd.f32 %v6677, %v6393
    %v6679 = vadd.f32 %v6678, %v6394
    %v6680 = vadd.f32 %v6679, %v6395
    %v6681 = vadd.f32 %v6680, %v6396
    %v6682 = vadd.f32 %v6681, %v6397
    %v6683 = vadd.f32 %v6682, %v6398
    %v6684 = vadd.f32 %v6683, %v6399
    %v6685 = vadd.f32 %v6684, %v6400
    %v6686 = vadd.f32 %v6685, %v6401
    %v6687 = vadd.f32 %v6686, %v6402
    %v6688 = vadd.f32 %v6687, %v6403
    %v6689 = vrot.slane %v6688, 4
    %v6690 = vadd.f32 %v6688, %v6689
    %v6691 = vrot.slane %v6690, 2
    %v6692 = vadd.f32 %v6690, %v6691
    %v6693 = vrot.slane %v6692, 1
    %v6694 = vadd.f32 %v6692, %v6693
    %v6695 = vadd.f32 %v6404, %v6405
    %v6696 = vadd.f32 %v6695, %v6406
    %v6697 = vadd.f32 %v6696, %v6407
    %v6698 = vadd.f32 %v6697, %v6408
    %v6699 = vadd.f32 %v6698, %v6409
    %v6700 = vadd.f32 %v6699, %v6410
    %v6701 = vadd.f32 %v6700, %v6411
    %v6702 = vadd.f32 %v6701, %v6412
    %v6703 = vadd.f32 %v6702, %v6413
    %v6704 = vadd.f32 %v6703, %v6414
    %v6705 = vadd.f32 %v6704, %v6415
    %v6706 = vadd.f32 %v6705, %v6416
    %v6707 = vadd.f32 %v6706, %v6417
    %v6708 = vadd.f32 %v6707, %v6418
    %v6709 = vadd.f32 %v6708, %v6419
    %v6710 = vadd.f32 %v6709, %v6420
    %v6711 = vadd.f32 %v6710, %v6421
    %v6712 = vadd.f32 %v6711, %v6422
    %v6713 = vadd.f32 %v6712, %v6423
    %v6714 = vadd.f32 %v6713, %v6424
    %v6715 = vadd.f32 %v6714, %v6425
    %v6716 = vadd.f32 %v6715, %v6426
    %v6717 = vadd.f32 %v6716, %v6427
    %v6718 = vadd.f32 %v6717, %v6428
    %v6719 = vadd.f32 %v6718, %v6429
    %v6720 = vadd.f32 %v6719, %v6430
    %v6721 = vadd.f32 %v6720, %v6431
    %v6722 = vadd.f32 %v6721, %v6432
    %v6723 = vadd.f32 %v6722, %v6433
    %v6724 = vadd.f32 %v6723, %v6434
    %v6725 = vadd.f32 %v6724, %v6435
    %v6726 = vrot.slane %v6725, 4
    %v6727 = vadd.f32 %v6725, %v6726
    %v6728 = vrot.slane %v6727, 2
    %v6729 = vadd.f32 %v6727, %v6728
    %v6730 = vrot.slane %v6729, 1
    %v6731 = vadd.f32 %v6729, %v6730
    %v6732 = vrcp.pop 256.0
    %v6733 = vmul.f32 %v6472, %v6732
    %v6734 = vmul.f32 %v6509, %v6732
    %v6735 = vmul.f32 %v6546, %v6732
    %v6736 = vmul.f32 %v6583, %v6732
    %v6737 = vmul.f32 %v6620, %v6732
    %v6738 = vmul.f32 %v6657, %v6732
    %v6739 = vmul.f32 %v6694, %v6732
    %v6740 = vmul.f32 %v6731, %v6732
    %v6741 = vld [vmem:[#allocation7] sm:$0xff]
    %v6742 = vld [vmem:[#allocation7 + $0x8] sm:$0xff]
    %v6743 = vld [vmem:[#allocation7 + $0x10] sm:$0xff]
    %v6744 = vld [vmem:[#allocation7 + $0x18] sm:$0xff]
    %v6745 = vld [vmem:[#allocation7 + $0x20] sm:$0xff]
    %v6746 = vld [vmem:[#allocation7 + $0x28] sm:$0xff]
    %v6747 = vld [vmem:[#allocation7 + $0x30] sm:$0xff]
    %v6748 = vld [vmem:[#allocation7 + $0x38] sm:$0xff]
    %v6749 = vld [vmem:[#allocation7 + $0x40] sm:$0xff]
    %v6750 = vld [vmem:[#allocation7 + $0x48] sm:$0xff]
    %v6751 = vld [vmem:[#allocation7 + $0x50] sm:$0xff]
    %v6752 = vld [vmem:[#allocation7 + $0x58] sm:$0xff]
    %v6753 = vld [vmem:[#allocation7 + $0x60] sm:$0xff]
    %v6754 = vld [vmem:[#allocation7 + $0x68] sm:$0xff]
    %v6755 = vld [vmem:[#allocation7 + $0x70] sm:$0xff]
    %v6756 = vld [vmem:[#allocation7 + $0x78] sm:$0xff]
    %v6757 = vld [vmem:[#allocation7 + $0x80] sm:$0xff]
    %v6758 = vld [vmem:[#allocation7 + $0x88] sm:$0xff]
    %v6759 = vld [vmem:[#allocation7 + $0x90] sm:$0xff]
    %v6760 = vld [vmem:[#allocation7 + $0x98] sm:$0xff]
    %v6761 = vld [vmem:[#allocation7 + $0xa0] sm:$0xff]
    %v6762 = vld [vmem:[#allocation7 + $0xa8] sm:$0xff]
    %v6763 = vld [vmem:[#allocation7 + $0xb0] sm:$0xff]
    %v6764 = vld [vmem:[#allocation7 + $0xb8] sm:$0xff]
    %v6765 = vld [vmem:[#allocation7 + $0xc0] sm:$0xff]
    %v6766 = vld [vmem:[#allocation7 + $0xc8] sm:$0xff]
    %v6767 = vld [vmem:[#allocation7 + $0xd0] sm:$0xff]
    %v6768 = vld [vmem:[#allocation7 + $0xd8] sm:$0xff]
    %v6769 = vld [vmem:[#allocation7 + $0xe0] sm:$0xff]
    %v6770 = vld [vmem:[#allocation7 + $0xe8] sm:$0xff]
    %v6771 = vld [vmem:[#allocation7 + $0xf0] sm:$0xff]
    %v6772 = vld [vmem:[#allocation7 + $0xf8] sm:$0xff]
    %v6773 = vld [vmem:[#allocation7 + $0x100] sm:$0xff]
    %v6774 = vld [vmem:[#allocation7 + $0x108] sm:$0xff]
    %v6775 = vld [vmem:[#allocation7 + $0x110] sm:$0xff]
    %v6776 = vld [vmem:[#allocation7 + $0x118] sm:$0xff]
    %v6777 = vld [vmem:[#allocation7 + $0x120] sm:$0xff]
    %v6778 = vld [vmem:[#allocation7 + $0x128] sm:$0xff]
    %v6779 = vld [vmem:[#allocation7 + $0x130] sm:$0xff]
    %v6780 = vld [vmem:[#allocation7 + $0x138] sm:$0xff]
    %v6781 = vld [vmem:[#allocation7 + $0x140] sm:$0xff]
    %v6782 = vld [vmem:[#allocation7 + $0x148] sm:$0xff]
    %v6783 = vld [vmem:[#allocation7 + $0x150] sm:$0xff]
    %v6784 = vld [vmem:[#allocation7 + $0x158] sm:$0xff]
    %v6785 = vld [vmem:[#allocation7 + $0x160] sm:$0xff]
    %v6786 = vld [vmem:[#allocation7 + $0x168] sm:$0xff]
    %v6787 = vld [vmem:[#allocation7 + $0x170] sm:$0xff]
    %v6788 = vld [vmem:[#allocation7 + $0x178] sm:$0xff]
    %v6789 = vld [vmem:[#allocation7 + $0x180] sm:$0xff]
    %v6790 = vld [vmem:[#allocation7 + $0x188] sm:$0xff]
    %v6791 = vld [vmem:[#allocation7 + $0x190] sm:$0xff]
    %v6792 = vld [vmem:[#allocation7 + $0x198] sm:$0xff]
    %v6793 = vld [vmem:[#allocation7 + $0x1a0] sm:$0xff]
    %v6794 = vld [vmem:[#allocation7 + $0x1a8] sm:$0xff]
    %v6795 = vld [vmem:[#allocation7 + $0x1b0] sm:$0xff]
    %v6796 = vld [vmem:[#allocation7 + $0x1b8] sm:$0xff]
    %v6797 = vld [vmem:[#allocation7 + $0x1c0] sm:$0xff]
    %v6798 = vld [vmem:[#allocation7 + $0x1c8] sm:$0xff]
    %v6799 = vld [vmem:[#allocation7 + $0x1d0] sm:$0xff]
    %v6800 = vld [vmem:[#allocation7 + $0x1d8] sm:$0xff]
    %v6801 = vld [vmem:[#allocation7 + $0x1e0] sm:$0xff]
    %v6802 = vld [vmem:[#allocation7 + $0x1e8] sm:$0xff]
    %v6803 = vld [vmem:[#allocation7 + $0x1f0] sm:$0xff]
    %v6804 = vld [vmem:[#allocation7 + $0x1f8] sm:$0xff]
    %v6805 = vld [vmem:[%s3] sm:$0xf]
    %v6807 = vlaneseq
    %v6808 = vshrl.u32 %v6807, 7
    %v6809 = vsub.s32 0, %v6808
    %v6810 = vrot.slane %v6805, %v6809
    %v6811 = vlaneseq
    %v6812 = vshrl.u32 %v6811, 7
    %v6813 = vsub.s32 1, %v6812
    %v6814 = vrot.slane %v6805, %v6813
    %v6815 = vlaneseq
    %v6816 = vshrl.u32 %v6815, 7
    %v6817 = vsub.s32 2, %v6816
    %v6818 = vrot.slane %v6805, %v6817
    %v6819 = vlaneseq
    %v6820 = vshrl.u32 %v6819, 7
    %v6821 = vsub.s32 3, %v6820
    %v6822 = vrot.slane %v6805, %v6821
    %vm6835 = vcmask 1041409
    %v6836 = vsel %vm6835, %v6734, %v6733
    %vm6837 = vcmask 1042434
    %v6838 = vsel %vm6837, %v6735, %v6836
    %vm6839 = vcmask 1043459
    %v6840 = vsel %vm6839, %v6736, %v6838
    %vm6841 = vcmask 1044484
    %v6842 = vsel %vm6841, %v6737, %v6840
    %vm6843 = vcmask 1045509
    %v6844 = vsel %vm6843, %v6738, %v6842
    %vm6845 = vcmask 1046534
    %v6846 = vsel %vm6845, %v6739, %v6844
    %vm6847 = vcmask 1047559
    %v6848 = vsel %vm6847, %v6740, %v6846
    %6850 = vmatprep.subr.mxu0 %v6802
    %6851 = vmatpush1.msra.mxu0 %v6801
    %6852 = vmatprep.subr.mxu0 %v6798
    %6853 = vmatpush1.msra.mxu0 %v6797
    %6854 = vmatprep.subr.mxu0 %v6794
    %6855 = vmatpush1.msra.mxu0 %v6793
    %6856 = vmatprep.subr.mxu0 %v6790
    %6857 = vmatpush1.msra.mxu0 %v6789
    %6858 = vmatprep.subr.mxu0 %v6786
    %6859 = vmatpush1.msra.mxu0 %v6785
    %6860 = vmatprep.subr.mxu0 %v6782
    %6861 = vmatpush1.msra.mxu0 %v6781
    %6862 = vmatprep.subr.mxu0 %v6778
    %6863 = vmatpush1.msra.mxu0 %v6777
    %6864 = vmatprep.subr.mxu0 %v6774
    %6865 = vmatpush1.msra.mxu0 %v6773
    %6866 = vmatprep.subr.mxu0 %v6770
    %6867 = vmatpush1.msra.mxu0 %v6769
    %6868 = vmatprep.subr.mxu0 %v6766
    %6869 = vmatpush1.msra.mxu0 %v6765
    %6870 = vmatprep.subr.mxu0 %v6762
    %6871 = vmatpush1.msra.mxu0 %v6761
    %6872 = vmatprep.subr.mxu0 %v6758
    %6873 = vmatpush1.msra.mxu0 %v6757
    %6874 = vmatprep.subr.mxu0 %v6754
    %6875 = vmatpush1.msra.mxu0 %v6753
    %6876 = vmatprep.subr.mxu0 %v6750
    %6877 = vmatpush1.msra.mxu0 %v6749
    %6878 = vmatprep.subr.mxu0 %v6746
    %6879 = vmatpush1.msra.mxu0 %v6745
    %6880 = vmatprep.subr.mxu0 %v6742
    %6881 = vmatpush1.msra.mxu0 %v6741
    %6882 = vmatprep.subr.mxu0 0.0
    %6883 = vmatpush2.msra.mxu0 0.0
    %6884 = vmatprep.subr.mxu0 0.0
    %6885 = vmatpush2.msra.mxu0 0.0
    %6886 = vmatprep.subr.mxu0 0.0
    %6887 = vmatpush2.msra.mxu0 0.0
    %6888 = vmatprep.subr.mxu0 0.0
    %6889 = vmatpush2.msra.mxu0 0.0
    %6890 = vmatprep.subr.mxu0 0.0
    %6891 = vmatpush2.msra.mxu0 0.0
    %6892 = vmatprep.subr.mxu0 0.0
    %6893 = vmatpush2.msra.mxu0 0.0
    %6894 = vmatprep.subr.mxu0 0.0
    %6895 = vmatpush2.msra.mxu0 0.0
    %6896 = vmatprep.subr.mxu0 0.0
    %6897 = vmatpush2.msra.mxu0 0.0
    %6898 = vmatprep.subr.mxu0 0.0
    %6899 = vmatpush2.msra.mxu0 0.0
    %6900 = vmatprep.subr.mxu0 0.0
    %6901 = vmatpush2.msra.mxu0 0.0
    %6902 = vmatprep.subr.mxu0 0.0
    %6903 = vmatpush2.msra.mxu0 0.0
    %6904 = vmatprep.subr.mxu0 0.0
    %6905 = vmatpush2.msra.mxu0 0.0
    %6906 = vmatprep.subr.mxu0 0.0
    %6907 = vmatpush2.msra.mxu0 0.0
    %6908 = vmatprep.subr.mxu0 0.0
    %6909 = vmatpush2.msra.mxu0 0.0
    %6910 = vmatprep.subr.mxu0 0.0
    %6911 = vmatpush2.msra.mxu0 0.0
    %6912 = vmatprep.subr.mxu0 0.0
    %6913 = vmatpush2.msra.mxu0 0.0
    %6914 = vmatprep.mubr.f32.mxu0 0.0
    %6915 = vmatmul.mubr.f32.gmra.mxu0 %v6848
    %v6916 = vpop.f32.mrf.mxu0
    %v6917 = vadd.f32 %v6810, %v6916
    %v6918 = vpop.f32.mrf.mxu0
    %v6919 = vadd.f32 %v6814, %v6918
    %6920 = vdwg.mxu0
    %6921 = vmatprep.subr.mxu0 %v6804
    %6922 = vmatpush1.msra.mxu0 %v6803
    %6923 = vmatprep.subr.mxu0 %v6800
    %6924 = vmatpush1.msra.mxu0 %v6799
    %6925 = vmatprep.subr.mxu0 %v6796
    %6926 = vmatpush1.msra.mxu0 %v6795
    %6927 = vmatprep.subr.mxu0 %v6792
    %6928 = vmatpush1.msra.mxu0 %v6791
    %6929 = vmatprep.subr.mxu0 %v6788
    %6930 = vmatpush1.msra.mxu0 %v6787
    %6931 = vmatprep.subr.mxu0 %v6784
    %6932 = vmatpush1.msra.mxu0 %v6783
    %6933 = vmatprep.subr.mxu0 %v6780
    %6934 = vmatpush1.msra.mxu0 %v6779
    %6935 = vmatprep.subr.mxu0 %v6776
    %6936 = vmatpush1.msra.mxu0 %v6775
    %6937 = vmatprep.subr.mxu0 %v6772
    %6938 = vmatpush1.msra.mxu0 %v6771
    %6939 = vmatprep.subr.mxu0 %v6768
    %6940 = vmatpush1.msra.mxu0 %v6767
    %6941 = vmatprep.subr.mxu0 %v6764
    %6942 = vmatpush1.msra.mxu0 %v6763
    %6943 = vmatprep.subr.mxu0 %v6760
    %6944 = vmatpush1.msra.mxu0 %v6759
    %6945 = vmatprep.subr.mxu0 %v6756
    %6946 = vmatpush1.msra.mxu0 %v6755
    %6947 = vmatprep.subr.mxu0 %v6752
    %6948 = vmatpush1.msra.mxu0 %v6751
    %6949 = vmatprep.subr.mxu0 %v6748
    %6950 = vmatpush1.msra.mxu0 %v6747
    %6951 = vmatprep.subr.mxu0 %v6744
    %6952 = vmatpush1.msra.mxu0 %v6743
    %6953 = vmatprep.subr.mxu0 0.0
    %6954 = vmatpush2.msra.mxu0 0.0
    %6955 = vmatprep.subr.mxu0 0.0
    %6956 = vmatpush2.msra.mxu0 0.0
    %6957 = vmatprep.subr.mxu0 0.0
    %6958 = vmatpush2.msra.mxu0 0.0
    %6959 = vmatprep.subr.mxu0 0.0
    %6960 = vmatpush2.msra.mxu0 0.0
    %6961 = vmatprep.subr.mxu0 0.0
    %6962 = vmatpush2.msra.mxu0 0.0
    %6963 = vmatprep.subr.mxu0 0.0
    %6964 = vmatpush2.msra.mxu0 0.0
    %6965 = vmatprep.subr.mxu0 0.0
    %6966 = vmatpush2.msra.mxu0 0.0
    %6967 = vmatprep.subr.mxu0 0.0
    %6968 = vmatpush2.msra.mxu0 0.0
    %6969 = vmatprep.subr.mxu0 0.0
    %6970 = vmatpush2.msra.mxu0 0.0
    %6971 = vmatprep.subr.mxu0 0.0
    %6972 = vmatpush2.msra.mxu0 0.0
    %6973 = vmatprep.subr.mxu0 0.0
    %6974 = vmatpush2.msra.mxu0 0.0
    %6975 = vmatprep.subr.mxu0 0.0
    %6976 = vmatpush2.msra.mxu0 0.0
    %6977 = vmatprep.subr.mxu0 0.0
    %6978 = vmatpush2.msra.mxu0 0.0
    %6979 = vmatprep.subr.mxu0 0.0
    %6980 = vmatpush2.msra.mxu0 0.0
    %6981 = vmatprep.subr.mxu0 0.0
    %6982 = vmatpush2.msra.mxu0 0.0
    %6983 = vmatprep.subr.mxu0 0.0
    %6984 = vmatpush2.msra.mxu0 0.0
    %6985 = vmatprep.mubr.f32.mxu0 0.0
    %6986 = vmatmul.mubr.f32.gmra.mxu0 %v6848
    %v6987 = vpop.f32.mrf.mxu0
    %v6988 = vadd.f32 %v6818, %v6987
    %v6989 = vpop.f32.mrf.mxu0
    %v6990 = vadd.f32 %v6822, %v6989
    %6991 = vdwg.mxu0
    %v6992 = vmax.f32 %v6917, 0.0
    %v6993 = vmax.f32 %v6919, 0.0
    %v6994 = vmax.f32 %v6988, 0.0
    %v6995 = vmax.f32 %v6990, 0.0
    %v6996 = vld [vmem:[#allocation8] sm:$0xff]
    %v6997 = vld [vmem:[#allocation8 + $0x8] sm:$0xff]
    %v6998 = vld [vmem:[#allocation8 + $0x10] sm:$0xff]
    %v6999 = vld [vmem:[#allocation8 + $0x18] sm:$0xff]
    %v7000 = vld [vmem:[#allocation8 + $0x20] sm:$0xff]
    %v7001 = vld [vmem:[#allocation8 + $0x28] sm:$0xff]
    %v7002 = vld [vmem:[#allocation8 + $0x30] sm:$0xff]
    %v7003 = vld [vmem:[#allocation8 + $0x38] sm:$0xff]
    %v7004 = vld [vmem:[#allocation8 + $0x40] sm:$0xff]
    %v7005 = vld [vmem:[#allocation8 + $0x48] sm:$0xff]
    %v7006 = vld [vmem:[#allocation8 + $0x50] sm:$0xff]
    %v7007 = vld [vmem:[#allocation8 + $0x58] sm:$0xff]
    %v7008 = vld [vmem:[#allocation8 + $0x60] sm:$0xff]
    %v7009 = vld [vmem:[#allocation8 + $0x68] sm:$0xff]
    %v7010 = vld [vmem:[#allocation8 + $0x70] sm:$0xff]
    %v7011 = vld [vmem:[#allocation8 + $0x78] sm:$0xff]
    %v7012 = vld [vmem:[#allocation8 + $0x80] sm:$0xff]
    %v7013 = vld [vmem:[#allocation8 + $0x88] sm:$0xff]
    %v7014 = vld [vmem:[#allocation8 + $0x90] sm:$0xff]
    %v7015 = vld [vmem:[#allocation8 + $0x98] sm:$0xff]
    %v7016 = vld [vmem:[#allocation8 + $0xa0] sm:$0xff]
    %v7017 = vld [vmem:[#allocation8 + $0xa8] sm:$0xff]
    %v7018 = vld [vmem:[#allocation8 + $0xb0] sm:$0xff]
    %v7019 = vld [vmem:[#allocation8 + $0xb8] sm:$0xff]
    %v7020 = vld [vmem:[#allocation8 + $0xc0] sm:$0xff]
    %v7021 = vld [vmem:[#allocation8 + $0xc8] sm:$0xff]
    %v7022 = vld [vmem:[#allocation8 + $0xd0] sm:$0xff]
    %v7023 = vld [vmem:[#allocation8 + $0xd8] sm:$0xff]
    %v7024 = vld [vmem:[#allocation8 + $0xe0] sm:$0xff]
    %v7025 = vld [vmem:[#allocation8 + $0xe8] sm:$0xff]
    %v7026 = vld [vmem:[#allocation8 + $0xf0] sm:$0xff]
    %v7027 = vld [vmem:[#allocation8 + $0xf8] sm:$0xff]
    %v7028 = vld [vmem:[#allocation8 + $0x100] sm:$0xff]
    %v7029 = vld [vmem:[#allocation8 + $0x108] sm:$0xff]
    %v7030 = vld [vmem:[#allocation8 + $0x110] sm:$0xff]
    %v7031 = vld [vmem:[#allocation8 + $0x118] sm:$0xff]
    %v7032 = vld [vmem:[#allocation8 + $0x120] sm:$0xff]
    %v7033 = vld [vmem:[#allocation8 + $0x128] sm:$0xff]
    %v7034 = vld [vmem:[#allocation8 + $0x130] sm:$0xff]
    %v7035 = vld [vmem:[#allocation8 + $0x138] sm:$0xff]
    %v7036 = vld [vmem:[#allocation8 + $0x140] sm:$0xff]
    %v7037 = vld [vmem:[#allocation8 + $0x148] sm:$0xff]
    %v7038 = vld [vmem:[#allocation8 + $0x150] sm:$0xff]
    %v7039 = vld [vmem:[#allocation8 + $0x158] sm:$0xff]
    %v7040 = vld [vmem:[#allocation8 + $0x160] sm:$0xff]
    %v7041 = vld [vmem:[#allocation8 + $0x168] sm:$0xff]
    %v7042 = vld [vmem:[#allocation8 + $0x170] sm:$0xff]
    %v7043 = vld [vmem:[#allocation8 + $0x178] sm:$0xff]
    %v7044 = vld [vmem:[#allocation8 + $0x180] sm:$0xff]
    %v7045 = vld [vmem:[#allocation8 + $0x188] sm:$0xff]
    %v7046 = vld [vmem:[#allocation8 + $0x190] sm:$0xff]
    %v7047 = vld [vmem:[#allocation8 + $0x198] sm:$0xff]
    %v7048 = vld [vmem:[#allocation8 + $0x1a0] sm:$0xff]
    %v7049 = vld [vmem:[#allocation8 + $0x1a8] sm:$0xff]
    %v7050 = vld [vmem:[#allocation8 + $0x1b0] sm:$0xff]
    %v7051 = vld [vmem:[#allocation8 + $0x1b8] sm:$0xff]
    %v7052 = vld [vmem:[#allocation8 + $0x1c0] sm:$0xff]
    %v7053 = vld [vmem:[#allocation8 + $0x1c8] sm:$0xff]
    %v7054 = vld [vmem:[#allocation8 + $0x1d0] sm:$0xff]
    %v7055 = vld [vmem:[#allocation8 + $0x1d8] sm:$0xff]
    %v7056 = vld [vmem:[#allocation8 + $0x1e0] sm:$0xff]
    %v7057 = vld [vmem:[#allocation8 + $0x1e8] sm:$0xff]
    %v7058 = vld [vmem:[#allocation8 + $0x1f0] sm:$0xff]
    %v7059 = vld [vmem:[#allocation8 + $0x1f8] sm:$0xff]
    %v7060 = vld [vmem:[%s5] sm:$0x1]
    %v7062 = vlaneseq
    %v7063 = vshrl.u32 %v7062, 7
    %v7064 = vsub.s32 0, %v7063
    %v7065 = vrot.slane %v7060, %v7064
    %7067 = vmatprep.subr.mxu0 0.0
    %7068 = vmatpush1.msra.mxu0 %v7011
    %7069 = vmatprep.subr.mxu0 0.0
    %7070 = vmatpush1.msra.mxu0 %v7010
    %7071 = vmatprep.subr.mxu0 0.0
    %7072 = vmatpush1.msra.mxu0 %v7009
    %7073 = vmatprep.subr.mxu0 0.0
    %7074 = vmatpush1.msra.mxu0 %v7008
    %7075 = vmatprep.subr.mxu0 0.0
    %7076 = vmatpush1.msra.mxu0 %v7007
    %7077 = vmatprep.subr.mxu0 0.0
    %7078 = vmatpush1.msra.mxu0 %v7006
    %7079 = vmatprep.subr.mxu0 0.0
    %7080 = vmatpush1.msra.mxu0 %v7005
    %7081 = vmatprep.subr.mxu0 0.0
    %7082 = vmatpush1.msra.mxu0 %v7004
    %7083 = vmatprep.subr.mxu0 0.0
    %7084 = vmatpush1.msra.mxu0 %v7003
    %7085 = vmatprep.subr.mxu0 0.0
    %7086 = vmatpush1.msra.mxu0 %v7002
    %7087 = vmatprep.subr.mxu0 0.0
    %7088 = vmatpush1.msra.mxu0 %v7001
    %7089 = vmatprep.subr.mxu0 0.0
    %7090 = vmatpush1.msra.mxu0 %v7000
    %7091 = vmatprep.subr.mxu0 0.0
    %7092 = vmatpush1.msra.mxu0 %v6999
    %7093 = vmatprep.subr.mxu0 0.0
    %7094 = vmatpush1.msra.mxu0 %v6998
    %7095 = vmatprep.subr.mxu0 0.0
    %7096 = vmatpush1.msra.mxu0 %v6997
    %7097 = vmatprep.subr.mxu0 0.0
    %7098 = vmatpush1.msra.mxu0 %v6996
    %7099 = vmatprep.subr.mxu0 0.0
    %7100 = vmatpush2.msra.mxu0 %v7027
    %7101 = vmatprep.subr.mxu0 0.0
    %7102 = vmatpush2.msra.mxu0 %v7026
    %7103 = vmatprep.subr.mxu0 0.0
    %7104 = vmatpush2.msra.mxu0 %v7025
    %7105 = vmatprep.subr.mxu0 0.0
    %7106 = vmatpush2.msra.mxu0 %v7024
    %7107 = vmatprep.subr.mxu0 0.0
    %7108 = vmatpush2.msra.mxu0 %v7023
    %7109 = vmatprep.subr.mxu0 0.0
    %7110 = vmatpush2.msra.mxu0 %v7022
    %7111 = vmatprep.subr.mxu0 0.0
    %7112 = vmatpush2.msra.mxu0 %v7021
    %7113 = vmatprep.subr.mxu0 0.0
    %7114 = vmatpush2.msra.mxu0 %v7020
    %7115 = vmatprep.subr.mxu0 0.0
    %7116 = vmatpush2.msra.mxu0 %v7019
    %7117 = vmatprep.subr.mxu0 0.0
    %7118 = vmatpush2.msra.mxu0 %v7018
    %7119 = vmatprep.subr.mxu0 0.0
    %7120 = vmatpush2.msra.mxu0 %v7017
    %7121 = vmatprep.subr.mxu0 0.0
    %7122 = vmatpush2.msra.mxu0 %v7016
    %7123 = vmatprep.subr.mxu0 0.0
    %7124 = vmatpush2.msra.mxu0 %v7015
    %7125 = vmatprep.subr.mxu0 0.0
    %7126 = vmatpush2.msra.mxu0 %v7014
    %7127 = vmatprep.subr.mxu0 0.0
    %7128 = vmatpush2.msra.mxu0 %v7013
    %7129 = vmatprep.subr.mxu0 0.0
    %7130 = vmatpush2.msra.mxu0 %v7012
    %7131 = vmatprep.mubr.f32.mxu0 %v6993
    %7132 = vmatmul.mubr.f32.gmra.mxu0 %v6992
    %v7133 = vpop.f32.mrf.mxu0
    %v7134 = vadd.f32 %v7065, %v7133
    %v7135 = vpop.f32.mrf.mxu0
    %7136 = vdwg.mxu0
    %7137 = vmatprep.subr.mxu0 0.0
    %7138 = vmatpush1.msra.mxu0 %v7043
    %7139 = vmatprep.subr.mxu0 0.0
    %7140 = vmatpush1.msra.mxu0 %v7042
    %7141 = vmatprep.subr.mxu0 0.0
    %7142 = vmatpush1.msra.mxu0 %v7041
    %7143 = vmatprep.subr.mxu0 0.0
    %7144 = vmatpush1.msra.mxu0 %v7040
    %7145 = vmatprep.subr.mxu0 0.0
    %7146 = vmatpush1.msra.mxu0 %v7039
    %7147 = vmatprep.subr.mxu0 0.0
    %7148 = vmatpush1.msra.mxu0 %v7038
    %7149 = vmatprep.subr.mxu0 0.0
    %7150 = vmatpush1.msra.mxu0 %v7037
    %7151 = vmatprep.subr.mxu0 0.0
    %7152 = vmatpush1.msra.mxu0 %v7036
    %7153 = vmatprep.subr.mxu0 0.0
    %7154 = vmatpush1.msra.mxu0 %v7035
    %7155 = vmatprep.subr.mxu0 0.0
    %7156 = vmatpush1.msra.mxu0 %v7034
    %7157 = vmatprep.subr.mxu0 0.0
    %7158 = vmatpush1.msra.mxu0 %v7033
    %7159 = vmatprep.subr.mxu0 0.0
    %7160 = vmatpush1.msra.mxu0 %v7032
    %7161 = vmatprep.subr.mxu0 0.0
    %7162 = vmatpush1.msra.mxu0 %v7031
    %7163 = vmatprep.subr.mxu0 0.0
    %7164 = vmatpush1.msra.mxu0 %v7030
    %7165 = vmatprep.subr.mxu0 0.0
    %7166 = vmatpush1.msra.mxu0 %v7029
    %7167 = vmatprep.subr.mxu0 0.0
    %7168 = vmatpush1.msra.mxu0 %v7028
    %7169 = vmatprep.subr.mxu0 0.0
    %7170 = vmatpush2.msra.mxu0 %v7059
    %7171 = vmatprep.subr.mxu0 0.0
    %7172 = vmatpush2.msra.mxu0 %v7058
    %7173 = vmatprep.subr.mxu0 0.0
    %7174 = vmatpush2.msra.mxu0 %v7057
    %7175 = vmatprep.subr.mxu0 0.0
    %7176 = vmatpush2.msra.mxu0 %v7056
    %7177 = vmatprep.subr.mxu0 0.0
    %7178 = vmatpush2.msra.mxu0 %v7055
    %7179 = vmatprep.subr.mxu0 0.0
    %7180 = vmatpush2.msra.mxu0 %v7054
    %7181 = vmatprep.subr.mxu0 0.0
    %7182 = vmatpush2.msra.mxu0 %v7053
    %7183 = vmatprep.subr.mxu0 0.0
    %7184 = vmatpush2.msra.mxu0 %v7052
    %7185 = vmatprep.subr.mxu0 0.0
    %7186 = vmatpush2.msra.mxu0 %v7051
    %7187 = vmatprep.subr.mxu0 0.0
    %7188 = vmatpush2.msra.mxu0 %v7050
    %7189 = vmatprep.subr.mxu0 0.0
    %7190 = vmatpush2.msra.mxu0 %v7049
    %7191 = vmatprep.subr.mxu0 0.0
    %7192 = vmatpush2.msra.mxu0 %v7048
    %7193 = vmatprep.subr.mxu0 0.0
    %7194 = vmatpush2.msra.mxu0 %v7047
    %7195 = vmatprep.subr.mxu0 0.0
    %7196 = vmatpush2.msra.mxu0 %v7046
    %7197 = vmatprep.subr.mxu0 0.0
    %7198 = vmatpush2.msra.mxu0 %v7045
    %7199 = vmatprep.subr.mxu0 0.0
    %7200 = vmatpush2.msra.mxu0 %v7044
    %7201 = vmatprep.mubr.f32.mxu0 %v6995
    %7202 = vmatmul.mubr.f32.gmra.mxu0 %v6994
    %v7203 = vpop.f32.mrf.mxu0
    %v7204 = vadd.f32 %v7134, %v7203
    %v7205 = vpop.f32.mrf.mxu0
    %7206 = vdwg.mxu0
    %7207 = vst [vmem:[#allocation10] sm:$0xff] %v7204
    // Predicated region
    $region42: #{tpu_custom_call.1} parent=1 // pred_check
      _
    $region43: #{tpu_custom_call.1} parent=1 // pred_check_branch
      %7209 = sbr.rel (0) target = $region45
    $region44: #{tpu_custom_call.1} parent=1 // pred_region
      %s7211 = ssub.s32 128, 128
      %7212 = vsyncadd [#allocation4], %s7211
      %s7214 = sshll.u32 [#allocation10], 4
      %s7215 = int_to_ptr.vmem [resolvable:$true] %s7214
      %7217 = dma.vmem_to_hbm [thread:$0]  %s7215, 128, %s6, [#allocation4]
    $region45: #{tpu_custom_call.1} parent=1 // pred_fallthru
      _
    // Predicated region
    $region46: #{tpu_custom_call.1} parent=1 // pred_check
      _
    $region47: #{tpu_custom_call.1} parent=1 // pred_check_branch
      %7219 = sbr.rel (0) target = $region49
    $region48: #{tpu_custom_call.1} parent=1 // pred_region
      %7220 = dma.done [#allocation4], 128
    $region49: #{tpu_custom_call.1} parent=1 // pred_fallthru
      _
    %7221 = vsyncpa [#allocation3], 1
    %7222 = vsyncpa [#allocation6], 1
    %7223 = vsyncpa [#allocation9], 1
    %7224 = vsyncpa [#allocation4], 1

</llo_original>
